<compile_context>
chip_gen: v5e
topology: v5e:2x2
jax: 0.10.0
libtpu: 0.0.40
codegen_flags: <defaults>
</compile_context>

<pallas_src>
import functools
import math

import jax
import jax.numpy as jnp
from jax.experimental import pallas as pl
from jax.experimental.pallas import tpu as pltpu

LN_EPS = 1e-5
DEF_TM, DEF_TN, DEF_TK = 512, 512, 512

_VMEM_LIMIT = None


def _vmem_limit():
  """Generation-aware scoped VMEM budget (~100 MiB v5e/v6e, ~50 MiB v7x)."""
  global _VMEM_LIMIT
  if _VMEM_LIMIT is None:
    try:
      cap = int(pltpu.get_tpu_info().vmem_capacity_bytes)
    except Exception:  # pragma: no cover - conservative fallback
      cap = 64 * 1024 * 1024
    _VMEM_LIMIT = max(32 * 1024 * 1024, min(int(cap * 0.8), 110 * 1024 * 1024))
  return _VMEM_LIMIT


# --------------------------------------------------------------------------
# small helpers
# --------------------------------------------------------------------------
def _round_up(x, m):
  return (x + m - 1) // m * m


def _pad2(x, rows, cols):
  r, c = x.shape
  if r == rows and c == cols:
    return x
  return jnp.pad(x, ((0, rows - r), (0, cols - c)))


def _gelu(x):
  # TODO(synk): reference nn.GELU() is exact erf-GELU; tanh approximation used
  # here (tanh lowers to the EUP on all TPU generations).
  c = math.sqrt(2.0 / math.pi)
  return 0.5 * x * (1.0 + jnp.tanh(c * (x + 0.044715 * x * x * x)))


def _ln_rows(x, g, b):
  mu = jnp.mean(x, axis=-1, keepdims=True)
  var = jnp.mean(jnp.square(x - mu), axis=-1, keepdims=True)
  return (x - mu) * jax.lax.rsqrt(var + LN_EPS) * g + b


# --------------------------------------------------------------------------
# weight preparation (ONCE, at init): bf16 cast + padding to the tile grid
# --------------------------------------------------------------------------
def prep_linear_weight(w, b=None, tn=DEF_TN, tk=DEF_TK):
  """Weight for `linear` (K-tiled): pad K,N, cast to bf16; bias stays f32."""
  K, N = w.shape
  tn = min(tn, _round_up(N, 128))
  tk = min(tk, _round_up(K, 128))
  Kp, Np = _round_up(K, tk), _round_up(N, tn)
  if b is None:
    b = jnp.zeros((N,), jnp.float32)
  return (_pad2(w, Kp, Np).astype(jnp.bfloat16),
          _pad2(b.astype(jnp.float32).reshape(1, N), 1, Np))


def prep_ln_weight(w, b=None, tn=DEF_TN):
  """Weight for `ln_linear` (contraction axis kept whole): pad N, bf16."""
  D, N = w.shape
  tn = min(tn, _round_up(N, 128))
  Np = _round_up(N, tn)
  if b is None:
    b = jnp.zeros((N,), jnp.float32)
  return (_pad2(w, D, Np).astype(jnp.bfloat16),
          _pad2(b.astype(jnp.float32).reshape(1, N), 1, Np))


# --------------------------------------------------------------------------
# tiled matmul with fused bias / GELU / residual epilogue (K-accumulated)
# --------------------------------------------------------------------------
def _linear_kernel(*refs, nk, activation, has_residual):
  if has_residual:
    x_ref, w_ref, b_ref, r_ref, o_ref, acc_ref = refs
  else:
    x_ref, w_ref, b_ref, o_ref, acc_ref = refs
    r_ref = None
  k = pl.program_id(2)

  @pl.when(k == 0)
  def _():
    acc_ref[...] = jnp.zeros_like(acc_ref)

  acc_ref[...] += jnp.dot(x_ref[...].astype(jnp.bfloat16), w_ref[...],
                          preferred_element_type=jnp.float32)

  @pl.when(k == nk - 1)
  def _():
    out = acc_ref[...] + b_ref[...]
    if activation == "gelu":
      out = _gelu(out)
    if has_residual:
      out = out + r_ref[...]
    o_ref[...] = out.astype(o_ref.dtype)


def linear(x, w_bf16, b_f32, *, n_out, residual=None, activation=None,
           out_dtype=jnp.float32, tm=DEF_TM):
  """(M, K) @ pre-padded bf16 (Kp, Np), tiled over (M, N, K), f32 accumulator."""
  M, K = x.shape
  Kp, Np = w_bf16.shape
  tn = min(DEF_TN, Np)
  tk = min(DEF_TK, Kp)
  tm = min(tm, _round_up(M, 8))
  Mp = _round_up(M, tm)
  nk = Kp // tk

  args = [_pad2(x, Mp, Kp), w_bf16, b_f32]
  in_specs = [pl.BlockSpec((tm, tk), lambda i, j, k: (i, k)),
              pl.BlockSpec((tk, tn), lambda i, j, k: (k, j)),
              pl.BlockSpec((1, tn), lambda i, j, k: (0, j))]
  if residual is not None:
    args.append(_pad2(residual, Mp, Np))
    in_specs.append(pl.BlockSpec((tm, tn), lambda i, j, k: (i, j)))

  out = pl.pallas_call(
      functools.partial(_linear_kernel, nk=nk, activation=activation,
                        has_residual=residual is not None),
      grid=(Mp // tm, Np // tn, nk),
      in_specs=in_specs,
      out_specs=pl.BlockSpec((tm, tn), lambda i, j, k: (i, j)),
      out_shape=jax.ShapeDtypeStruct((Mp, Np), out_dtype),
      scratch_shapes=[pltpu.VMEM((tm, tn), jnp.float32)],
      compiler_params=pltpu.CompilerParams(
          dimension_semantics=("parallel", "parallel", "arbitrary"),
          vmem_limit_bytes=_vmem_limit()),
      cost_estimate=pl.CostEstimate(
          flops=2 * Mp * Np * Kp, transcendentals=0,
          bytes_accessed=4 * Mp * Kp + 2 * Kp * Np + 4 * Mp * Np),
  )(*args)
  if Mp != M or Np != n_out:
    out = out[:M, :n_out]
  return out


# --------------------------------------------------------------------------
# fused PreNorm(LayerNorm) + matmul (+bias, +GELU).  The contraction axis is
# the LN axis and is kept whole; LN + bf16 cast of the (tm, D) block runs only
# once per M-tile (at j == 0) into a VMEM scratch reused across all N-tiles.
# --------------------------------------------------------------------------
def _ln_linear_kernel(x_ref, g_ref, bln_ref, w_ref, b_ref, o_ref, xn_ref, *,
                      activation):
  j = pl.program_id(1)

  @pl.when(j == 0)
  def _():
    xn_ref[...] = _ln_rows(x_ref[...], g_ref[...],
                           bln_ref[...]).astype(jnp.bfloat16)

  out = jnp.dot(xn_ref[...], w_ref[...],
                preferred_element_type=jnp.float32) + b_ref[...]
  if activation == "gelu":
    out = _gelu(out)
  o_ref[...] = out.astype(o_ref.dtype)


def ln_linear(x, g, b_ln, w_bf16, b_f32, *, n_out, activation=None,
              out_dtype=jnp.bfloat16, tm=DEF_TM):
  M, D = x.shape
  _, Np = w_bf16.shape
  tn = min(DEF_TN, Np)
  tm = min(tm, _round_up(M, 8))
  Mp = _round_up(M, tm)

  out = pl.pallas_call(
      functools.partial(_ln_linear_kernel, activation=activation),
      grid=(Mp // tm, Np // tn),
      in_specs=[pl.BlockSpec((tm, D), lambda i, j: (i, 0)),
                pl.BlockSpec((1, D), lambda i, j: (0, 0)),
                pl.BlockSpec((1, D), lambda i, j: (0, 0)),
                pl.BlockSpec((D, tn), lambda i, j: (0, j)),
                pl.BlockSpec((1, tn), lambda i, j: (0, j))],
      out_specs=pl.BlockSpec((tm, tn), lambda i, j: (i, j)),
      out_shape=jax.ShapeDtypeStruct((Mp, Np), out_dtype),
      scratch_shapes=[pltpu.VMEM((tm, D), jnp.bfloat16)],
      compiler_params=pltpu.CompilerParams(
          dimension_semantics=("parallel", "arbitrary"),
          vmem_limit_bytes=_vmem_limit()),
      cost_estimate=pl.CostEstimate(
          flops=2 * Mp * Np * D + 8 * Mp * D, transcendentals=0,
          bytes_accessed=4 * Mp * D + 2 * D * Np + 2 * Mp * Np),
  )(_pad2(x, Mp, D), g, b_ln, w_bf16, b_f32)
  if Mp != M or Np != n_out:
    out = out[:M, :n_out]
  return out


# --------------------------------------------------------------------------
# Long-short attention, gridded over (batch, heads).
#   * each program handles ONE head: q/k/v blocks of shape (S, dh).
#   * local branch is banded: only +/-window diagonals, computed via
#     pltpu.roll (XLU) and lane-stacked into one (S, 2w+1) score slab.
#   * global branch: dynamic projection computed as (r, S) so its softmax
#     reduces over the lane axis; landmark GEMMs on the MXU in bf16; the
#     projection softmax is normalized with exact division.
#   * each head writes its own (S, dh) output block directly (no concat).
# --------------------------------------------------------------------------
def _ls_attention_kernel(qkv_ref, wpT_ref, lg_ref, lb_ref, gg_ref, gb_ref,
                         o_ref, *, window, scale):
  q_bf = qkv_ref[0, 0, 0]                      # (S, dh) bf16
  k_bf = qkv_ref[0, 0, 1]
  v_bf = qkv_ref[0, 0, 2]
  S = q_bf.shape[0]

  lg, lb = lg_ref[...], lb_ref[...]
  gg, gb = gg_ref[...], gb_ref[...]

  # global (low-rank) branch: dynamic projection softmax over the sequence.
  pT = jax.lax.dot_general(wpT_ref[...], k_bf, (((1,), (1,)), ((), ())),
                           preferred_element_type=jnp.float32)       # (r, S)
  pT = jnp.exp(pT - jnp.max(pT, axis=-1, keepdims=True))
  pT = pT / jnp.sum(pT, axis=-1, keepdims=True)       # exact normalization
  pT_bf = pT.astype(jnp.bfloat16)
  gk = jnp.dot(pT_bf, k_bf, preferred_element_type=jnp.float32)      # (r, dh)
  gv = jnp.dot(pT_bf, v_bf, preferred_element_type=jnp.float32)      # (r, dh)

  # DualLN on local and global key/value pairs.
  lk = _ln_rows(k_bf.astype(jnp.float32), lg, lb)
  lv = _ln_rows(v_bf.astype(jnp.float32), lg, lb)
  gk = _ln_rows(gk, gg, gb)
  gv = _ln_rows(gv, gg, gb)

  qs = q_bf.astype(jnp.float32) * scale                              # (S, dh)

  # global scores (S, r)
  sg = jax.lax.dot_general(qs.astype(jnp.bfloat16), gk.astype(jnp.bfloat16),
                           (((1,), (1,)), ((), ())),
                           preferred_element_type=jnp.float32)

  # banded local scores, lane-stacked into a single (S, 2w+1) slab.
  row = jax.lax.broadcasted_iota(jnp.int32, (S, 1), 0)
  band_scores = []
  band_values = []
  for delta in range(-window, window + 1):
    shift = (-delta) % S
    k_sh = lk if shift == 0 else pltpu.roll(lk, shift, 0)
    v_sh = lv if shift == 0 else pltpu.roll(lv, shift, 0)
    valid = jnp.logical_and(row + delta >= 0, row + delta <= S - 1)
    s_d = jnp.sum(qs * k_sh, axis=-1, keepdims=True)                 # (S, 1)
    band_scores.append(jnp.where(valid, s_d, -1e30))
    band_values.append(v_sh)
  sb = jnp.concatenate(band_scores, axis=-1)                         # (S, 2w+1)

  # joint softmax over [local band ; global landmarks]
  m = jnp.maximum(jnp.max(sb, axis=-1, keepdims=True),
                  jnp.max(sg, axis=-1, keepdims=True))
  eg = jnp.exp(sg - m)
  eb = jnp.exp(sb - m)                                  # masked lanes -> 0
  denom = jnp.sum(eg, axis=-1, keepdims=True) + jnp.sum(eb, axis=-1,
                                                        keepdims=True)
  acc = jnp.dot(eg.astype(jnp.bfloat16), gv.astype(jnp.bfloat16),
                preferred_element_type=jnp.float32)                  # (S, dh)
  for idx in range(2 * window + 1):
    acc = acc + eb[:, idx:idx + 1] * band_values[idx]

  o_ref[0, 0] = (acc * pl.reciprocal(denom, approx=True)).astype(o_ref.dtype)


def ls_attention(qkv, wpT_bf16, lg, lb, gg, gb, *, window):
  """qkv: (B, heads, 3, S, dh) bf16 -> (B, heads, S, dh) bf16."""
  B, H, _, S, dh = qkv.shape
  r = wpT_bf16.shape[0]
  return pl.pallas_call(
      functools.partial(_ls_attention_kernel, window=window,
                        scale=dh ** -0.5),
      grid=(B, H),
      in_specs=[pl.BlockSpec((1, 1, 3, S, dh), lambda b, h: (b, h, 0, 0, 0)),
                pl.BlockSpec((r, dh), lambda b, h: (0, 0)),
                pl.BlockSpec((1, dh), lambda b, h: (0, 0)),
                pl.BlockSpec((1, dh), lambda b, h: (0, 0)),
                pl.BlockSpec((1, dh), lambda b, h: (0, 0)),
                pl.BlockSpec((1, dh), lambda b, h: (0, 0))],
      out_specs=pl.BlockSpec((1, 1, S, dh), lambda b, h: (b, h, 0, 0)),
      out_shape=jax.ShapeDtypeStruct((B, H, S, dh), jnp.bfloat16),
      compiler_params=pltpu.CompilerParams(
          dimension_semantics=("parallel", "parallel"),
          vmem_limit_bytes=_vmem_limit()),
      cost_estimate=pl.CostEstimate(
          flops=10 * B * H * S * r * dh,
          transcendentals=2 * B * H * S * r,
          bytes_accessed=2 * (3 * B * H * S * dh + B * H * S * dh + H * r * dh)),
  )(qkv, wpT_bf16, lg, lb, gg, gb)


# --------------------------------------------------------------------------
# Parameters (all weights prepared once: bf16, padded, concatenated, transposed)
# --------------------------------------------------------------------------
def init_params(key, vocab_size, dim, heads, depth, n_vec, n_class,
                r=256, ff_mult=4):
  dim_head = dim // heads
  inner = heads * dim_head
  keys = iter(jax.random.split(key, 8 + depth * 8))

  def nrm(shape, scale=0.02):
    return jax.random.normal(next(keys), shape, jnp.float32) * scale

  def ones(shape):
    return jnp.ones(shape, jnp.float32)

  def zeros(shape):
    return jnp.zeros(shape, jnp.float32)

  wlog_w, wlog_b = prep_ln_weight(nrm((dim, dim)), zeros((dim,)))
  wfin_w, wfin_b = prep_linear_weight(nrm((n_vec * vocab_size, n_class)),
                                      zeros((n_class,)))
  params = {
      # inner transformer token / positional embeddings (num_tokens == dim)
      "token_emb": jax.random.normal(next(keys), (dim, dim), jnp.float32),
      "pos_emb": jax.random.normal(next(keys), (n_vec, dim), jnp.float32),
      "layers": [],
      "out_ln_g": ones((1, dim)), "out_ln_b": zeros((1, dim)),
      "w_logits_w": wlog_w, "w_logits_b": wlog_b,
      # LSTransformerHead.final : Linear(n_vec * vocab_size, n_class)
      "w_final_w": wfin_w, "w_final_b": wfin_b,
  }
  for _ in range(depth):
    wq, wkv = nrm((dim, inner)), nrm((dim, 2 * inner))
    wqkv_w, wqkv_b = prep_ln_weight(jnp.concatenate([wq, wkv], axis=1))
    wo_w, wo_b = prep_linear_weight(nrm((inner, dim)), zeros((dim,)))
    w1_w, w1_b = prep_ln_weight(nrm((dim, dim * ff_mult)),
                                zeros((dim * ff_mult,)))
    w2_w, w2_b = prep_linear_weight(nrm((dim * ff_mult, dim)), zeros((dim,)))
    wp = nrm((dim_head, r))
    params["layers"].append({
        "attn_ln_g": ones((1, dim)), "attn_ln_b": zeros((1, dim)),
        "wqkv_w": wqkv_w, "wqkv_b": wqkv_b,
        "wpT": jnp.transpose(wp).astype(jnp.bfloat16),      # (r, dim_head)
        "local_ln_g": ones((1, dim_head)), "local_ln_b": zeros((1, dim_head)),
        "global_ln_g": ones((1, dim_head)), "global_ln_b": zeros((1, dim_head)),
        "wo_w": wo_w, "wo_b": wo_b,
        "ff_ln_g": ones((1, dim)), "ff_ln_b": zeros((1, dim)),
        "w1_w": w1_w, "w1_b": w1_b,
        "w2_w": w2_w, "w2_b": w2_b,
    })
  return params


# --------------------------------------------------------------------------
# Forward pass (embedding gather / head-split transposes are plain-JAX glue)
# --------------------------------------------------------------------------
def forward(params, x, *, heads, n_class, window=1, ff_mult=4, problem="order"):
  """LSTransformerHead.forward. x: int token ids, shape (B, n_vec)."""
  if problem == "adding":
    x = x.astype(jnp.int32)        # mirrors x = x.long() (debug prints omitted)
  B, S = x.shape
  D = params["token_emb"].shape[1]
  inner = D                         # heads * dim_head == dim
  dh = D // heads

  # ---- LongShortTransformer ------------------------------------------------
  h = params["token_emb"][x] + params["pos_emb"][:S][None]
  h = h.reshape(B * S, D)           # residual stream stays f32

  for lyr in params["layers"]:
    # PreNorm + fused QKV projection (LN folded in, q/kv weights pre-merged),
    # emitted in bf16 for the attention kernel.
    qkv = ln_linear(h, lyr["attn_ln_g"], lyr["attn_ln_b"],
                    lyr["wqkv_w"], lyr["wqkv_b"], n_out=3 * inner,
                    out_dtype=jnp.bfloat16)                   # (B*S, 3*inner)
    qkv = jnp.transpose(qkv.reshape(B, S, 3, heads, dh),
                        (0, 3, 2, 1, 4))                      # (B, H, 3, S, dh)

    attn = ls_attention(qkv, lyr["wpT"],
                        lyr["local_ln_g"], lyr["local_ln_b"],
                        lyr["global_ln_g"], lyr["global_ln_b"],
                        window=window)                        # (B, H, S, dh)
    attn = jnp.transpose(attn, (0, 2, 1, 3)).reshape(B * S, inner)  # bf16
    # TODO(synk): the wo projection could be fused into the attention kernel;
    # kept as a separate bf16-input matmul with fused bias + residual.
    h = linear(attn, lyr["wo_w"], lyr["wo_b"], n_out=D, residual=h)

    # PreNorm + FeedForward: fused LN + W1 + b1 + GELU (bf16 out), then
    # W2 + b2 + residual back into the f32 stream.
    ff = ln_linear(h, lyr["ff_ln_g"], lyr["ff_ln_b"], lyr["w1_w"], lyr["w1_b"],
                   n_out=D * ff_mult, activation="gelu",
                   out_dtype=jnp.bfloat16)
    h = linear(ff, lyr["w2_w"], lyr["w2_b"], n_out=D, residual=h)

  # to_logits: LayerNorm + Linear(dim, num_tokens=dim), fused, bf16 out
  logits = ln_linear(h, params["out_ln_g"], params["out_ln_b"],
                     params["w_logits_w"], params["w_logits_b"], n_out=D,
                     out_dtype=jnp.bfloat16)                  # (B*S, D)

  # ---- head: x.view(B, -1) @ final (n_class parked in a 128-lane block) ----
  flat = logits.reshape(B, S * D)            # requires vocab_size == dim
  return linear(flat, params["w_final_w"], params["w_final_b"],
                n_out=n_class, out_dtype=jnp.float32)         # (B, n_class)


# --------------------------------------------------------------------------
if __name__ == "__main__":
  # Small, consistent hyper-params (vocab_size == dim so that
  # Linear(n_vec*vocab_size, n_class) matches the flattened transformer output).
  vocab_size, dim, heads, depth, n_vec, n_class = 32, 32, 2, 2, 8, 4
  problem = "order"        # non-'adding' branch (identical compute path)
  batch = 2

  key = jax.random.PRNGKey(0)
  pkey, xkey = jax.random.split(key)
  params = init_params(pkey, vocab_size, dim, heads, depth, n_vec, n_class,
                       r=256, ff_mult=4)
  x = jax.random.randint(xkey, (batch, n_vec), 0, dim, dtype=jnp.int32)

  fwd = jax.jit(functools.partial(forward, heads=heads, n_class=n_class,
                                  window=1, ff_mult=4, problem=problem))
  out = jax.block_until_ready(fwd(params, x))
  assert out.shape == (batch, n_class), out.shape
  assert bool(jnp.all(jnp.isfinite(out)))
  print("KERNEL_OK")
</pallas_src>

<mosaic_0001>
module attributes {stable_mosaic.version = 11 : i64} {
  func.func @_ln_linear_kernel(%arg0: i32, %arg1: i32, %arg2: memref<16x32xf32, #tpu.memory_space<vmem>>, %arg3: memref<1x32xf32, #tpu.memory_space<vmem>>, %arg4: memref<1x32xf32, #tpu.memory_space<vmem>>, %arg5: memref<32x128xbf16, #tpu.memory_space<vmem>>, %arg6: memref<1x128xf32, #tpu.memory_space<vmem>>, %arg7: memref<16x128xbf16, #tpu.memory_space<vmem>>, %arg8: memref<16x32xbf16, #tpu.memory_space<vmem>>) attributes {dimension_semantics = [#tpu.dimension_semantics<parallel>, #tpu.dimension_semantics<arbitrary>], iteration_bounds = array<i64: 1, 1>, scalar_prefetch = 0 : i64, scratch_operands = 1 : i64, tpu.core_type = #tpu.core_type<tc>, window_params = [{transform_indices = @transform_0, window_bounds = array<i64: 16, 32>}, {pipeline_mode = #tpu.pipeline_mode<synchronous>, transform_indices = @transform_1, window_bounds = array<i64: 1, 32>}, {pipeline_mode = #tpu.pipeline_mode<synchronous>, transform_indices = @transform_2, window_bounds = array<i64: 1, 32>}, {transform_indices = @transform_3, window_bounds = array<i64: 32, 128>}, {transform_indices = @transform_4, window_bounds = array<i64: 1, 128>}, {transform_indices = @transform_5, window_bounds = array<i64: 16, 128>}]} {
    %c0_i32 = arith.constant 0 : i32
    %0 = arith.cmpi eq, %arg1, %c0_i32 : i32
    %1 = arith.extui %0 : i1 to i32
    %c0_i32_0 = arith.constant 0 : i32
    %2 = arith.cmpi ne, %1, %c0_i32_0 : i32
    scf.if %2 {
      %c0_8 = arith.constant 0 : index
      %c0_9 = arith.constant 0 : index
      %11 = vector.load %arg2[%c0_8, %c0_9] : memref<16x32xf32, #tpu.memory_space<vmem>>, vector<16x32xf32>
      %c0_10 = arith.constant 0 : index
      %c0_11 = arith.constant 0 : index
      %12 = vector.load %arg3[%c0_10, %c0_11] : memref<1x32xf32, #tpu.memory_space<vmem>>, vector<1x32xf32>
      %c0_12 = arith.constant 0 : index
      %c0_13 = arith.constant 0 : index
      %13 = vector.load %arg4[%c0_12, %c0_13] : memref<1x32xf32, #tpu.memory_space<vmem>>, vector<1x32xf32>
      %cst_14 = arith.constant dense<0.000000e+00> : vector<16xf32>
      %14 = vector.multi_reduction <add>, %11, %cst_14 [1] : vector<16x32xf32> to vector<16xf32>
      %15 = vector.shape_cast %14 : vector<16xf32> to vector<16x1xf32>
      %cst_15 = arith.constant 3.200000e+01 : f32
      %16 = vector.broadcast %cst_15 : f32 to vector<16x1xf32>
      %17 = arith.divf %15, %16 : vector<16x1xf32>
      %18 = vector.broadcast %17 : vector<16x1xf32> to vector<16x32xf32>
      %19 = arith.subf %11, %18 : vector<16x32xf32>
      %20 = arith.mulf %19, %19 : vector<16x32xf32>
      %cst_16 = arith.constant dense<0.000000e+00> : vector<16xf32>
      %21 = vector.multi_reduction <add>, %20, %cst_16 [1] : vector<16x32xf32> to vector<16xf32>
      %22 = vector.shape_cast %21 : vector<16xf32> to vector<16x1xf32>
      %cst_17 = arith.constant 3.200000e+01 : f32
      %23 = vector.broadcast %cst_17 : f32 to vector<16x1xf32>
      %24 = arith.divf %22, %23 : vector<16x1xf32>
      %25 = vector.broadcast %17 : vector<16x1xf32> to vector<16x32xf32>
      %26 = arith.subf %11, %25 : vector<16x32xf32>
      %cst_18 = arith.constant 9.99999974E-6 : f32
      %27 = vector.broadcast %cst_18 : f32 to vector<16x1xf32>
      %28 = arith.addf %24, %27 : vector<16x1xf32>
      %29 = math.rsqrt %28 : vector<16x1xf32>
      %30 = vector.broadcast %29 : vector<16x1xf32> to vector<16x32xf32>
      %31 = arith.mulf %26, %30 : vector<16x32xf32>
      %32 = vector.broadcast %12 : vector<1x32xf32> to vector<16x32xf32>
      %33 = arith.mulf %31, %32 : vector<16x32xf32>
      %34 = vector.broadcast %13 : vector<1x32xf32> to vector<16x32xf32>
      %35 = arith.addf %33, %34 : vector<16x32xf32>
      %36 = arith.truncf %35 : vector<16x32xf32> to vector<16x32xbf16>
      %c0_19 = arith.constant 0 : index
      %c0_20 = arith.constant 0 : index
      %37 = vector.load %arg8[%c0_19, %c0_20] : memref<16x32xbf16, #tpu.memory_space<vmem>>, vector<16x32xbf16>
      tpu.vector_store %arg8[%c0_19, %c0_20], %36 {strides = array<i32>} : memref<16x32xbf16, #tpu.memory_space<vmem>>, vector<16x32xbf16>,
    } else {
    }
    %c0 = arith.constant 0 : index
    %c0_1 = arith.constant 0 : index
    %3 = vector.load %arg8[%c0, %c0_1] : memref<16x32xbf16, #tpu.memory_space<vmem>>, vector<16x32xbf16>
    %c0_2 = arith.constant 0 : index
    %c0_3 = arith.constant 0 : index
    %4 = vector.load %arg5[%c0_2, %c0_3] : memref<32x128xbf16, #tpu.memory_space<vmem>>, vector<32x128xbf16>
    %cst = arith.constant dense<0.000000e+00> : vector<16x128xf32>
    %5 = tpu.matmul %3, %4, %cst {dimension_numbers = #tpu.dot_dimension_numbers<[1], [0], [0], [1], [0, 0, 1, 1], [], []>} : vector<16x32xbf16>, vector<32x128xbf16>, vector<16x128xf32> -> vector<16x128xf32>
    %c0_4 = arith.constant 0 : index
    %c0_5 = arith.constant 0 : index
    %6 = vector.load %arg6[%c0_4, %c0_5] : memref<1x128xf32, #tpu.memory_space<vmem>>, vector<1x128xf32>
    %7 = vector.broadcast %6 : vector<1x128xf32> to vector<16x128xf32>
    %8 = arith.addf %5, %7 : vector<16x128xf32>
    %9 = arith.truncf %8 : vector<16x128xf32> to vector<16x128xbf16>
    %c0_6 = arith.constant 0 : index
    %c0_7 = arith.constant 0 : index
    %10 = vector.load %arg7[%c0_6, %c0_7] : memref<16x128xbf16, #tpu.memory_space<vmem>>, vector<16x128xbf16>
    tpu.vector_store %arg7[%c0_6, %c0_7], %9 {strides = array<i32>} : memref<16x128xbf16, #tpu.memory_space<vmem>>, vector<16x128xbf16>,
    return
  }
  func.func @transform_0(%arg0: i32, %arg1: i32) -> (i32, i32) {
    %c0_i32 = arith.constant 0 : i32
    %c0_i32_0 = arith.constant 0 : i32
    return %arg0, %c0_i32 : i32, i32
  }
  func.func @transform_1(%arg0: i32, %arg1: i32) -> (i32, i32) {
    %c0_i32 = arith.constant 0 : i32
    %c0_i32_0 = arith.constant 0 : i32
    %c0_i32_1 = arith.constant 0 : i32
    return %c0_i32, %c0_i32_0 : i32, i32
  }
  func.func @transform_2(%arg0: i32, %arg1: i32) -> (i32, i32) {
    %c0_i32 = arith.constant 0 : i32
    %c0_i32_0 = arith.constant 0 : i32
    %c0_i32_1 = arith.constant 0 : i32
    return %c0_i32, %c0_i32_0 : i32, i32
  }
  func.func @transform_3(%arg0: i32, %arg1: i32) -> (i32, i32) {
    %c0_i32 = arith.constant 0 : i32
    %c0_i32_0 = arith.constant 0 : i32
    return %c0_i32, %arg1 : i32, i32
  }
  func.func @transform_4(%arg0: i32, %arg1: i32) -> (i32, i32) {
    %c0_i32 = arith.constant 0 : i32
    %c0_i32_0 = arith.constant 0 : i32
    return %c0_i32, %arg1 : i32, i32
  }
  func.func @transform_5(%arg0: i32, %arg1: i32) -> (i32, i32) {
    %c0_i32 = arith.constant 0 : i32
    return %arg0, %arg1 : i32, i32
  }
}

module attributes {stable_mosaic.version = 11 : i64} {
  func.func @_ls_attention_kernel(%arg0: i32, %arg1: i32, %arg2: memref<1x1x3x8x16xbf16, #tpu.memory_space<vmem>>, %arg3: memref<256x16xbf16, #tpu.memory_space<vmem>>, %arg4: memref<1x16xf32, #tpu.memory_space<vmem>>, %arg5: memref<1x16xf32, #tpu.memory_space<vmem>>, %arg6: memref<1x16xf32, #tpu.memory_space<vmem>>, %arg7: memref<1x16xf32, #tpu.memory_space<vmem>>, %arg8: memref<1x1x8x16xbf16, #tpu.memory_space<vmem>>) attributes {dimension_semantics = [#tpu.dimension_semantics<parallel>, #tpu.dimension_semantics<parallel>], iteration_bounds = array<i64: 2, 2>, scalar_prefetch = 0 : i64, scratch_operands = 0 : i64, tpu.core_type = #tpu.core_type<tc>, window_params = [{transform_indices = @transform_0, window_bounds = array<i64: 1, 1, 3, 8, 16>}, {pipeline_mode = #tpu.pipeline_mode<synchronous>, transform_indices = @transform_1, window_bounds = array<i64: 256, 16>}, {pipeline_mode = #tpu.pipeline_mode<synchronous>, transform_indices = @transform_2, window_bounds = array<i64: 1, 16>}, {pipeline_mode = #tpu.pipeline_mode<synchronous>, transform_indices = @transform_3, window_bounds = array<i64: 1, 16>}, {pipeline_mode = #tpu.pipeline_mode<synchronous>, transform_indices = @transform_4, window_bounds = array<i64: 1, 16>}, {pipeline_mode = #tpu.pipeline_mode<synchronous>, transform_indices = @transform_5, window_bounds = array<i64: 1, 16>}, {transform_indices = @transform_6, window_bounds = array<i64: 1, 1, 8, 16>}]} {
    %c0 = arith.constant 0 : index
    %c0_0 = arith.constant 0 : index
    %c0_1 = arith.constant 0 : index
    %c0_2 = arith.constant 0 : index
    %c0_3 = arith.constant 0 : index
    %0 = vector.load %arg2[%c0, %c0_0, %c0_1, %c0_2, %c0_3] : memref<1x1x3x8x16xbf16, #tpu.memory_space<vmem>>, vector<1x1x1x8x16xbf16>
    %1 = vector.shape_cast %0 : vector<1x1x1x8x16xbf16> to vector<8x16xbf16>
    %c0_4 = arith.constant 0 : index
    %c0_5 = arith.constant 0 : index
    %c1 = arith.constant 1 : index
    %c0_6 = arith.constant 0 : index
    %c0_7 = arith.constant 0 : index
    %2 = vector.load %arg2[%c0_4, %c0_5, %c1, %c0_6, %c0_7] : memref<1x1x3x8x16xbf16, #tpu.memory_space<vmem>>, vector<1x1x1x8x16xbf16>
    %3 = vector.shape_cast %2 : vector<1x1x1x8x16xbf16> to vector<8x16xbf16>
    %c0_8 = arith.constant 0 : index
    %c0_9 = arith.constant 0 : index
    %c2 = arith.constant 2 : index
    %c0_10 = arith.constant 0 : index
    %c0_11 = arith.constant 0 : index
    %4 = vector.load %arg2[%c0_8, %c0_9, %c2, %c0_10, %c0_11] : memref<1x1x3x8x16xbf16, #tpu.memory_space<vmem>>, vector<1x1x1x8x16xbf16>
    %5 = vector.shape_cast %4 : vector<1x1x1x8x16xbf16> to vector<8x16xbf16>
    %c0_12 = arith.constant 0 : index
    %c0_13 = arith.constant 0 : index
    %6 = vector.load %arg4[%c0_12, %c0_13] : memref<1x16xf32, #tpu.memory_space<vmem>>, vector<1x16xf32>
    %c0_14 = arith.constant 0 : index
    %c0_15 = arith.constant 0 : index
    %7 = vector.load %arg5[%c0_14, %c0_15] : memref<1x16xf32, #tpu.memory_space<vmem>>, vector<1x16xf32>
    %c0_16 = arith.constant 0 : index
    %c0_17 = arith.constant 0 : index
    %8 = vector.load %arg6[%c0_16, %c0_17] : memref<1x16xf32, #tpu.memory_space<vmem>>, vector<1x16xf32>
    %c0_18 = arith.constant 0 : index
    %c0_19 = arith.constant 0 : index
    %9 = vector.load %arg7[%c0_18, %c0_19] : memref<1x16xf32, #tpu.memory_space<vmem>>, vector<1x16xf32>
    %c0_20 = arith.constant 0 : index
    %c0_21 = arith.constant 0 : index
    %10 = vector.load %arg3[%c0_20, %c0_21] : memref<256x16xbf16, #tpu.memory_space<vmem>>, vector<256x16xbf16>
    %cst = arith.constant dense<0.000000e+00> : vector<256x8xf32>
    %11 = tpu.matmul %10, %3, %cst {dimension_numbers = #tpu.dot_dimension_numbers<[1], [1], [0], [0], [0, 0, 1, 0], [], []>} : vector<256x16xbf16>, vector<8x16xbf16>, vector<256x8xf32> -> vector<256x8xf32>
    %cst_22 = arith.constant dense<0xFF800000> : vector<256xf32>
    %12 = vector.multi_reduction <maximumf>, %11, %cst_22 [1] : vector<256x8xf32> to vector<256xf32>
    %13 = vector.shape_cast %12 : vector<256xf32> to vector<256x1xf32>
    %14 = vector.broadcast %13 : vector<256x1xf32> to vector<256x8xf32>
    %15 = arith.subf %11, %14 : vector<256x8xf32>
    %16 = math.exp %15 : vector<256x8xf32>
    %cst_23 = arith.constant dense<0.000000e+00> : vector<256xf32>
    %17 = vector.multi_reduction <add>, %16, %cst_23 [1] : vector<256x8xf32> to vector<256xf32>
    %18 = vector.shape_cast %17 : vector<256xf32> to vector<256x1xf32>
    %19 = vector.broadcast %18 : vector<256x1xf32> to vector<256x8xf32>
    %20 = arith.divf %16, %19 : vector<256x8xf32>
    %21 = arith.truncf %20 : vector<256x8xf32> to vector<256x8xbf16>
    %cst_24 = arith.constant dense<0.000000e+00> : vector<256x16xf32>
    %22 = tpu.matmul %21, %3, %cst_24 {dimension_numbers = #tpu.dot_dimension_numbers<[1], [0], [0], [1], [0, 0, 1, 1], [], []>} : vector<256x8xbf16>, vector<8x16xbf16>, vector<256x16xf32> -> vector<256x16xf32>
    %cst_25 = arith.constant dense<0.000000e+00> : vector<256x16xf32>
    %23 = tpu.matmul %21, %5, %cst_25 {dimension_numbers = #tpu.dot_dimension_numbers<[1], [0], [0], [1], [0, 0, 1, 1], [], []>} : vector<256x8xbf16>, vector<8x16xbf16>, vector<256x16xf32> -> vector<256x16xf32>
    %24 = arith.extf %3 : vector<8x16xbf16> to vector<8x16xf32>
    %cst_26 = arith.constant dense<0.000000e+00> : vector<8xf32>
    %25 = vector.multi_reduction <add>, %24, %cst_26 [1] : vector<8x16xf32> to vector<8xf32>
    %26 = vector.shape_cast %25 : vector<8xf32> to vector<8x1xf32>
    %cst_27 = arith.constant 1.600000e+01 : f32
    %27 = vector.broadcast %cst_27 : f32 to vector<8x1xf32>
    %28 = arith.divf %26, %27 : vector<8x1xf32>
    %29 = vector.broadcast %28 : vector<8x1xf32> to vector<8x16xf32>
    %30 = arith.subf %24, %29 : vector<8x16xf32>
    %31 = arith.mulf %30, %30 : vector<8x16xf32>
    %cst_28 = arith.constant dense<0.000000e+00> : vector<8xf32>
    %32 = vector.multi_reduction <add>, %31, %cst_28 [1] : vector<8x16xf32> to vector<8xf32>
    %33 = vector.shape_cast %32 : vector<8xf32> to vector<8x1xf32>
    %cst_29 = arith.constant 1.600000e+01 : f32
    %34 = vector.broadcast %cst_29 : f32 to vector<8x1xf32>
    %35 = arith.divf %33, %34 : vector<8x1xf32>
    %36 = vector.broadcast %28 : vector<8x1xf32> to vector<8x16xf32>
    %37 = arith.subf %24, %36 : vector<8x16xf32>
    %cst_30 = arith.constant 9.99999974E-6 : f32
    %38 = vector.broadcast %cst_30 : f32 to vector<8x1xf32>
    %39 = arith.addf %35, %38 : vector<8x1xf32>
    %40 = math.rsqrt %39 : vector<8x1xf32>
    %41 = vector.broadcast %40 : vector<8x1xf32> to vector<8x16xf32>
    %42 = arith.mulf %37, %41 : vector<8x16xf32>
    %43 = vector.broadcast %6 : vector<1x16xf32> to vector<8x16xf32>
    %44 = arith.mulf %42, %43 : vector<8x16xf32>
    %45 = vector.broadcast %7 : vector<1x16xf32> to vector<8x16xf32>
    %46 = arith.addf %44, %45 : vector<8x16xf32>
    %47 = arith.extf %5 : vector<8x16xbf16> to vector<8x16xf32>
    %cst_31 = arith.constant dense<0.000000e+00> : vector<8xf32>
    %48 = vector.multi_reduction <add>, %47, %cst_31 [1] : vector<8x16xf32> to vector<8xf32>
    %49 = vector.shape_cast %48 : vector<8xf32> to vector<8x1xf32>
    %cst_32 = arith.constant 1.600000e+01 : f32
    %50 = vector.broadcast %cst_32 : f32 to vector<8x1xf32>
    %51 = arith.divf %49, %50 : vector<8x1xf32>
    %52 = vector.broadcast %51 : vector<8x1xf32> to vector<8x16xf32>
    %53 = arith.subf %47, %52 : vector<8x16xf32>
    %54 = arith.mulf %53, %53 : vector<8x16xf32>
    %cst_33 = arith.constant dense<0.000000e+00> : vector<8xf32>
    %55 = vector.multi_reduction <add>, %54, %cst_33 [1] : vector<8x16xf32> to vector<8xf32>
    %56 = vector.shape_cast %55 : vector<8xf32> to vector<8x1xf32>
    %cst_34 = arith.constant 1.600000e+01 : f32
    %57 = vector.broadcast %cst_34 : f32 to vector<8x1xf32>
    %58 = arith.divf %56, %57 : vector<8x1xf32>
    %59 = vector.broadcast %51 : vector<8x1xf32> to vector<8x16xf32>
    %60 = arith.subf %47, %59 : vector<8x16xf32>
    %cst_35 = arith.constant 9.99999974E-6 : f32
    %61 = vector.broadcast %cst_35 : f32 to vector<8x1xf32>
    %62 = arith.addf %58, %61 : vector<8x1xf32>
    %63 = math.rsqrt %62 : vector<8x1xf32>
    %64 = vector.broadcast %63 : vector<8x1xf32> to vector<8x16xf32>
    %65 = arith.mulf %60, %64 : vector<8x16xf32>
    %66 = vector.broadcast %6 : vector<1x16xf32> to vector<8x16xf32>
    %67 = arith.mulf %65, %66 : vector<8x16xf32>
    %68 = vector.broadcast %7 : vector<1x16xf32> to vector<8x16xf32>
    %69 = arith.addf %67, %68 : vector<8x16xf32>
    %cst_36 = arith.constant dense<0.000000e+00> : vector<256xf32>
    %70 = vector.multi_reduction <add>, %22, %cst_36 [1] : vector<256x16xf32> to vector<256xf32>
    %71 = vector.shape_cast %70 : vector<256xf32> to vector<256x1xf32>
    %cst_37 = arith.constant 1.600000e+01 : f32
    %72 = vector.broadcast %cst_37 : f32 to vector<256x1xf32>
    %73 = arith.divf %71, %72 : vector<256x1xf32>
    %74 = vector.broadcast %73 : vector<256x1xf32> to vector<256x16xf32>
    %75 = arith.subf %22, %74 : vector<256x16xf32>
    %76 = arith.mulf %75, %75 : vector<256x16xf32>
    %cst_38 = arith.constant dense<0.000000e+00> : vector<256xf32>
    %77 = vector.multi_reduction <add>, %76, %cst_38 [1] : vector<256x16xf32> to vector<256xf32>
    %78 = vector.shape_cast %77 : vector<256xf32> to vector<256x1xf32>
    %cst_39 = arith.constant 1.600000e+01 : f32
    %79 = vector.broadcast %cst_39 : f32 to vector<256x1xf32>
    %80 = arith.divf %78, %79 : vector<256x1xf32>
    %81 = vector.broadcast %73 : vector<256x1xf32> to vector<256x16xf32>
    %82 = arith.subf %22, %81 : vector<256x16xf32>
    %cst_40 = arith.constant 9.99999974E-6 : f32
    %83 = vector.broadcast %cst_40 : f32 to vector<256x1xf32>
    %84 = arith.addf %80, %83 : vector<256x1xf32>
    %85 = math.rsqrt %84 : vector<256x1xf32>
    %86 = vector.broadcast %85 : vector<256x1xf32> to vector<256x16xf32>
    %87 = arith.mulf %82, %86 : vector<256x16xf32>
    %88 = vector.broadcast %8 : vector<1x16xf32> to vector<256x16xf32>
    %89 = arith.mulf %87, %88 : vector<256x16xf32>
    %90 = vector.broadcast %9 : vector<1x16xf32> to vector<256x16xf32>
    %91 = arith.addf %89, %90 : vector<256x16xf32>
    %cst_41 = arith.constant dense<0.000000e+00> : vector<256xf32>
    %92 = vector.multi_reduction <add>, %23, %cst_41 [1] : vector<256x16xf32> to vector<256xf32>
    %93 = vector.shape_cast %92 : vector<256xf32> to vector<256x1xf32>
    %cst_42 = arith.constant 1.600000e+01 : f32
    %94 = vector.broadcast %cst_42 : f32 to vector<256x1xf32>
    %95 = arith.divf %93, %94 : vector<256x1xf32>
    %96 = vector.broadcast %95 : vector<256x1xf32> to vector<256x16xf32>
    %97 = arith.subf %23, %96 : vector<256x16xf32>
    %98 = arith.mulf %97, %97 : vector<256x16xf32>
    %cst_43 = arith.constant dense<0.000000e+00> : vector<256xf32>
    %99 = vector.multi_reduction <add>, %98, %cst_43 [1] : vector<256x16xf32> to vector<256xf32>
    %100 = vector.shape_cast %99 : vector<256xf32> to vector<256x1xf32>
    %cst_44 = arith.constant 1.600000e+01 : f32
    %101 = vector.broadcast %cst_44 : f32 to vector<256x1xf32>
    %102 = arith.divf %100, %101 : vector<256x1xf32>
    %103 = vector.broadcast %95 : vector<256x1xf32> to vector<256x16xf32>
    %104 = arith.subf %23, %103 : vector<256x16xf32>
    %cst_45 = arith.constant 9.99999974E-6 : f32
    %105 = vector.broadcast %cst_45 : f32 to vector<256x1xf32>
    %106 = arith.addf %102, %105 : vector<256x1xf32>
    %107 = math.rsqrt %106 : vector<256x1xf32>
    %108 = vector.broadcast %107 : vector<256x1xf32> to vector<256x16xf32>
    %109 = arith.mulf %104, %108 : vector<256x16xf32>
    %110 = vector.broadcast %8 : vector<1x16xf32> to vector<256x16xf32>
    %111 = arith.mulf %109, %110 : vector<256x16xf32>
    %112 = vector.broadcast %9 : vector<1x16xf32> to vector<256x16xf32>
    %113 = arith.addf %111, %112 : vector<256x16xf32>
    %114 = arith.extf %1 : vector<8x16xbf16> to vector<8x16xf32>
    %cst_46 = arith.constant 2.500000e-01 : f32
    %115 = vector.broadcast %cst_46 : f32 to vector<8x16xf32>
    %116 = arith.mulf %114, %115 : vector<8x16xf32>
    %117 = arith.truncf %116 : vector<8x16xf32> to vector<8x16xbf16>
    %118 = arith.truncf %91 : vector<256x16xf32> to vector<256x16xbf16>
    %cst_47 = arith.constant dense<0.000000e+00> : vector<8x256xf32>
    %119 = tpu.matmul %117, %118, %cst_47 {dimension_numbers = #tpu.dot_dimension_numbers<[1], [1], [0], [0], [0, 0, 1, 0], [], []>} : vector<8x16xbf16>, vector<256x16xbf16>, vector<8x256xf32> -> vector<8x256xf32>
    %120 = tpu.iota {dimensions = array<i32: 0>} : vector<8x1xi32>
    %c1_i32 = arith.constant 1 : i32
    %121 = tpu.dynamic_rotate %46 by %c1_i32 dim 0 : vector<8x16xf32>, i32 -> vector<8x16xf32>
    %c1_i32_48 = arith.constant 1 : i32
    %122 = tpu.dynamic_rotate %69 by %c1_i32_48 dim 0 : vector<8x16xf32>, i32 -> vector<8x16xf32>
    %c-1_i32 = arith.constant -1 : i32
    %123 = vector.broadcast %c-1_i32 : i32 to vector<8x1xi32>
    %124 = arith.addi %120, %123 : vector<8x1xi32>
    %c0_i32 = arith.constant 0 : i32
    %125 = vector.broadcast %c0_i32 : i32 to vector<8x1xi32>
    %126 = arith.cmpi sge, %124, %125 : vector<8x1xi32>
    %c-1_i32_49 = arith.constant -1 : i32
    %127 = vector.broadcast %c-1_i32_49 : i32 to vector<8x1xi32>
    %128 = arith.addi %120, %127 : vector<8x1xi32>
    %c7_i32 = arith.constant 7 : i32
    %129 = vector.broadcast %c7_i32 : i32 to vector<8x1xi32>
    %130 = arith.cmpi sle, %128, %129 : vector<8x1xi32>
    %131 = arith.andi %126, %130 : vector<8x1xi1>
    %132 = arith.mulf %116, %121 : vector<8x16xf32>
    %cst_50 = arith.constant dense<0.000000e+00> : vector<8xf32>
    %133 = vector.multi_reduction <add>, %132, %cst_50 [1] : vector<8x16xf32> to vector<8xf32>
    %134 = vector.shape_cast %133 : vector<8xf32> to vector<8x1xf32>
    %cst_51 = arith.constant -1.000000e+30 : f32
    %135 = vector.broadcast %cst_51 : f32 to vector<8x1xf32>
    %136 = arith.select %131, %134, %135 : vector<8x1xi1>, vector<8x1xf32>
    %c0_i32_52 = arith.constant 0 : i32
    %137 = vector.broadcast %c0_i32_52 : i32 to vector<8x1xi32>
    %138 = arith.addi %120, %137 : vector<8x1xi32>
    %c0_i32_53 = arith.constant 0 : i32
    %139 = vector.broadcast %c0_i32_53 : i32 to vector<8x1xi32>
    %140 = arith.cmpi sge, %138, %139 : vector<8x1xi32>
    %c0_i32_54 = arith.constant 0 : i32
    %141 = vector.broadcast %c0_i32_54 : i32 to vector<8x1xi32>
    %142 = arith.addi %120, %141 : vector<8x1xi32>
    %c7_i32_55 = arith.constant 7 : i32
    %143 = vector.broadcast %c7_i32_55 : i32 to vector<8x1xi32>
    %144 = arith.cmpi sle, %142, %143 : vector<8x1xi32>
    %145 = arith.andi %140, %144 : vector<8x1xi1>
    %146 = arith.mulf %116, %46 : vector<8x16xf32>
    %cst_56 = arith.constant dense<0.000000e+00> : vector<8xf32>
    %147 = vector.multi_reduction <add>, %146, %cst_56 [1] : vector<8x16xf32> to vector<8xf32>
    %148 = vector.shape_cast %147 : vector<8xf32> to vector<8x1xf32>
    %cst_57 = arith.constant -1.000000e+30 : f32
    %149 = vector.broadcast %cst_57 : f32 to vector<8x1xf32>
    %150 = arith.select %145, %148, %149 : vector<8x1xi1>, vector<8x1xf32>
    %c7_i32_58 = arith.constant 7 : i32
    %151 = tpu.dynamic_rotate %46 by %c7_i32_58 dim 0 : vector<8x16xf32>, i32 -> vector<8x16xf32>
    %c7_i32_59 = arith.constant 7 : i32
    %152 = tpu.dynamic_rotate %69 by %c7_i32_59 dim 0 : vector<8x16xf32>, i32 -> vector<8x16xf32>
    %c1_i32_60 = arith.constant 1 : i32
    %153 = vector.broadcast %c1_i32_60 : i32 to vector<8x1xi32>
    %154 = arith.addi %120, %153 : vector<8x1xi32>
    %c0_i32_61 = arith.constant 0 : i32
    %155 = vector.broadcast %c0_i32_61 : i32 to vector<8x1xi32>
    %156 = arith.cmpi sge, %154, %155 : vector<8x1xi32>
    %c1_i32_62 = arith.constant 1 : i32
    %157 = vector.broadcast %c1_i32_62 : i32 to vector<8x1xi32>
    %158 = arith.addi %120, %157 : vector<8x1xi32>
    %c7_i32_63 = arith.constant 7 : i32
    %159 = vector.broadcast %c7_i32_63 : i32 to vector<8x1xi32>
    %160 = arith.cmpi sle, %158, %159 : vector<8x1xi32>
    %161 = arith.andi %156, %160 : vector<8x1xi1>
    %162 = arith.mulf %116, %151 : vector<8x16xf32>
    %cst_64 = arith.constant dense<0.000000e+00> : vector<8xf32>
    %163 = vector.multi_reduction <add>, %162, %cst_64 [1] : vector<8x16xf32> to vector<8xf32>
    %164 = vector.shape_cast %163 : vector<8xf32> to vector<8x1xf32>
    %cst_65 = arith.constant -1.000000e+30 : f32
    %165 = vector.broadcast %cst_65 : f32 to vector<8x1xf32>
    %166 = arith.select %161, %164, %165 : vector<8x1xi1>, vector<8x1xf32>
    %167 = tpu.concatenate %136, %150, %166 in 1 : vector<8x1xf32>, vector<8x1xf32>, vector<8x1xf32> -> vector<8x3xf32>
    %cst_66 = arith.constant dense<0xFF800000> : vector<8xf32>
    %168 = vector.multi_reduction <maximumf>, %167, %cst_66 [1] : vector<8x3xf32> to vector<8xf32>
    %169 = vector.shape_cast %168 : vector<8xf32> to vector<8x1xf32>
    %cst_67 = arith.constant dense<0xFF800000> : vector<8xf32>
    %170 = vector.multi_reduction <maximumf>, %119, %cst_67 [1] : vector<8x256xf32> to vector<8xf32>
    %171 = vector.shape_cast %170 : vector<8xf32> to vector<8x1xf32>
    %172 = arith.maximumf %169, %171 : vector<8x1xf32>
    %173 = vector.broadcast %172 : vector<8x1xf32> to vector<8x256xf32>
    %174 = arith.subf %119, %173 : vector<8x256xf32>
    %175 = math.exp %174 : vector<8x256xf32>
    %176 = vector.broadcast %172 : vector<8x1xf32> to vector<8x3xf32>
    %177 = arith.subf %167, %176 : vector<8x3xf32>
    %178 = math.exp %177 : vector<8x3xf32>
    %cst_68 = arith.constant dense<0.000000e+00> : vector<8xf32>
    %179 = vector.multi_reduction <add>, %175, %cst_68 [1] : vector<8x256xf32> to vector<8xf32>
    %180 = vector.shape_cast %179 : vector<8xf32> to vector<8x1xf32>
    %cst_69 = arith.constant dense<0.000000e+00> : vector<8xf32>
    %181 = vector.multi_reduction <add>, %178, %cst_69 [1] : vector<8x3xf32> to vector<8xf32>
    %182 = vector.shape_cast %181 : vector<8xf32> to vector<8x1xf32>
    %183 = arith.addf %180, %182 : vector<8x1xf32>
    %184 = arith.truncf %175 : vector<8x256xf32> to vector<8x256xbf16>
    %185 = arith.truncf %113 : vector<256x16xf32> to vector<256x16xbf16>
    %cst_70 = arith.constant dense<0.000000e+00> : vector<8x16xf32>
    %186 = tpu.matmul %184, %185, %cst_70 {dimension_numbers = #tpu.dot_dimension_numbers<[1], [0], [0], [1], [0, 0, 1, 1], [], []>} : vector<8x256xbf16>, vector<256x16xbf16>, vector<8x16xf32> -> vector<8x16xf32>
    %187 = vector.extract_strided_slice %178 {offsets = [0, 0], sizes = [8, 1], strides = [1, 1]} : vector<8x3xf32> to vector<8x1xf32>
    %188 = vector.broadcast %187 : vector<8x1xf32> to vector<8x16xf32>
    %189 = arith.mulf %188, %122 : vector<8x16xf32>
    %190 = arith.addf %186, %189 : vector<8x16xf32>
    %191 = vector.extract_strided_slice %178 {offsets = [0, 1], sizes = [8, 1], strides = [1, 1]} : vector<8x3xf32> to vector<8x1xf32>
    %192 = vector.broadcast %191 : vector<8x1xf32> to vector<8x16xf32>
    %193 = arith.mulf %192, %69 : vector<8x16xf32>
    %194 = arith.addf %190, %193 : vector<8x16xf32>
    %195 = vector.extract_strided_slice %178 {offsets = [0, 2], sizes = [8, 1], strides = [1, 1]} : vector<8x3xf32> to vector<8x1xf32>
    %196 = vector.broadcast %195 : vector<8x1xf32> to vector<8x16xf32>
    %197 = arith.mulf %196, %152 : vector<8x16xf32>
    %198 = arith.addf %194, %197 : vector<8x16xf32>
    %199 = tpu.reciprocal %183 {approx = true} : vector<8x1xf32> -> vector<8x1xf32>
    %200 = vector.broadcast %199 : vector<8x1xf32> to vector<8x16xf32>
    %201 = arith.mulf %198, %200 : vector<8x16xf32>
    %202 = arith.truncf %201 : vector<8x16xf32> to vector<8x16xbf16>
    %c0_71 = arith.constant 0 : index
    %c0_72 = arith.constant 0 : index
    %c0_73 = arith.constant 0 : index
    %c0_74 = arith.constant 0 : index
    %203 = vector.load %arg8[%c0_71, %c0_72, %c0_73, %c0_74] : memref<1x1x8x16xbf16, #tpu.memory_space<vmem>>, vector<1x1x8x16xbf16>
    %204 = vector.shape_cast %203 : vector<1x1x8x16xbf16> to vector<8x16xbf16>
    %205 = vector.shape_cast %202 : vector<8x16xbf16> to vector<1x1x8x16xbf16>
    tpu.vector_store %arg8[%c0_71, %c0_72, %c0_73, %c0_74], %205 {strides = array<i32>} : memref<1x1x8x16xbf16, #tpu.memory_space<vmem>>, vector<1x1x8x16xbf16>,
    return
  }
  func.func @transform_0(%arg0: i32, %arg1: i32) -> (i32, i32, i32, i32, i32) {
    %c0_i32 = arith.constant 0 : i32
    %c0_i32_0 = arith.constant 0 : i32
    %c0_i32_1 = arith.constant 0 : i32
    %c0_i32_2 = arith.constant 0 : i32
    return %arg0, %arg1, %c0_i32, %c0_i32_0, %c0_i32_1 : i32, i32, i32, i32, i32
  }
  func.func @transform_1(%arg0: i32, %arg1: i32) -> (i32, i32) {
    %c0_i32 = arith.constant 0 : i32
    %c0_i32_0 = arith.constant 0 : i32
    %c0_i32_1 = arith.constant 0 : i32
    return %c0_i32, %c0_i32_0 : i32, i32
  }
  func.func @transform_2(%arg0: i32, %arg1: i32) -> (i32, i32) {
    %c0_i32 = arith.constant 0 : i32
    %c0_i32_0 = arith.constant 0 : i32
    %c0_i32_1 = arith.constant 0 : i32
    return %c0_i32, %c0_i32_0 : i32, i32
  }
  func.func @transform_3(%arg0: i32, %arg1: i32) -> (i32, i32) {
    %c0_i32 = arith.constant 0 : i32
    %c0_i32_0 = arith.constant 0 : i32
    %c0_i32_1 = arith.constant 0 : i32
    return %c0_i32, %c0_i32_0 : i32, i32
  }
  func.func @transform_4(%arg0: i32, %arg1: i32) -> (i32, i32) {
    %c0_i32 = arith.constant 0 : i32
    %c0_i32_0 = arith.constant 0 : i32
    %c0_i32_1 = arith.constant 0 : i32
    return %c0_i32, %c0_i32_0 : i32, i32
  }
  func.func @transform_5(%arg0: i32, %arg1: i32) -> (i32, i32) {
    %c0_i32 = arith.constant 0 : i32
    %c0_i32_0 = arith.constant 0 : i32
    %c0_i32_1 = arith.constant 0 : i32
    return %c0_i32, %c0_i32_0 : i32, i32
  }
  func.func @transform_6(%arg0: i32, %arg1: i32) -> (i32, i32, i32, i32) {
    %c0_i32 = arith.constant 0 : i32
    %c0_i32_0 = arith.constant 0 : i32
    %c0_i32_1 = arith.constant 0 : i32
    return %arg0, %arg1, %c0_i32, %c0_i32_0 : i32, i32, i32, i32
  }
}

module attributes {stable_mosaic.version = 11 : i64} {
  func.func @_linear_kernel(%arg0: i32, %arg1: i32, %arg2: i32, %arg3: memref<16x128xbf16, #tpu.memory_space<vmem>>, %arg4: memref<128x128xbf16, #tpu.memory_space<vmem>>, %arg5: memref<1x128xf32, #tpu.memory_space<vmem>>, %arg6: memref<16x128xf32, #tpu.memory_space<vmem>>, %arg7: memref<16x128xf32, #tpu.memory_space<vmem>>, %arg8: memref<16x128xf32, #tpu.memory_space<vmem>>) attributes {dimension_semantics = [#tpu.dimension_semantics<parallel>, #tpu.dimension_semantics<parallel>, #tpu.dimension_semantics<arbitrary>], iteration_bounds = array<i64: 1, 1, 1>, scalar_prefetch = 0 : i64, scratch_operands = 1 : i64, tpu.core_type = #tpu.core_type<tc>, window_params = [{transform_indices = @transform_0, window_bounds = array<i64: 16, 128>}, {transform_indices = @transform_1, window_bounds = array<i64: 128, 128>}, {transform_indices = @transform_2, window_bounds = array<i64: 1, 128>}, {transform_indices = @transform_3, window_bounds = array<i64: 16, 128>}, {transform_indices = @transform_4, window_bounds = array<i64: 16, 128>}]} {
    %c0_i32 = arith.constant 0 : i32
    %0 = arith.cmpi eq, %arg2, %c0_i32 : i32
    %1 = arith.extui %0 : i1 to i32
    %c0_i32_0 = arith.constant 0 : i32
    %2 = arith.cmpi ne, %1, %c0_i32_0 : i32
    scf.if %2 {
      %cst_10 = arith.constant 0.000000e+00 : f32
      %12 = vector.broadcast %cst_10 : f32 to vector<16x128xf32>
      %c0_11 = arith.constant 0 : index
      %c0_12 = arith.constant 0 : index
      %13 = vector.load %arg8[%c0_11, %c0_12] : memref<16x128xf32, #tpu.memory_space<vmem>>, vector<16x128xf32>
      tpu.vector_store %arg8[%c0_11, %c0_12], %12 {strides = array<i32>} : memref<16x128xf32, #tpu.memory_space<vmem>>, vector<16x128xf32>,
    } else {
    }
    %c0 = arith.constant 0 : index
    %c0_1 = arith.constant 0 : index
    %3 = vector.load %arg8[%c0, %c0_1] : memref<16x128xf32, #tpu.memory_space<vmem>>, vector<16x128xf32>
    %c0_2 = arith.constant 0 : index
    %c0_3 = arith.constant 0 : index
    %4 = vector.load %arg3[%c0_2, %c0_3] : memref<16x128xbf16, #tpu.memory_space<vmem>>, vector<16x128xbf16>
    %c0_4 = arith.constant 0 : index
    %c0_5 = arith.constant 0 : index
    %5 = vector.load %arg4[%c0_4, %c0_5] : memref<128x128xbf16, #tpu.memory_space<vmem>>, vector<128x128xbf16>
    %cst = arith.constant dense<0.000000e+00> : vector<16x128xf32>
    %6 = tpu.matmul %4, %5, %cst {dimension_numbers = #tpu.dot_dimension_numbers<[1], [0], [0], [1], [0, 0, 1, 1], [], []>} : vector<16x128xbf16>, vector<128x128xbf16>, vector<16x128xf32> -> vector<16x128xf32>
    %7 = arith.addf %3, %6 : vector<16x128xf32>
    %c0_6 = arith.constant 0 : index
    %c0_7 = arith.constant 0 : index
    %8 = vector.load %arg8[%c0_6, %c0_7] : memref<16x128xf32, #tpu.memory_space<vmem>>, vector<16x128xf32>
    tpu.vector_store %arg8[%c0_6, %c0_7], %7 {strides = array<i32>} : memref<16x128xf32, #tpu.memory_space<vmem>>, vector<16x128xf32>,
    %c0_i32_8 = arith.constant 0 : i32
    %9 = arith.cmpi eq, %arg2, %c0_i32_8 : i32
    %10 = arith.extui %9 : i1 to i32
    %c0_i32_9 = arith.constant 0 : i32
    %11 = arith.cmpi ne, %10, %c0_i32_9 : i32
    scf.if %11 {
      %c0_10 = arith.constant 0 : index
      %c0_11 = arith.constant 0 : index
      %12 = vector.load %arg8[%c0_10, %c0_11] : memref<16x128xf32, #tpu.memory_space<vmem>>, vector<16x128xf32>
      %c0_12 = arith.constant 0 : index
      %c0_13 = arith.constant 0 : index
      %13 = vector.load %arg5[%c0_12, %c0_13] : memref<1x128xf32, #tpu.memory_space<vmem>>, vector<1x128xf32>
      %14 = vector.broadcast %13 : vector<1x128xf32> to vector<16x128xf32>
      %15 = arith.addf %12, %14 : vector<16x128xf32>
      %c0_14 = arith.constant 0 : index
      %c0_15 = arith.constant 0 : index
      %16 = vector.load %arg6[%c0_14, %c0_15] : memref<16x128xf32, #tpu.memory_space<vmem>>, vector<16x128xf32>
      %17 = arith.addf %15, %16 : vector<16x128xf32>
      %c0_16 = arith.constant 0 : index
      %c0_17 = arith.constant 0 : index
      %18 = vector.load %arg7[%c0_16, %c0_17] : memref<16x128xf32, #tpu.memory_space<vmem>>, vector<16x128xf32>
      tpu.vector_store %arg7[%c0_16, %c0_17], %17 {strides = array<i32>} : memref<16x128xf32, #tpu.memory_space<vmem>>, vector<16x128xf32>,
    } else {
    }
    return
  }
  func.func @transform_0(%arg0: i32, %arg1: i32, %arg2: i32) -> (i32, i32) {
    %c0_i32 = arith.constant 0 : i32
    return %arg0, %arg2 : i32, i32
  }
  func.func @transform_1(%arg0: i32, %arg1: i32, %arg2: i32) -> (i32, i32) {
    %c0_i32 = arith.constant 0 : i32
    return %arg2, %arg1 : i32, i32
  }
  func.func @transform_2(%arg0: i32, %arg1: i32, %arg2: i32) -> (i32, i32) {
    %c0_i32 = arith.constant 0 : i32
    %c0_i32_0 = arith.constant 0 : i32
    return %c0_i32, %arg1 : i32, i32
  }
  func.func @transform_3(%arg0: i32, %arg1: i32, %arg2: i32) -> (i32, i32) {
    %c0_i32 = arith.constant 0 : i32
    return %arg0, %arg1 : i32, i32
  }
  func.func @transform_4(%arg0: i32, %arg1: i32, %arg2: i32) -> (i32, i32) {
    %c0_i32 = arith.constant 0 : i32
    return %arg0, %arg1 : i32, i32
  }
}

module attributes {stable_mosaic.version = 11 : i64} {
  func.func @_ln_linear_kernel(%arg0: i32, %arg1: i32, %arg2: memref<16x32xf32, #tpu.memory_space<vmem>>, %arg3: memref<1x32xf32, #tpu.memory_space<vmem>>, %arg4: memref<1x32xf32, #tpu.memory_space<vmem>>, %arg5: memref<32x128xbf16, #tpu.memory_space<vmem>>, %arg6: memref<1x128xf32, #tpu.memory_space<vmem>>, %arg7: memref<16x128xbf16, #tpu.memory_space<vmem>>, %arg8: memref<16x32xbf16, #tpu.memory_space<vmem>>) attributes {dimension_semantics = [#tpu.dimension_semantics<parallel>, #tpu.dimension_semantics<arbitrary>], iteration_bounds = array<i64: 1, 1>, scalar_prefetch = 0 : i64, scratch_operands = 1 : i64, tpu.core_type = #tpu.core_type<tc>, window_params = [{transform_indices = @transform_0, window_bounds = array<i64: 16, 32>}, {pipeline_mode = #tpu.pipeline_mode<synchronous>, transform_indices = @transform_1, window_bounds = array<i64: 1, 32>}, {pipeline_mode = #tpu.pipeline_mode<synchronous>, transform_indices = @transform_2, window_bounds = array<i64: 1, 32>}, {transform_indices = @transform_3, window_bounds = array<i64: 32, 128>}, {transform_indices = @transform_4, window_bounds = array<i64: 1, 128>}, {transform_indices = @transform_5, window_bounds = array<i64: 16, 128>}]} {
    %c0_i32 = arith.constant 0 : i32
    %0 = arith.cmpi eq, %arg1, %c0_i32 : i32
    %1 = arith.extui %0 : i1 to i32
    %c0_i32_0 = arith.constant 0 : i32
    %2 = arith.cmpi ne, %1, %c0_i32_0 : i32
    scf.if %2 {
      %c0_12 = arith.constant 0 : index
      %c0_13 = arith.constant 0 : index
      %24 = vector.load %arg2[%c0_12, %c0_13] : memref<16x32xf32, #tpu.memory_space<vmem>>, vector<16x32xf32>
      %c0_14 = arith.constant 0 : index
      %c0_15 = arith.constant 0 : index
      %25 = vector.load %arg3[%c0_14, %c0_15] : memref<1x32xf32, #tpu.memory_space<vmem>>, vector<1x32xf32>
      %c0_16 = arith.constant 0 : index
      %c0_17 = arith.constant 0 : index
      %26 = vector.load %arg4[%c0_16, %c0_17] : memref<1x32xf32, #tpu.memory_space<vmem>>, vector<1x32xf32>
      %cst_18 = arith.constant dense<0.000000e+00> : vector<16xf32>
      %27 = vector.multi_reduction <add>, %24, %cst_18 [1] : vector<16x32xf32> to vector<16xf32>
      %28 = vector.shape_cast %27 : vector<16xf32> to vector<16x1xf32>
      %cst_19 = arith.constant 3.200000e+01 : f32
      %29 = vector.broadcast %cst_19 : f32 to vector<16x1xf32>
      %30 = arith.divf %28, %29 : vector<16x1xf32>
      %31 = vector.broadcast %30 : vector<16x1xf32> to vector<16x32xf32>
      %32 = arith.subf %24, %31 : vector<16x32xf32>
      %33 = arith.mulf %32, %32 : vector<16x32xf32>
      %cst_20 = arith.constant dense<0.000000e+00> : vector<16xf32>
      %34 = vector.multi_reduction <add>, %33, %cst_20 [1] : vector<16x32xf32> to vector<16xf32>
      %35 = vector.shape_cast %34 : vector<16xf32> to vector<16x1xf32>
      %cst_21 = arith.constant 3.200000e+01 : f32
      %36 = vector.broadcast %cst_21 : f32 to vector<16x1xf32>
      %37 = arith.divf %35, %36 : vector<16x1xf32>
      %38 = vector.broadcast %30 : vector<16x1xf32> to vector<16x32xf32>
      %39 = arith.subf %24, %38 : vector<16x32xf32>
      %cst_22 = arith.constant 9.99999974E-6 : f32
      %40 = vector.broadcast %cst_22 : f32 to vector<16x1xf32>
      %41 = arith.addf %37, %40 : vector<16x1xf32>
      %42 = math.rsqrt %41 : vector<16x1xf32>
      %43 = vector.broadcast %42 : vector<16x1xf32> to vector<16x32xf32>
      %44 = arith.mulf %39, %43 : vector<16x32xf32>
      %45 = vector.broadcast %25 : vector<1x32xf32> to vector<16x32xf32>
      %46 = arith.mulf %44, %45 : vector<16x32xf32>
      %47 = vector.broadcast %26 : vector<1x32xf32> to vector<16x32xf32>
      %48 = arith.addf %46, %47 : vector<16x32xf32>
      %49 = arith.truncf %48 : vector<16x32xf32> to vector<16x32xbf16>
      %c0_23 = arith.constant 0 : index
      %c0_24 = arith.constant 0 : index
      %50 = vector.load %arg8[%c0_23, %c0_24] : memref<16x32xbf16, #tpu.memory_space<vmem>>, vector<16x32xbf16>
      tpu.vector_store %arg8[%c0_23, %c0_24], %49 {strides = array<i32>} : memref<16x32xbf16, #tpu.memory_space<vmem>>, vector<16x32xbf16>,
    } else {
    }
    %c0 = arith.constant 0 : index
    %c0_1 = arith.constant 0 : index
    %3 = vector.load %arg8[%c0, %c0_1] : memref<16x32xbf16, #tpu.memory_space<vmem>>, vector<16x32xbf16>
    %c0_2 = arith.constant 0 : index
    %c0_3 = arith.constant 0 : index
    %4 = vector.load %arg5[%c0_2, %c0_3] : memref<32x128xbf16, #tpu.memory_space<vmem>>, vector<32x128xbf16>
    %cst = arith.constant dense<0.000000e+00> : vector<16x128xf32>
    %5 = tpu.matmul %3, %4, %cst {dimension_numbers = #tpu.dot_dimension_numbers<[1], [0], [0], [1], [0, 0, 1, 1], [], []>} : vector<16x32xbf16>, vector<32x128xbf16>, vector<16x128xf32> -> vector<16x128xf32>
    %c0_4 = arith.constant 0 : index
    %c0_5 = arith.constant 0 : index
    %6 = vector.load %arg6[%c0_4, %c0_5] : memref<1x128xf32, #tpu.memory_space<vmem>>, vector<1x128xf32>
    %7 = vector.broadcast %6 : vector<1x128xf32> to vector<16x128xf32>
    %8 = arith.addf %5, %7 : vector<16x128xf32>
    %cst_6 = arith.constant 5.000000e-01 : f32
    %9 = vector.broadcast %cst_6 : f32 to vector<16x128xf32>
    %10 = arith.mulf %9, %8 : vector<16x128xf32>
    %cst_7 = arith.constant 4.471500e-02 : f32
    %11 = vector.broadcast %cst_7 : f32 to vector<16x128xf32>
    %12 = arith.mulf %11, %8 : vector<16x128xf32>
    %13 = arith.mulf %12, %8 : vector<16x128xf32>
    %14 = arith.mulf %13, %8 : vector<16x128xf32>
    %15 = arith.addf %8, %14 : vector<16x128xf32>
    %cst_8 = arith.constant 0.797884583 : f32
    %16 = vector.broadcast %cst_8 : f32 to vector<16x128xf32>
    %17 = arith.mulf %16, %15 : vector<16x128xf32>
    %18 = math.tanh %17 : vector<16x128xf32>
    %cst_9 = arith.constant 1.000000e+00 : f32
    %19 = vector.broadcast %cst_9 : f32 to vector<16x128xf32>
    %20 = arith.addf %19, %18 : vector<16x128xf32>
    %21 = arith.mulf %10, %20 : vector<16x128xf32>
    %22 = arith.truncf %21 : vector<16x128xf32> to vector<16x128xbf16>
    %c0_10 = arith.constant 0 : index
    %c0_11 = arith.constant 0 : index
    %23 = vector.load %arg7[%c0_10, %c0_11] : memref<16x128xbf16, #tpu.memory_space<vmem>>, vector<16x128xbf16>
    tpu.vector_store %arg7[%c0_10, %c0_11], %22 {strides = array<i32>} : memref<16x128xbf16, #tpu.memory_space<vmem>>, vector<16x128xbf16>,
    return
  }
  func.func @transform_0(%arg0: i32, %arg1: i32) -> (i32, i32) {
    %c0_i32 = arith.constant 0 : i32
    %c0_i32_0 = arith.constant 0 : i32
    return %arg0, %c0_i32 : i32, i32
  }
  func.func @transform_1(%arg0: i32, %arg1: i32) -> (i32, i32) {
    %c0_i32 = arith.constant 0 : i32
    %c0_i32_0 = arith.constant 0 : i32
    %c0_i32_1 = arith.constant 0 : i32
    return %c0_i32, %c0_i32_0 : i32, i32
  }
  func.func @transform_2(%arg0: i32, %arg1: i32) -> (i32, i32) {
    %c0_i32 = arith.constant 0 : i32
    %c0_i32_0 = arith.constant 0 : i32
    %c0_i32_1 = arith.constant 0 : i32
    return %c0_i32, %c0_i32_0 : i32, i32
  }
  func.func @transform_3(%arg0: i32, %arg1: i32) -> (i32, i32) {
    %c0_i32 = arith.constant 0 : i32
    %c0_i32_0 = arith.constant 0 : i32
    return %c0_i32, %arg1 : i32, i32
  }
  func.func @transform_4(%arg0: i32, %arg1: i32) -> (i32, i32) {
    %c0_i32 = arith.constant 0 : i32
    %c0_i32_0 = arith.constant 0 : i32
    return %c0_i32, %arg1 : i32, i32
  }
  func.func @transform_5(%arg0: i32, %arg1: i32) -> (i32, i32) {
    %c0_i32 = arith.constant 0 : i32
    return %arg0, %arg1 : i32, i32
  }
}

module attributes {stable_mosaic.version = 11 : i64} {
  func.func @_linear_kernel(%arg0: i32, %arg1: i32, %arg2: i32, %arg3: memref<8x256xbf16, #tpu.memory_space<vmem>>, %arg4: memref<256x128xbf16, #tpu.memory_space<vmem>>, %arg5: memref<1x128xf32, #tpu.memory_space<vmem>>, %arg6: memref<8x128xf32, #tpu.memory_space<vmem>>, %arg7: memref<8x128xf32, #tpu.memory_space<vmem>>) attributes {dimension_semantics = [#tpu.dimension_semantics<parallel>, #tpu.dimension_semantics<parallel>, #tpu.dimension_semantics<arbitrary>], iteration_bounds = array<i64: 1, 1, 1>, scalar_prefetch = 0 : i64, scratch_operands = 1 : i64, tpu.core_type = #tpu.core_type<tc>, window_params = [{transform_indices = @transform_0, window_bounds = array<i64: 8, 256>}, {transform_indices = @transform_1, window_bounds = array<i64: 256, 128>}, {transform_indices = @transform_2, window_bounds = array<i64: 1, 128>}, {transform_indices = @transform_3, window_bounds = array<i64: 8, 128>}]} {
    %c0_i32 = arith.constant 0 : i32
    %0 = arith.cmpi eq, %arg2, %c0_i32 : i32
    %1 = arith.extui %0 : i1 to i32
    %c0_i32_0 = arith.constant 0 : i32
    %2 = arith.cmpi ne, %1, %c0_i32_0 : i32
    scf.if %2 {
      %cst_10 = arith.constant 0.000000e+00 : f32
      %12 = vector.broadcast %cst_10 : f32 to vector<8x128xf32>
      %c0_11 = arith.constant 0 : index
      %c0_12 = arith.constant 0 : index
      %13 = vector.load %arg7[%c0_11, %c0_12] : memref<8x128xf32, #tpu.memory_space<vmem>>, vector<8x128xf32>
      tpu.vector_store %arg7[%c0_11, %c0_12], %12 {strides = array<i32>} : memref<8x128xf32, #tpu.memory_space<vmem>>, vector<8x128xf32>,
    } else {
    }
    %c0 = arith.constant 0 : index
    %c0_1 = arith.constant 0 : index
    %3 = vector.load %arg7[%c0, %c0_1] : memref<8x128xf32, #tpu.memory_space<vmem>>, vector<8x128xf32>
    %c0_2 = arith.constant 0 : index
    %c0_3 = arith.constant 0 : index
    %4 = vector.load %arg3[%c0_2, %c0_3] : memref<8x256xbf16, #tpu.memory_space<vmem>>, vector<8x256xbf16>
    %c0_4 = arith.constant 0 : index
    %c0_5 = arith.constant 0 : index
    %5 = vector.load %arg4[%c0_4, %c0_5] : memref<256x128xbf16, #tpu.memory_space<vmem>>, vector<256x128xbf16>
    %cst = arith.constant dense<0.000000e+00> : vector<8x128xf32>
    %6 = tpu.matmul %4, %5, %cst {dimension_numbers = #tpu.dot_dimension_numbers<[1], [0], [0], [1], [0, 0, 1, 1], [], []>} : vector<8x256xbf16>, vector<256x128xbf16>, vector<8x128xf32> -> vector<8x128xf32>
    %7 = arith.addf %3, %6 : vector<8x128xf32>
    %c0_6 = arith.constant 0 : index
    %c0_7 = arith.constant 0 : index
    %8 = vector.load %arg7[%c0_6, %c0_7] : memref<8x128xf32, #tpu.memory_space<vmem>>, vector<8x128xf32>
    tpu.vector_store %arg7[%c0_6, %c0_7], %7 {strides = array<i32>} : memref<8x128xf32, #tpu.memory_space<vmem>>, vector<8x128xf32>,
    %c0_i32_8 = arith.constant 0 : i32
    %9 = arith.cmpi eq, %arg2, %c0_i32_8 : i32
    %10 = arith.extui %9 : i1 to i32
    %c0_i32_9 = arith.constant 0 : i32
    %11 = arith.cmpi ne, %10, %c0_i32_9 : i32
    scf.if %11 {
      %c0_10 = arith.constant 0 : index
      %c0_11 = arith.constant 0 : index
      %12 = vector.load %arg7[%c0_10, %c0_11] : memref<8x128xf32, #tpu.memory_space<vmem>>, vector<8x128xf32>
      %c0_12 = arith.constant 0 : index
      %c0_13 = arith.constant 0 : index
      %13 = vector.load %arg5[%c0_12, %c0_13] : memref<1x128xf32, #tpu.memory_space<vmem>>, vector<1x128xf32>
      %14 = vector.broadcast %13 : vector<1x128xf32> to vector<8x128xf32>
      %15 = arith.addf %12, %14 : vector<8x128xf32>
      %c0_14 = arith.constant 0 : index
      %c0_15 = arith.constant 0 : index
      %16 = vector.load %arg6[%c0_14, %c0_15] : memref<8x128xf32, #tpu.memory_space<vmem>>, vector<8x128xf32>
      tpu.vector_store %arg6[%c0_14, %c0_15], %15 {strides = array<i32>} : memref<8x128xf32, #tpu.memory_space<vmem>>, vector<8x128xf32>,
    } else {
    }
    return
  }
  func.func @transform_0(%arg0: i32, %arg1: i32, %arg2: i32) -> (i32, i32) {
    %c0_i32 = arith.constant 0 : i32
    return %arg0, %arg2 : i32, i32
  }
  func.func @transform_1(%arg0: i32, %arg1: i32, %arg2: i32) -> (i32, i32) {
    %c0_i32 = arith.constant 0 : i32
    return %arg2, %arg1 : i32, i32
  }
  func.func @transform_2(%arg0: i32, %arg1: i32, %arg2: i32) -> (i32, i32) {
    %c0_i32 = arith.constant 0 : i32
    %c0_i32_0 = arith.constant 0 : i32
    return %c0_i32, %arg1 : i32, i32
  }
  func.func @transform_3(%arg0: i32, %arg1: i32, %arg2: i32) -> (i32, i32) {
    %c0_i32 = arith.constant 0 : i32
    return %arg0, %arg1 : i32, i32
  }
}

</mosaic_0001>

<llo_original>
// kernel: forward.12
$region0: #{forward.12}
  #allocation0 [shape = 'u32[]', space=smem, size = 0x4, offset = 0x4, fixed_abs, tag = 'smem constant byte address 0x4 - core index']
  #allocation1 [shape = 'u32[72,128]{1,0:T(1,128)}', space=vmem, size = 0x9000, scoped, tag = 'internal scratch']
  #allocation2 [shape = 'bf16[16,32]{1,0:T(8,128)(2,1)}', space=vmem, size = 0x1000, scoped, tag = 'scratch operand']
  %s0 = inlined_call_operand.vmem [shape: f32[16,32], index: 0, kind: input, shape index: {}]
  %s1 = inlined_call_operand.vmem [shape: f32[1,32], index: 1, kind: input, shape index: {}]
  %s2 = inlined_call_operand.vmem [shape: f32[1,32], index: 2, kind: input, shape index: {}]
  %s3 = inlined_call_operand.vmem [shape: bf16[32,128], index: 3, kind: input, shape index: {}]
  %s4 = inlined_call_operand.vmem [shape: f32[1,128], index: 4, kind: input, shape index: {}]
  %s5 = inlined_call_operand.vmem [shape: bf16[16,128], index: 5, kind: output, shape index: {}]
  %s6 = sld [smem:[#allocation0]]
  $region34: #{forward.12} parent=0
    _
  %s8 = ssub.s32 1, %s6
  %s9 = scalar_select 0, %s8, %s6
  // Predicated region
  $region2: #{forward.12} parent=0 // pred_check
    _
  $region3: #{forward.12} parent=0 // pred_check_branch
    %11 = sbr.rel (0) target = $region5
  $region4: #{forward.12} parent=0 // pred_region
    _
  $region5: #{forward.12} parent=0 // pred_fallthru
    _
  // Predicated region
  $region6: #{forward.12} parent=0 // pred_check
    _
  $region7: #{forward.12} parent=0 // pred_check_branch
    %13 = sbr.rel (0) target = $region9
  $region8: #{forward.12} parent=0 // pred_region
    _
  $region9: #{forward.12} parent=0 // pred_fallthru
    _
  // Predicated region
  $region10: #{forward.12} parent=0 // pred_check
    _
  $region11: #{forward.12} parent=0 // pred_check_branch
    %15 = sbr.rel (0) target = $region13
  $region12: #{forward.12} parent=0 // pred_region
    _
  $region13: #{forward.12} parent=0 // pred_fallthru
    _
  // Predicated region
  $region14: #{forward.12} parent=0 // pred_check
    _
  $region15: #{forward.12} parent=0 // pred_check_branch
    %17 = sbr.rel (0) target = $region17
  $region16: #{forward.12} parent=0 // pred_region
    _
  $region17: #{forward.12} parent=0 // pred_fallthru
    _
  // Predicated region
  $region18: #{forward.12} parent=0 // pred_check
    _
  $region19: #{forward.12} parent=0 // pred_check_branch
    %19 = sbr.rel (0) target = $region21
  $region20: #{forward.12} parent=0 // pred_region
    _
  $region21: #{forward.12} parent=0 // pred_fallthru
    _
  %p21 = scmp.eq.s32.totalorder 0, 0
  // Predicated region
  $region22: #{forward.12} parent=0 // pred_check
    %p22 = pneg %p21
  $region23: #{forward.12} parent=0 // pred_check_branch
    %24 = sbr.rel (%p22) target = $region25
  $region24: #{forward.12} parent=0 // pred_region
    %v25 = vld [vmem:[%s0] sm:$0xff]
    %v26 = vld [vmem:[%s0 + $0x8] sm:$0xff]
    %v27 = vld [vmem:[%s1] sm:$0x1]
    %v28 = vld [vmem:[%s2] sm:$0x1]
    %vm29 = vcmask 261120
    %v30 = vsel %vm29, %v25, 0.0
    %31 = vadd.xlane.f32.xlu0 %v30
    %v32 = vpop.xlane.xlu0 %31
    %v33 = vsel %vm29, %v26, 0.0
    %34 = vadd.xlane.f32.xlu0 %v33
    %v35 = vpop.xlane.xlu0 %34
    %v36 = vrcp.pop 32.0
    %v37 = vmul.f32 32.0, %v36
    %v38 = vsub.f32 1.0, %v37
    %v39 = vmul.f32 %v36, %v38
    %v40 = vadd.f32 %v36, %v39
    %vm41 = vweird.f32 %v36
    %v42 = vsel %vm41, %v36, %v40
    %v43 = vmul.f32 %v32, %v42
    %v44 = vmul.f32 %v35, %v42
    %v45 = vsub.f32 %v25, %v43
    %v46 = vsub.f32 %v26, %v44
    %v47 = vmul.f32 %v45, %v45
    %v48 = vmul.f32 %v46, %v46
    %v49 = vsel %vm29, %v47, 0.0
    %50 = vadd.xlane.f32.xlu0 %v49
    %v51 = vpop.xlane.xlu0 %50
    %v52 = vsel %vm29, %v48, 0.0
    %53 = vadd.xlane.f32.xlu0 %v52
    %v54 = vpop.xlane.xlu0 %53
    %v55 = vmul.f32 %v51, %v42
    %v56 = vmul.f32 %v54, %v42
    %v57 = vadd.f32 %v55, 1e-05
    %v58 = vadd.f32 %v56, 1e-05
    %v59 = vrsqrt.pop %v57
    %v60 = vmul.f32 %v59, %v57
    %v61 = vmul.f32 %v60, %v59
    %v62 = vmul.f32 0.5, %v61
    %v63 = vsub.f32 1.5, %v62
    %v64 = vmul.f32 %v59, %v63
    %vm65 = vweird.f32 %v57
    %vm66 = vweird.f32 %v59
    %vm67 = vmor %vm65, %vm66
    %v68 = vsel %vm67, %v59, %v64
    %v69 = vrsqrt.pop %v58
    %v70 = vmul.f32 %v69, %v58
    %v71 = vmul.f32 %v70, %v69
    %v72 = vmul.f32 0.5, %v71
    %v73 = vsub.f32 1.5, %v72
    %v74 = vmul.f32 %v69, %v73
    %vm75 = vweird.f32 %v58
    %vm76 = vweird.f32 %v69
    %vm77 = vmor %vm75, %vm76
    %v78 = vsel %vm77, %v69, %v74
    %v79 = vmul.f32 %v45, %v68
    %v80 = vmul.f32 %v46, %v78
    %v82 = vperm.slane %v27, 0
    %v84 = vmul.f32 %v79, %v82
    %v85 = vmul.f32 %v80, %v82
    %v87 = vperm.slane %v28, 0
    %v89 = vadd.f32 %v84, %v87
    %v90 = vadd.f32 %v85, %v87
    %v91 = vpack.c.bf16 %v89, %v89
    %v92 = vpack.c.bf16 %v90, %v90
    %vm93 = vcmask 257024
    %94 = vst.msk [vmem:[#allocation2] sm:$0xf] %vm93, %v91
    %95 = vst.msk [vmem:[#allocation2 + $0x4] sm:$0xf] %vm93, %v92
  $region25: #{forward.12} parent=0 // pred_fallthru
    _
  %v96 = vld [vmem:[#allocation2] sm:$0xf]
  %v97 = vld [vmem:[#allocation2 + $0x4] sm:$0xf]
  %v98 = vld [vmem:[%s3] sm:$0xf]
  %v99 = vld [vmem:[%s3 + $0x4] sm:$0xf]
  %v100 = vld [vmem:[%s3 + $0x8] sm:$0xf]
  %v101 = vld [vmem:[%s3 + $0xc] sm:$0xf]
  %v102 = vld [vmem:[%s4] sm:$0x1]
  %v104 = vperm.slane %v102, 0
  %v108 = vunpack.c.l.b16 %v96
  %v109 = vunpack.c.l.b16 %v97
  %v110 = vpack.c.b16 %v109, %v108
  %v115 = vunpack.c.l.b16 %v98
  %v116 = vunpack.c.l.b16 %v99
  %v117 = vunpack.c.l.b16 %v100
  %v118 = vunpack.c.l.b16 %v101
  %v119 = vpack.c.b16 %v116, %v115
  %v120 = vpack.c.b16 %v118, %v117
  %vm123 = vcmask 261120
  %v125 = vsel %vm123, %v110, 0
  %127 = vmatpush.bf16.msra.mxu0 0
  %128 = vmatpush.bf16.msra.mxu0 0
  %129 = vmatpush.bf16.msra.mxu0 0
  %130 = vmatpush.bf16.msra.mxu0 0
  %131 = vmatpush.bf16.msra.mxu0 0
  %132 = vmatpush.bf16.msra.mxu0 0
  %133 = vmatpush.bf16.msra.mxu0 %v120
  %134 = vmatpush.bf16.msra.mxu0 %v119
  %135 = vmatmul.bf16.gmra.mxu0 %v125
  %v136 = vpop.f32.mrf.mxu0
  %v137 = vadd.f32 %v104, %v136
  %v138 = vpop.f32.mrf.mxu0
  %v139 = vadd.f32 %v104, %v138
  %140 = vdwg.mxu0
  %v141 = vpack.c.bf16 %v137, %v137
  %v142 = vpack.c.bf16 %v139, %v139
  %143 = vst [vmem:[%s5] sm:$0xf] %v141
  %144 = vst [vmem:[%s5 + $0x4] sm:$0xf] %v142
  // Predicated region
  $region26: #{forward.12} parent=0 // pred_check
    _
  $region27: #{forward.12} parent=0 // pred_check_branch
    %146 = sbr.rel (0) target = $region29
  $region28: #{forward.12} parent=0 // pred_region
    _
  $region29: #{forward.12} parent=0 // pred_fallthru
    _
  // Predicated region
  $region30: #{forward.12} parent=0 // pred_check
    _
  $region31: #{forward.12} parent=0 // pred_check_branch
    %148 = sbr.rel (0) target = $region33
  $region32: #{forward.12} parent=0 // pred_region
    _
  $region33: #{forward.12} parent=0 // pred_fallthru
    _

// kernel: forward.15
$region0: #{forward.15}
  #allocation0 [shape = 'u32[]', space=smem, size = 0x4, offset = 0x4, fixed_abs, tag = 'smem constant byte address 0x4 - core index']
  #allocation1 [shape = 'u32[72,128]{1,0:T(1,128)}', space=vmem, size = 0x9000, scoped, tag = 'internal scratch']
  #allocation2 [shape = 'bf16[16,32]{1,0:T(8,128)(2,1)}', space=vmem, size = 0x1000, scoped, tag = 'scratch operand']
  %s0 = inlined_call_operand.vmem [shape: f32[16,32], index: 0, kind: input, shape index: {}]
  %s1 = inlined_call_operand.vmem [shape: f32[1,32], index: 1, kind: input, shape index: {}]
  %s2 = inlined_call_operand.vmem [shape: f32[1,32], index: 2, kind: input, shape index: {}]
  %s3 = inlined_call_operand.vmem [shape: bf16[32,128], index: 3, kind: input, shape index: {}]
  %s4 = inlined_call_operand.vmem [shape: f32[1,128], index: 4, kind: input, shape index: {}]
  %s5 = inlined_call_operand.vmem [shape: bf16[16,128], index: 5, kind: output, shape index: {}]
  %s6 = sld [smem:[#allocation0]]
  $region34: #{forward.15} parent=0
    _
  %s8 = ssub.s32 1, %s6
  %s9 = scalar_select 0, %s8, %s6
  // Predicated region
  $region2: #{forward.15} parent=0 // pred_check
    _
  $region3: #{forward.15} parent=0 // pred_check_branch
    %11 = sbr.rel (0) target = $region5
  $region4: #{forward.15} parent=0 // pred_region
    _
  $region5: #{forward.15} parent=0 // pred_fallthru
    _
  // Predicated region
  $region6: #{forward.15} parent=0 // pred_check
    _
  $region7: #{forward.15} parent=0 // pred_check_branch
    %13 = sbr.rel (0) target = $region9
  $region8: #{forward.15} parent=0 // pred_region
    _
  $region9: #{forward.15} parent=0 // pred_fallthru
    _
  // Predicated region
  $region10: #{forward.15} parent=0 // pred_check
    _
  $region11: #{forward.15} parent=0 // pred_check_branch
    %15 = sbr.rel (0) target = $region13
  $region12: #{forward.15} parent=0 // pred_region
    _
  $region13: #{forward.15} parent=0 // pred_fallthru
    _
  // Predicated region
  $region14: #{forward.15} parent=0 // pred_check
    _
  $region15: #{forward.15} parent=0 // pred_check_branch
    %17 = sbr.rel (0) target = $region17
  $region16: #{forward.15} parent=0 // pred_region
    _
  $region17: #{forward.15} parent=0 // pred_fallthru
    _
  // Predicated region
  $region18: #{forward.15} parent=0 // pred_check
    _
  $region19: #{forward.15} parent=0 // pred_check_branch
    %19 = sbr.rel (0) target = $region21
  $region20: #{forward.15} parent=0 // pred_region
    _
  $region21: #{forward.15} parent=0 // pred_fallthru
    _
  %p21 = scmp.eq.s32.totalorder 0, 0
  // Predicated region
  $region22: #{forward.15} parent=0 // pred_check
    %p22 = pneg %p21
  $region23: #{forward.15} parent=0 // pred_check_branch
    %24 = sbr.rel (%p22) target = $region25
  $region24: #{forward.15} parent=0 // pred_region
    %v25 = vld [vmem:[%s0] sm:$0xff]
    %v26 = vld [vmem:[%s0 + $0x8] sm:$0xff]
    %v27 = vld [vmem:[%s1] sm:$0x1]
    %v28 = vld [vmem:[%s2] sm:$0x1]
    %vm29 = vcmask 261120
    %v30 = vsel %vm29, %v25, 0.0
    %31 = vadd.xlane.f32.xlu0 %v30
    %v32 = vpop.xlane.xlu0 %31
    %v33 = vsel %vm29, %v26, 0.0
    %34 = vadd.xlane.f32.xlu0 %v33
    %v35 = vpop.xlane.xlu0 %34
    %v36 = vrcp.pop 32.0
    %v37 = vmul.f32 32.0, %v36
    %v38 = vsub.f32 1.0, %v37
    %v39 = vmul.f32 %v36, %v38
    %v40 = vadd.f32 %v36, %v39
    %vm41 = vweird.f32 %v36
    %v42 = vsel %vm41, %v36, %v40
    %v43 = vmul.f32 %v32, %v42
    %v44 = vmul.f32 %v35, %v42
    %v45 = vsub.f32 %v25, %v43
    %v46 = vsub.f32 %v26, %v44
    %v47 = vmul.f32 %v45, %v45
    %v48 = vmul.f32 %v46, %v46
    %v49 = vsel %vm29, %v47, 0.0
    %50 = vadd.xlane.f32.xlu0 %v49
    %v51 = vpop.xlane.xlu0 %50
    %v52 = vsel %vm29, %v48, 0.0
    %53 = vadd.xlane.f32.xlu0 %v52
    %v54 = vpop.xlane.xlu0 %53
    %v55 = vmul.f32 %v51, %v42
    %v56 = vmul.f32 %v54, %v42
    %v57 = vadd.f32 %v55, 1e-05
    %v58 = vadd.f32 %v56, 1e-05
    %v59 = vrsqrt.pop %v57
    %v60 = vmul.f32 %v59, %v57
    %v61 = vmul.f32 %v60, %v59
    %v62 = vmul.f32 0.5, %v61
    %v63 = vsub.f32 1.5, %v62
    %v64 = vmul.f32 %v59, %v63
    %vm65 = vweird.f32 %v57
    %vm66 = vweird.f32 %v59
    %vm67 = vmor %vm65, %vm66
    %v68 = vsel %vm67, %v59, %v64
    %v69 = vrsqrt.pop %v58
    %v70 = vmul.f32 %v69, %v58
    %v71 = vmul.f32 %v70, %v69
    %v72 = vmul.f32 0.5, %v71
    %v73 = vsub.f32 1.5, %v72
    %v74 = vmul.f32 %v69, %v73
    %vm75 = vweird.f32 %v58
    %vm76 = vweird.f32 %v69
    %vm77 = vmor %vm75, %vm76
    %v78 = vsel %vm77, %v69, %v74
    %v79 = vmul.f32 %v45, %v68
    %v80 = vmul.f32 %v46, %v78
    %v82 = vperm.slane %v27, 0
    %v84 = vmul.f32 %v79, %v82
    %v85 = vmul.f32 %v80, %v82
    %v87 = vperm.slane %v28, 0
    %v89 = vadd.f32 %v84, %v87
    %v90 = vadd.f32 %v85, %v87
    %v91 = vpack.c.bf16 %v89, %v89
    %v92 = vpack.c.bf16 %v90, %v90
    %vm93 = vcmask 257024
    %94 = vst.msk [vmem:[#allocation2] sm:$0xf] %vm93, %v91
    %95 = vst.msk [vmem:[#allocation2 + $0x4] sm:$0xf] %vm93, %v92
  $region25: #{forward.15} parent=0 // pred_fallthru
    _
  %v96 = vld [vmem:[#allocation2] sm:$0xf]
  %v97 = vld [vmem:[#allocation2 + $0x4] sm:$0xf]
  %v98 = vld [vmem:[%s3] sm:$0xf]
  %v99 = vld [vmem:[%s3 + $0x4] sm:$0xf]
  %v100 = vld [vmem:[%s3 + $0x8] sm:$0xf]
  %v101 = vld [vmem:[%s3 + $0xc] sm:$0xf]
  %v102 = vld [vmem:[%s4] sm:$0x1]
  %v104 = vperm.slane %v102, 0
  %v108 = vunpack.c.l.b16 %v96
  %v109 = vunpack.c.l.b16 %v97
  %v110 = vpack.c.b16 %v109, %v108
  %v115 = vunpack.c.l.b16 %v98
  %v116 = vunpack.c.l.b16 %v99
  %v117 = vunpack.c.l.b16 %v100
  %v118 = vunpack.c.l.b16 %v101
  %v119 = vpack.c.b16 %v116, %v115
  %v120 = vpack.c.b16 %v118, %v117
  %vm123 = vcmask 261120
  %v125 = vsel %vm123, %v110, 0
  %127 = vmatpush.bf16.msra.mxu0 0
  %128 = vmatpush.bf16.msra.mxu0 0
  %129 = vmatpush.bf16.msra.mxu0 0
  %130 = vmatpush.bf16.msra.mxu0 0
  %131 = vmatpush.bf16.msra.mxu0 0
  %132 = vmatpush.bf16.msra.mxu0 0
  %133 = vmatpush.bf16.msra.mxu0 %v120
  %134 = vmatpush.bf16.msra.mxu0 %v119
  %135 = vmatmul.bf16.gmra.mxu0 %v125
  %v136 = vpop.f32.mrf.mxu0
  %v137 = vadd.f32 %v104, %v136
  %v138 = vpop.f32.mrf.mxu0
  %v139 = vadd.f32 %v104, %v138
  %140 = vdwg.mxu0
  %v141 = vmul.f32 %v137, 0.5
  %v142 = vmul.f32 %v139, 0.5
  %v143 = vmul.f32 %v137, 0.044715
  %v144 = vmul.f32 %v139, 0.044715
  %v145 = vmul.f32 %v143, %v137
  %v146 = vmul.f32 %v144, %v139
  %v147 = vmul.f32 %v145, %v137
  %v148 = vmul.f32 %v146, %v139
  %v149 = vadd.f32 %v137, %v147
  %v150 = vadd.f32 %v139, %v148
  %v151 = vmul.f32 %v149, 0.7978846
  %v152 = vmul.f32 %v150, 0.7978846
  %v153 = vtanh.pop %v151
  %v154 = vtanh.pop %v152
  %v155 = vadd.f32 %v153, 1.0
  %v156 = vadd.f32 %v154, 1.0
  %v157 = vmul.f32 %v141, %v155
  %v158 = vmul.f32 %v142, %v156
  %v159 = vpack.c.bf16 %v157, %v157
  %v160 = vpack.c.bf16 %v158, %v158
  %161 = vst [vmem:[%s5] sm:$0xf] %v159
  %162 = vst [vmem:[%s5 + $0x4] sm:$0xf] %v160
  // Predicated region
  $region26: #{forward.15} parent=0 // pred_check
    _
  $region27: #{forward.15} parent=0 // pred_check_branch
    %164 = sbr.rel (0) target = $region29
  $region28: #{forward.15} parent=0 // pred_region
    _
  $region29: #{forward.15} parent=0 // pred_fallthru
    _
  // Predicated region
  $region30: #{forward.15} parent=0 // pred_check
    _
  $region31: #{forward.15} parent=0 // pred_check_branch
    %166 = sbr.rel (0) target = $region33
  $region32: #{forward.15} parent=0 // pred_region
    _
  $region33: #{forward.15} parent=0 // pred_fallthru
    _

// kernel: forward.14
$region0: #{forward.14}
  #allocation0 [shape = 'u32[]', space=smem, size = 0x4, offset = 0x4, fixed_abs, tag = 'smem constant byte address 0x4 - core index']
  #allocation1 [shape = 'u32[72,128]{1,0:T(1,128)}', space=vmem, size = 0x9000, scoped, tag = 'internal scratch']
  #allocation2 [shape = 'f32[16,128]{1,0:T(8,128)}', space=vmem, size = 0x2000, scoped, tag = 'scratch operand']
  %s0 = inlined_call_operand.vmem [shape: bf16[16,128], index: 0, kind: input, shape index: {}]
  %s1 = inlined_call_operand.vmem [shape: bf16[128,128], index: 1, kind: input, shape index: {}]
  %s2 = inlined_call_operand.vmem [shape: f32[1,128], index: 2, kind: input, shape index: {}]
  %s3 = inlined_call_operand.vmem [shape: f32[16,128], index: 3, kind: input, shape index: {}]
  %s4 = inlined_call_operand.vmem [shape: f32[16,128], index: 4, kind: output, shape index: {}]
  %s5 = sld [smem:[#allocation0]]
  $region34: #{forward.14} parent=0
    _
  %s7 = ssub.s32 1, %s5
  %s8 = scalar_select 0, %s7, %s5
  // Predicated region
  $region2: #{forward.14} parent=0 // pred_check
    _
  $region3: #{forward.14} parent=0 // pred_check_branch
    %10 = sbr.rel (0) target = $region5
  $region4: #{forward.14} parent=0 // pred_region
    _
  $region5: #{forward.14} parent=0 // pred_fallthru
    _
  // Predicated region
  $region6: #{forward.14} parent=0 // pred_check
    _
  $region7: #{forward.14} parent=0 // pred_check_branch
    %12 = sbr.rel (0) target = $region9
  $region8: #{forward.14} parent=0 // pred_region
    _
  $region9: #{forward.14} parent=0 // pred_fallthru
    _
  // Predicated region
  $region10: #{forward.14} parent=0 // pred_check
    _
  $region11: #{forward.14} parent=0 // pred_check_branch
    %14 = sbr.rel (0) target = $region13
  $region12: #{forward.14} parent=0 // pred_region
    _
  $region13: #{forward.14} parent=0 // pred_fallthru
    _
  // Predicated region
  $region14: #{forward.14} parent=0 // pred_check
    _
  $region15: #{forward.14} parent=0 // pred_check_branch
    %16 = sbr.rel (0) target = $region17
  $region16: #{forward.14} parent=0 // pred_region
    _
  $region17: #{forward.14} parent=0 // pred_fallthru
    _
  %p17 = scmp.eq.s32.totalorder 0, 0
  // Predicated region
  $region18: #{forward.14} parent=0 // pred_check
    %p18 = pneg %p17
  $region19: #{forward.14} parent=0 // pred_check_branch
    %20 = sbr.rel (%p18) target = $region21
  $region20: #{forward.14} parent=0 // pred_region
    %21 = vst [vmem:[#allocation2] sm:$0xff] 0.0
    %22 = vst [vmem:[#allocation2 + $0x8] sm:$0xff] 0.0
  $region21: #{forward.14} parent=0 // pred_fallthru
    _
  %v23 = vld [vmem:[#allocation2] sm:$0xff]
  %v24 = vld [vmem:[#allocation2 + $0x8] sm:$0xff]
  %v25 = vld [vmem:[%s0] sm:$0xf]
  %v26 = vld [vmem:[%s0 + $0x4] sm:$0xf]
  %v27 = vld [vmem:[%s1] sm:$0xf]
  %v28 = vld [vmem:[%s1 + $0x4] sm:$0xf]
  %v29 = vld [vmem:[%s1 + $0x8] sm:$0xf]
  %v30 = vld [vmem:[%s1 + $0xc] sm:$0xf]
  %v31 = vld [vmem:[%s1 + $0x10] sm:$0xf]
  %v32 = vld [vmem:[%s1 + $0x14] sm:$0xf]
  %v33 = vld [vmem:[%s1 + $0x18] sm:$0xf]
  %v34 = vld [vmem:[%s1 + $0x1c] sm:$0xf]
  %v35 = vld [vmem:[%s1 + $0x20] sm:$0xf]
  %v36 = vld [vmem:[%s1 + $0x24] sm:$0xf]
  %v37 = vld [vmem:[%s1 + $0x28] sm:$0xf]
  %v38 = vld [vmem:[%s1 + $0x2c] sm:$0xf]
  %v39 = vld [vmem:[%s1 + $0x30] sm:$0xf]
  %v40 = vld [vmem:[%s1 + $0x34] sm:$0xf]
  %v41 = vld [vmem:[%s1 + $0x38] sm:$0xf]
  %v42 = vld [vmem:[%s1 + $0x3c] sm:$0xf]
  %v45 = vunpack.c.l.b16 %v25
  %v46 = vunpack.c.l.b16 %v26
  %v47 = vpack.c.b16 %v46, %v45
  %v65 = vunpack.c.l.b16 %v27
  %v66 = vunpack.c.l.b16 %v28
  %v67 = vunpack.c.l.b16 %v29
  %v68 = vunpack.c.l.b16 %v30
  %v69 = vunpack.c.l.b16 %v31
  %v70 = vunpack.c.l.b16 %v32
  %v71 = vunpack.c.l.b16 %v33
  %v72 = vunpack.c.l.b16 %v34
  %v73 = vunpack.c.l.b16 %v35
  %v74 = vunpack.c.l.b16 %v36
  %v75 = vunpack.c.l.b16 %v37
  %v76 = vunpack.c.l.b16 %v38
  %v77 = vunpack.c.l.b16 %v39
  %v78 = vunpack.c.l.b16 %v40
  %v79 = vunpack.c.l.b16 %v41
  %v80 = vunpack.c.l.b16 %v42
  %v81 = vpack.c.b16 %v66, %v65
  %v82 = vpack.c.b16 %v68, %v67
  %v83 = vpack.c.b16 %v70, %v69
  %v84 = vpack.c.b16 %v72, %v71
  %v85 = vpack.c.b16 %v74, %v73
  %v86 = vpack.c.b16 %v76, %v75
  %v87 = vpack.c.b16 %v78, %v77
  %v88 = vpack.c.b16 %v80, %v79
  %97 = vmatpush.bf16.msra.mxu0 %v88
  %98 = vmatpush.bf16.msra.mxu0 %v87
  %99 = vmatpush.bf16.msra.mxu0 %v86
  %100 = vmatpush.bf16.msra.mxu0 %v85
  %101 = vmatpush.bf16.msra.mxu0 %v84
  %102 = vmatpush.bf16.msra.mxu0 %v83
  %103 = vmatpush.bf16.msra.mxu0 %v82
  %104 = vmatpush.bf16.msra.mxu0 %v81
  %105 = vmatmul.bf16.gmra.mxu0 %v47
  %v106 = vpop.f32.mrf.mxu0
  %v107 = vadd.f32 0.0, %v106
  %v108 = vpop.f32.mrf.mxu0
  %v109 = vadd.f32 0.0, %v108
  %110 = vdwg.mxu0
  %v111 = vadd.f32 %v23, %v107
  %v112 = vadd.f32 %v24, %v109
  %113 = vst [vmem:[#allocation2] sm:$0xff] %v111
  %114 = vst [vmem:[#allocation2 + $0x8] sm:$0xff] %v112
  // Predicated region
  $region22: #{forward.14} parent=0 // pred_check
    %p115 = pneg %p17
  $region23: #{forward.14} parent=0 // pred_check_branch
    %117 = sbr.rel (%p115) target = $region25
  $region24: #{forward.14} parent=0 // pred_region
    %v118 = vld [vmem:[#allocation2] sm:$0xff]
    %v119 = vld [vmem:[#allocation2 + $0x8] sm:$0xff]
    %v120 = vld [vmem:[%s2] sm:$0x1]
    %v122 = vperm.slane %v120, 0
    %v124 = vadd.f32 %v118, %v122
    %v125 = vadd.f32 %v119, %v122
    %v126 = vld [vmem:[%s3] sm:$0xff]
    %v127 = vld [vmem:[%s3 + $0x8] sm:$0xff]
    %v128 = vadd.f32 %v124, %v126
    %v129 = vadd.f32 %v125, %v127
    %130 = vst [vmem:[%s4] sm:$0xff] %v128
    %131 = vst [vmem:[%s4 + $0x8] sm:$0xff] %v129
  $region25: #{forward.14} parent=0 // pred_fallthru
    _
  // Predicated region
  $region26: #{forward.14} parent=0 // pred_check
    _
  $region27: #{forward.14} parent=0 // pred_check_branch
    %133 = sbr.rel (0) target = $region29
  $region28: #{forward.14} parent=0 // pred_region
    _
  $region29: #{forward.14} parent=0 // pred_fallthru
    _
  // Predicated region
  $region30: #{forward.14} parent=0 // pred_check
    _
  $region31: #{forward.14} parent=0 // pred_check_branch
    %135 = sbr.rel (0) target = $region33
  $region32: #{forward.14} parent=0 // pred_region
    _
  $region33: #{forward.14} parent=0 // pred_fallthru
    _

// kernel: forward.23
$region0: #{forward.23}
  #allocation0 [shape = 'u32[]', space=smem, size = 0x4, offset = 0x4, fixed_abs, tag = 'smem constant byte address 0x4 - core index']
  #allocation1 [shape = 'u32[72,128]{1,0:T(1,128)}', space=vmem, size = 0x9000, scoped, tag = 'internal scratch']
  #allocation2 [shape = 'f32[8,128]{1,0:T(8,128)}', space=vmem, size = 0x1000, scoped, tag = 'scratch operand']
  %s0 = inlined_call_operand.vmem [shape: bf16[8,256], index: 0, kind: input, shape index: {}]
  %s1 = inlined_call_operand.vmem [shape: bf16[256,128], index: 1, kind: input, shape index: {}]
  %s2 = inlined_call_operand.vmem [shape: f32[1,128], index: 2, kind: input, shape index: {}]
  %s3 = inlined_call_operand.vmem [shape: f32[8,128], index: 3, kind: output, shape index: {}]
  %s4 = sld [smem:[#allocation0]]
  $region30: #{forward.23} parent=0
    _
  %s6 = ssub.s32 1, %s4
  %s7 = scalar_select 0, %s6, %s4
  // Predicated region
  $region2: #{forward.23} parent=0 // pred_check
    _
  $region3: #{forward.23} parent=0 // pred_check_branch
    %9 = sbr.rel (0) target = $region5
  $region4: #{forward.23} parent=0 // pred_region
    _
  $region5: #{forward.23} parent=0 // pred_fallthru
    _
  // Predicated region
  $region6: #{forward.23} parent=0 // pred_check
    _
  $region7: #{forward.23} parent=0 // pred_check_branch
    %11 = sbr.rel (0) target = $region9
  $region8: #{forward.23} parent=0 // pred_region
    _
  $region9: #{forward.23} parent=0 // pred_fallthru
    _
  // Predicated region
  $region10: #{forward.23} parent=0 // pred_check
    _
  $region11: #{forward.23} parent=0 // pred_check_branch
    %13 = sbr.rel (0) target = $region13
  $region12: #{forward.23} parent=0 // pred_region
    _
  $region13: #{forward.23} parent=0 // pred_fallthru
    _
  %p14 = scmp.eq.s32.totalorder 0, 0
  // Predicated region
  $region14: #{forward.23} parent=0 // pred_check
    %p15 = pneg %p14
  $region15: #{forward.23} parent=0 // pred_check_branch
    %17 = sbr.rel (%p15) target = $region17
  $region16: #{forward.23} parent=0 // pred_region
    %18 = vst [vmem:[#allocation2] sm:$0xff] 0.0
  $region17: #{forward.23} parent=0 // pred_fallthru
    _
  %v19 = vld [vmem:[#allocation2] sm:$0xff]
  %v20 = vld [vmem:[%s0] sm:$0xff]
  %v21 = vld [vmem:[%s1] sm:$0xf]
  %v22 = vld [vmem:[%s1 + $0x4] sm:$0xf]
  %v23 = vld [vmem:[%s1 + $0x8] sm:$0xf]
  %v24 = vld [vmem:[%s1 + $0xc] sm:$0xf]
  %v25 = vld [vmem:[%s1 + $0x10] sm:$0xf]
  %v26 = vld [vmem:[%s1 + $0x14] sm:$0xf]
  %v27 = vld [vmem:[%s1 + $0x18] sm:$0xf]
  %v28 = vld [vmem:[%s1 + $0x1c] sm:$0xf]
  %v29 = vld [vmem:[%s1 + $0x20] sm:$0xf]
  %v30 = vld [vmem:[%s1 + $0x24] sm:$0xf]
  %v31 = vld [vmem:[%s1 + $0x28] sm:$0xf]
  %v32 = vld [vmem:[%s1 + $0x2c] sm:$0xf]
  %v33 = vld [vmem:[%s1 + $0x30] sm:$0xf]
  %v34 = vld [vmem:[%s1 + $0x34] sm:$0xf]
  %v35 = vld [vmem:[%s1 + $0x38] sm:$0xf]
  %v36 = vld [vmem:[%s1 + $0x3c] sm:$0xf]
  %v37 = vld [vmem:[%s1 + $0x40] sm:$0xf]
  %v38 = vld [vmem:[%s1 + $0x44] sm:$0xf]
  %v39 = vld [vmem:[%s1 + $0x48] sm:$0xf]
  %v40 = vld [vmem:[%s1 + $0x4c] sm:$0xf]
  %v41 = vld [vmem:[%s1 + $0x50] sm:$0xf]
  %v42 = vld [vmem:[%s1 + $0x54] sm:$0xf]
  %v43 = vld [vmem:[%s1 + $0x58] sm:$0xf]
  %v44 = vld [vmem:[%s1 + $0x5c] sm:$0xf]
  %v45 = vld [vmem:[%s1 + $0x60] sm:$0xf]
  %v46 = vld [vmem:[%s1 + $0x64] sm:$0xf]
  %v47 = vld [vmem:[%s1 + $0x68] sm:$0xf]
  %v48 = vld [vmem:[%s1 + $0x6c] sm:$0xf]
  %v49 = vld [vmem:[%s1 + $0x70] sm:$0xf]
  %v50 = vld [vmem:[%s1 + $0x74] sm:$0xf]
  %v51 = vld [vmem:[%s1 + $0x78] sm:$0xf]
  %v52 = vld [vmem:[%s1 + $0x7c] sm:$0xf]
  %v54 = vunpack.c.l.b16 %v20
  %v55 = vunpack.c.h.b16 %v20
  %v56 = vpack.c.b16 %v54, %v54
  %v57 = vpack.c.b16 %v55, %v55
  %v92 = vunpack.c.l.b16 %v21
  %v93 = vunpack.c.l.b16 %v22
  %v94 = vunpack.c.l.b16 %v23
  %v95 = vunpack.c.l.b16 %v24
  %v96 = vunpack.c.l.b16 %v25
  %v97 = vunpack.c.l.b16 %v26
  %v98 = vunpack.c.l.b16 %v27
  %v99 = vunpack.c.l.b16 %v28
  %v100 = vunpack.c.l.b16 %v29
  %v101 = vunpack.c.l.b16 %v30
  %v102 = vunpack.c.l.b16 %v31
  %v103 = vunpack.c.l.b16 %v32
  %v104 = vunpack.c.l.b16 %v33
  %v105 = vunpack.c.l.b16 %v34
  %v106 = vunpack.c.l.b16 %v35
  %v107 = vunpack.c.l.b16 %v36
  %v108 = vunpack.c.l.b16 %v37
  %v109 = vunpack.c.l.b16 %v38
  %v110 = vunpack.c.l.b16 %v39
  %v111 = vunpack.c.l.b16 %v40
  %v112 = vunpack.c.l.b16 %v41
  %v113 = vunpack.c.l.b16 %v42
  %v114 = vunpack.c.l.b16 %v43
  %v115 = vunpack.c.l.b16 %v44
  %v116 = vunpack.c.l.b16 %v45
  %v117 = vunpack.c.l.b16 %v46
  %v118 = vunpack.c.l.b16 %v47
  %v119 = vunpack.c.l.b16 %v48
  %v120 = vunpack.c.l.b16 %v49
  %v121 = vunpack.c.l.b16 %v50
  %v122 = vunpack.c.l.b16 %v51
  %v123 = vunpack.c.l.b16 %v52
  %v124 = vpack.c.b16 %v93, %v92
  %v125 = vpack.c.b16 %v95, %v94
  %v126 = vpack.c.b16 %v97, %v96
  %v127 = vpack.c.b16 %v99, %v98
  %v128 = vpack.c.b16 %v101, %v100
  %v129 = vpack.c.b16 %v103, %v102
  %v130 = vpack.c.b16 %v105, %v104
  %v131 = vpack.c.b16 %v107, %v106
  %v132 = vpack.c.b16 %v109, %v108
  %v133 = vpack.c.b16 %v111, %v110
  %v134 = vpack.c.b16 %v113, %v112
  %v135 = vpack.c.b16 %v115, %v114
  %v136 = vpack.c.b16 %v117, %v116
  %v137 = vpack.c.b16 %v119, %v118
  %v138 = vpack.c.b16 %v121, %v120
  %v139 = vpack.c.b16 %v123, %v122
  %156 = vmatpush.bf16.msra.mxu0 %v131
  %157 = vmatpush.bf16.msra.mxu0 %v130
  %158 = vmatpush.bf16.msra.mxu0 %v129
  %159 = vmatpush.bf16.msra.mxu0 %v128
  %160 = vmatpush.bf16.msra.mxu0 %v127
  %161 = vmatpush.bf16.msra.mxu0 %v126
  %162 = vmatpush.bf16.msra.mxu0 %v125
  %163 = vmatpush.bf16.msra.mxu0 %v124
  %164 = vmatmul.bf16.gmra.mxu0 %v56
  %v165 = vpop.f32.mrf.mxu0
  %v166 = vadd.f32 0.0, %v165
  %v167 = vpop.f32.mrf.mxu0
  %168 = vdwg.mxu0
  %169 = vmatpush.bf16.msra.mxu0 %v139
  %170 = vmatpush.bf16.msra.mxu0 %v138
  %171 = vmatpush.bf16.msra.mxu0 %v137
  %172 = vmatpush.bf16.msra.mxu0 %v136
  %173 = vmatpush.bf16.msra.mxu0 %v135
  %174 = vmatpush.bf16.msra.mxu0 %v134
  %175 = vmatpush.bf16.msra.mxu0 %v133
  %176 = vmatpush.bf16.msra.mxu0 %v132
  %177 = vmatmul.bf16.gmra.mxu0 %v57
  %v178 = vpop.f32.mrf.mxu0
  %v179 = vadd.f32 %v166, %v178
  %v180 = vpop.f32.mrf.mxu0
  %181 = vdwg.mxu0
  %v182 = vadd.f32 %v19, %v179
  %183 = vst [vmem:[#allocation2] sm:$0xff] %v182
  // Predicated region
  $region18: #{forward.23} parent=0 // pred_check
    %p184 = pneg %p14
  $region19: #{forward.23} parent=0 // pred_check_branch
    %186 = sbr.rel (%p184) target = $region21
  $region20: #{forward.23} parent=0 // pred_region
    %v187 = vld [vmem:[#allocation2] sm:$0xff]
    %v188 = vld [vmem:[%s2] sm:$0x1]
    %v190 = vperm.slane %v188, 0
    %v192 = vadd.f32 %v187, %v190
    %193 = vst [vmem:[%s3] sm:$0xff] %v192
  $region21: #{forward.23} parent=0 // pred_fallthru
    _
  // Predicated region
  $region22: #{forward.23} parent=0 // pred_check
    _
  $region23: #{forward.23} parent=0 // pred_check_branch
    %195 = sbr.rel (0) target = $region25
  $region24: #{forward.23} parent=0 // pred_region
    _
  $region25: #{forward.23} parent=0 // pred_fallthru
    _
  // Predicated region
  $region26: #{forward.23} parent=0 // pred_check
    _
  $region27: #{forward.23} parent=0 // pred_check_branch
    %197 = sbr.rel (0) target = $region29
  $region28: #{forward.23} parent=0 // pred_region
    _
  $region29: #{forward.23} parent=0 // pred_fallthru
    _

// kernel: forward.13
$region0: #{forward.13}
  #allocation0 [shape = 'u32[]', space=smem, size = 0x4, offset = 0x4, fixed_abs, tag = 'smem constant byte address 0x4 - core index']
  #allocation1 [shape = 'u32[72,128]{1,0:T(1,128)}', space=vmem, size = 0x9000, scoped, tag = 'internal scratch']
  %s0 = inlined_call_operand.vmem [shape: bf16[2,2,3,8,16], index: 0, kind: input, shape index: {}]
  %s1 = inlined_call_operand.vmem [shape: bf16[256,16], index: 1, kind: input, shape index: {}]
  %s2 = inlined_call_operand.vmem [shape: f32[1,16], index: 2, kind: input, shape index: {}]
  %s3 = inlined_call_operand.vmem [shape: f32[1,16], index: 3, kind: input, shape index: {}]
  %s4 = inlined_call_operand.vmem [shape: f32[1,16], index: 4, kind: input, shape index: {}]
  %s5 = inlined_call_operand.vmem [shape: f32[1,16], index: 5, kind: input, shape index: {}]
  %s6 = inlined_call_operand.vmem [shape: bf16[2,2,8,16], index: 6, kind: output, shape index: {}]
  %s7 = sld [smem:[#allocation0]]
  $region57: #{forward.13} parent=0
    _
  %s9 = ssub.s32 1, %s7
  %s10 = scalar_select 0, %s9, %s7
  loop: start=0, step=1, limit=6
  $region2: #{forward.13} parent=0 // loop_pre_header
    _
  $region3: #{forward.13} parent=0 // loop_header
    %s12 = sphi 0, %s16
    %p13 = scmp.ge.s32.totalorder %s12, 6
    %s19 = sphi 0, %s31
    %s20 = sphi 0, %s27
    %s21 = sphi 0, %s19
    %s22 = sphi 0, %s20
    %s23 = sphi 0, %s21
    %s24 = sphi 0, %s22
    %s36 = sphi 0, %s38
    %s39 = sphi 0, %s36
    %s40 = sphi 0, %s39
    %s56 = sphi 0, %s40
    %s60 = sphi 0, %s60
    %s62 = sphi 0, %s60
    %s63 = sphi 0, %s62
    %s77 = sphi 0, %s63
    %s81 = sphi 0, %s81
    %s83 = sphi 0, %s81
    %s84 = sphi 0, %s83
    %s98 = sphi 0, %s84
    %s102 = sphi 0, %s102
    %s104 = sphi 0, %s102
    %s105 = sphi 0, %s104
    %s119 = sphi 0, %s105
    %s123 = sphi 0, %s123
    %s125 = sphi 0, %s123
    %s126 = sphi 0, %s125
    %s140 = sphi 0, %s126
    %s144 = sphi 0, %s144
    %s146 = sphi 0, %s144
    %s147 = sphi 0, %s146
    %s161 = sphi 0, %s147
    %s169 = sphi 0, %s171
    %s172 = sphi 0, %s169
    %s173 = sphi 0, %s172
    %s189 = sphi 0, %s173
  $region4: #{forward.13} parent=0 // loop_header_branch
    %15 = sbr.rel (%p13) target = $region8
  $region5: #{forward.13} parent=0 // loop_body
    %s17 = ssub.s32 %s12, 1
    %s18 = ssub.s32 %s12, 2
    %s25 = sadd.s32 1, %s20
    %p26 = scmp.ge.s32.totalorder %s25, 2
    %s27 = scalar_select %p26, 0, %s25
    %s28 = sadd.s32 1, %s19
    %s29 = scalar_select %p26, %s28, %s19
    %p30 = scmp.ge.s32.totalorder %s29, 2
    %s31 = scalar_select %p30, 0, %s29
    %s32 = ssub.s32 %s19, %s31
    %s33 = ssub.s32 %s20, %s27
    %s34 = sor.u32 %s32, %s33
    %p35 = scmp.eq.s32.totalorder %s34, 0
    %s37 = sadd.s32 %s36, 1
    %s38 = scalar_select %p35, %s36, %s37
    %p41 = pneg %p35
    %p42 = scmp.eq.s32.totalorder %s12, 3
    %p43 = por %p41, %p42
    %p44 = scmp.ne.s32.totalorder %s36, %s39
    %p45 = scmp.eq.s32.totalorder %s12, 0
    %p46 = por %p44, %p45
    %p47 = scmp.ne.s32.totalorder %s36, %s39
    %p48 = scmp.eq.s32.totalorder %s17, 3
    %p49 = por %p47, %p48
    %p50 = scmp.ne.s32.totalorder %s39, %s40
    %p51 = scmp.eq.s32.totalorder %s17, 0
    %p52 = por %p50, %p51
    %p53 = scmp.ne.s32.totalorder %s39, %s40
    %p54 = scmp.eq.s32.totalorder %s18, 3
    %p55 = por %p53, %p54
    %p57 = scmp.ne.s32.totalorder %s40, %s56
    %p58 = scmp.eq.s32.totalorder %s18, 0
    %p59 = por %p57, %p58
    %s61 = sadd.s32 %s60, 1
    %p64 = scmp.eq.s32.totalorder %s12, 3
    %p65 = scmp.ne.s32.totalorder %s60, %s62
    %p66 = scmp.eq.s32.totalorder %s12, 0
    %p67 = por %p65, %p66
    %p68 = scmp.ne.s32.totalorder %s60, %s62
    %p69 = scmp.eq.s32.totalorder %s17, 3
    %p70 = por %p68, %p69
    %p71 = scmp.ne.s32.totalorder %s62, %s63
    %p72 = scmp.eq.s32.totalorder %s17, 0
    %p73 = por %p71, %p72
    %p74 = scmp.ne.s32.totalorder %s62, %s63
    %p75 = scmp.eq.s32.totalorder %s18, 3
    %p76 = por %p74, %p75
    %p78 = scmp.ne.s32.totalorder %s63, %s77
    %p79 = scmp.eq.s32.totalorder %s18, 0
    %p80 = por %p78, %p79
    %s82 = sadd.s32 %s81, 1
    %p85 = scmp.eq.s32.totalorder %s12, 3
    %p86 = scmp.ne.s32.totalorder %s81, %s83
    %p87 = scmp.eq.s32.totalorder %s12, 0
    %p88 = por %p86, %p87
    %p89 = scmp.ne.s32.totalorder %s81, %s83
    %p90 = scmp.eq.s32.totalorder %s17, 3
    %p91 = por %p89, %p90
    %p92 = scmp.ne.s32.totalorder %s83, %s84
    %p93 = scmp.eq.s32.totalorder %s17, 0
    %p94 = por %p92, %p93
    %p95 = scmp.ne.s32.totalorder %s83, %s84
    %p96 = scmp.eq.s32.totalorder %s18, 3
    %p97 = por %p95, %p96
    %p99 = scmp.ne.s32.totalorder %s84, %s98
    %p100 = scmp.eq.s32.totalorder %s18, 0
    %p101 = por %p99, %p100
    %s103 = sadd.s32 %s102, 1
    %p106 = scmp.eq.s32.totalorder %s12, 3
    %p107 = scmp.ne.s32.totalorder %s102, %s104
    %p108 = scmp.eq.s32.totalorder %s12, 0
    %p109 = por %p107, %p108
    %p110 = scmp.ne.s32.totalorder %s102, %s104
    %p111 = scmp.eq.s32.totalorder %s17, 3
    %p112 = por %p110, %p111
    %p113 = scmp.ne.s32.totalorder %s104, %s105
    %p114 = scmp.eq.s32.totalorder %s17, 0
    %p115 = por %p113, %p114
    %p116 = scmp.ne.s32.totalorder %s104, %s105
    %p117 = scmp.eq.s32.totalorder %s18, 3
    %p118 = por %p116, %p117
    %p120 = scmp.ne.s32.totalorder %s105, %s119
    %p121 = scmp.eq.s32.totalorder %s18, 0
    %p122 = por %p120, %p121
    %s124 = sadd.s32 %s123, 1
    %p127 = scmp.eq.s32.totalorder %s12, 3
    %p128 = scmp.ne.s32.totalorder %s123, %s125
    %p129 = scmp.eq.s32.totalorder %s12, 0
    %p130 = por %p128, %p129
    %p131 = scmp.ne.s32.totalorder %s123, %s125
    %p132 = scmp.eq.s32.totalorder %s17, 3
    %p133 = por %p131, %p132
    %p134 = scmp.ne.s32.totalorder %s125, %s126
    %p135 = scmp.eq.s32.totalorder %s17, 0
    %p136 = por %p134, %p135
    %p137 = scmp.ne.s32.totalorder %s125, %s126
    %p138 = scmp.eq.s32.totalorder %s18, 3
    %p139 = por %p137, %p138
    %p141 = scmp.ne.s32.totalorder %s126, %s140
    %p142 = scmp.eq.s32.totalorder %s18, 0
    %p143 = por %p141, %p142
    %s145 = sadd.s32 %s144, 1
    %p148 = scmp.eq.s32.totalorder %s12, 3
    %p149 = scmp.ne.s32.totalorder %s144, %s146
    %p150 = scmp.eq.s32.totalorder %s12, 0
    %p151 = por %p149, %p150
    %p152 = scmp.ne.s32.totalorder %s144, %s146
    %p153 = scmp.eq.s32.totalorder %s17, 3
    %p154 = por %p152, %p153
    %p155 = scmp.ne.s32.totalorder %s146, %s147
    %p156 = scmp.eq.s32.totalorder %s17, 0
    %p157 = por %p155, %p156
    %p158 = scmp.ne.s32.totalorder %s146, %s147
    %p159 = scmp.eq.s32.totalorder %s18, 3
    %p160 = por %p158, %p159
    %p162 = scmp.ne.s32.totalorder %s147, %s161
    %p163 = scmp.eq.s32.totalorder %s18, 0
    %p164 = por %p162, %p163
    %s165 = ssub.s32 %s19, %s31
    %s166 = ssub.s32 %s20, %s27
    %s167 = sor.u32 %s165, %s166
    %p168 = scmp.eq.s32.totalorder %s167, 0
    %s170 = sadd.s32 %s169, 1
    %s171 = scalar_select %p168, %s169, %s170
    %p174 = pneg %p168
    %p175 = scmp.eq.s32.totalorder %s12, 3
    %p176 = por %p174, %p175
    %p177 = scmp.ne.s32.totalorder %s169, %s172
    %p178 = scmp.eq.s32.totalorder %s12, 0
    %p179 = por %p177, %p178
    %p180 = scmp.ne.s32.totalorder %s169, %s172
    %p181 = scmp.eq.s32.totalorder %s17, 3
    %p182 = por %p180, %p181
    %p183 = scmp.ne.s32.totalorder %s172, %s173
    %p184 = scmp.eq.s32.totalorder %s17, 0
    %p185 = por %p183, %p184
    %p186 = scmp.ne.s32.totalorder %s172, %s173
    %p187 = scmp.eq.s32.totalorder %s18, 3
    %p188 = por %p186, %p187
    %p190 = scmp.ne.s32.totalorder %s173, %s189
    %p191 = scmp.eq.s32.totalorder %s18, 0
    %p192 = por %p190, %p191
    %p193 = scmp.le.s32.totalorder 1, %s12
    %p194 = scmp.lt.s32.totalorder %s12, 5
    %p195 = pnand %p193, %p194
    %p196 = pneg %p195
    // Predicated region
    $region9: #{forward.13} parent=5 // pred_check
      _
    $region10: #{forward.13} parent=5 // pred_check_branch
      %198 = sbr.rel (%p195) target = $region12
    $region11: #{forward.13} parent=5 // pred_region
      %s199 = ssub.s32 %s12, 1
      // Predicated region
      $region13: #{forward.13} parent=11 // pred_check
        %p200 = pneg %p73
      $region14: #{forward.13} parent=11 // pred_check_branch
        %202 = sbr.rel (%p200) target = $region16
      $region15: #{forward.13} parent=11 // pred_region
        _
      $region16: #{forward.13} parent=11 // pred_fallthru
        _
      // Predicated region
      $region17: #{forward.13} parent=11 // pred_check
        %p203 = pneg %p94
      $region18: #{forward.13} parent=11 // pred_check_branch
        %205 = sbr.rel (%p203) target = $region20
      $region19: #{forward.13} parent=11 // pred_region
        _
      $region20: #{forward.13} parent=11 // pred_fallthru
        _
      // Predicated region
      $region21: #{forward.13} parent=11 // pred_check
        %p206 = pneg %p115
      $region22: #{forward.13} parent=11 // pred_check_branch
        %208 = sbr.rel (%p206) target = $region24
      $region23: #{forward.13} parent=11 // pred_region
        _
      $region24: #{forward.13} parent=11 // pred_fallthru
        _
      // Predicated region
      $region25: #{forward.13} parent=11 // pred_check
        %p209 = pneg %p136
      $region26: #{forward.13} parent=11 // pred_check_branch
        %211 = sbr.rel (%p209) target = $region28
      $region27: #{forward.13} parent=11 // pred_region
        _
      $region28: #{forward.13} parent=11 // pred_fallthru
        _
      // Predicated region
      $region29: #{forward.13} parent=11 // pred_check
        %p212 = pneg %p157
      $region30: #{forward.13} parent=11 // pred_check_branch
        %214 = sbr.rel (%p212) target = $region32
      $region31: #{forward.13} parent=11 // pred_region
        _
      $region32: #{forward.13} parent=11 // pred_fallthru
        _
    $region12: #{forward.13} parent=5 // pred_fallthru
      _
    %p215 = scmp.lt.s32.totalorder %s12, 4
    // Predicated region
    $region33: #{forward.13} parent=5 // pred_check
      %p216 = pneg %p215
    $region34: #{forward.13} parent=5 // pred_check_branch
      %218 = sbr.rel (%p216) target = $region36
    $region35: #{forward.13} parent=5 // pred_region
      // Predicated region
      $region37: #{forward.13} parent=35 // pred_check
        %p219 = pneg %p46
      $region38: #{forward.13} parent=35 // pred_check_branch
        %221 = sbr.rel (%p219) target = $region40
      $region39: #{forward.13} parent=35 // pred_region
        %p222 = scmp.lt.s32.totalorder %s19, 1
        %s223 = scalar_select %p222, %s19, 1
        %p224 = scmp.lt.s32.totalorder %s20, 1
        %s225 = scalar_select %p224, %s20, 1
        %s226 = smul.addr %s225, 3
        %s227 = smul.addr %s223, 6
        %s228 = sadd.s32 %s226, %s227
        %s229 = smul.addr %s228, 4
        %s230 = scalar_lea.vmem %s0, %s229
      $region40: #{forward.13} parent=35 // pred_fallthru
        _
    $region36: #{forward.13} parent=5 // pred_fallthru
      _
    %p231 = scmp.le.s32.totalorder 1, %s12
    %p232 = scmp.lt.s32.totalorder %s12, 5
    %p233 = pnand %p231, %p232
    %p234 = pneg %p233
    // Predicated region
    $region41: #{forward.13} parent=5 // pred_check
      _
    $region42: #{forward.13} parent=5 // pred_check_branch
      %236 = sbr.rel (%p233) target = $region44
    $region43: #{forward.13} parent=5 // pred_region
      %s237 = ssub.s32 %s12, 1
      %p238 = scmp.lt.s32.totalorder %s21, 1
      %s239 = scalar_select %p238, %s21, 1
      %p240 = scmp.lt.s32.totalorder %s22, 1
      %s241 = scalar_select %p240, %s22, 1
      %s242 = smul.addr %s241, 3
      %s243 = smul.addr %s239, 6
      %s244 = sadd.s32 %s242, %s243
      %s245 = smul.addr %s244, 4
      %s246 = scalar_lea.vmem %s0, %s245
      %p247 = pneg %p52
      %p248 = pneg %p49
      %p249 = pneg %p73
      %p250 = pneg %p70
      %p251 = pneg %p94
      %p252 = pneg %p91
      %p253 = pneg %p115
      %p254 = pneg %p112
      %p255 = pneg %p136
      %p256 = pneg %p133
      %p257 = pneg %p157
      %p258 = pneg %p154
      %p259 = pneg %p185
      %p260 = pneg %p182
      %p261 = scmp.lt.s32.totalorder %s21, 1
      %s262 = scalar_select %p261, %s21, 1
      %p263 = scmp.lt.s32.totalorder %s22, 1
      %s264 = scalar_select %p263, %s22, 1
      %s265 = smul.addr %s262, 2
      %s266 = sadd.s32 %s264, %s265
      %s267 = smul.addr %s266, 4
      %s268 = scalar_lea.vmem %s6, %s267
      %p269 = scmp.lt.s32.totalorder %s21, 1
      %s270 = scalar_select %p269, %s21, 1
      %p271 = scmp.lt.s32.totalorder %s22, 1
      %s272 = scalar_select %p271, %s22, 1
      %s273 = smul.addr %s272, 3
      %s274 = smul.addr %s270, 6
      %s275 = sadd.s32 %s273, %s274
      %s276 = smul.addr %s275, 4
      %s277 = scalar_lea.vmem %s0, %s276
      %p278 = scmp.lt.s32.totalorder %s21, 1
      %s279 = scalar_select %p278, %s21, 1
      %p280 = scmp.lt.s32.totalorder %s22, 1
      %s281 = scalar_select %p280, %s22, 1
      %s282 = smul.addr %s279, 2
      %s283 = sadd.s32 %s281, %s282
      %s284 = smul.addr %s283, 4
      %s285 = scalar_lea.vmem %s6, %s284
      %v287 = vld [vmem:[%s277] sm:$0xf]
      %s288 = scalar_lea.vmem %s277, 4
      %v289 = vld [vmem:[%s288] sm:$0xf]
      %s290 = scalar_lea.vmem %s277, 8
      %v291 = vld [vmem:[%s290] sm:$0xf]
      %v292 = vld [vmem:[%s2] sm:$0x1]
      %v293 = vld [vmem:[%s3] sm:$0x1]
      %v294 = vld [vmem:[%s4] sm:$0x1]
      %v295 = vld [vmem:[%s5] sm:$0x1]
      %v296 = vld [vmem:[%s1] sm:$0xf]
      %v297 = vld [vmem:[%s1 + $0x4] sm:$0xf]
      %v298 = vld [vmem:[%s1 + $0x8] sm:$0xf]
      %v299 = vld [vmem:[%s1 + $0xc] sm:$0xf]
      %v300 = vld [vmem:[%s1 + $0x10] sm:$0xf]
      %v301 = vld [vmem:[%s1 + $0x14] sm:$0xf]
      %v302 = vld [vmem:[%s1 + $0x18] sm:$0xf]
      %v303 = vld [vmem:[%s1 + $0x1c] sm:$0xf]
      %v304 = vld [vmem:[%s1 + $0x20] sm:$0xf]
      %v305 = vld [vmem:[%s1 + $0x24] sm:$0xf]
      %v306 = vld [vmem:[%s1 + $0x28] sm:$0xf]
      %v307 = vld [vmem:[%s1 + $0x2c] sm:$0xf]
      %v308 = vld [vmem:[%s1 + $0x30] sm:$0xf]
      %v309 = vld [vmem:[%s1 + $0x34] sm:$0xf]
      %v310 = vld [vmem:[%s1 + $0x38] sm:$0xf]
      %v311 = vld [vmem:[%s1 + $0x3c] sm:$0xf]
      %v312 = vld [vmem:[%s1 + $0x40] sm:$0xf]
      %v313 = vld [vmem:[%s1 + $0x44] sm:$0xf]
      %v314 = vld [vmem:[%s1 + $0x48] sm:$0xf]
      %v315 = vld [vmem:[%s1 + $0x4c] sm:$0xf]
      %v316 = vld [vmem:[%s1 + $0x50] sm:$0xf]
      %v317 = vld [vmem:[%s1 + $0x54] sm:$0xf]
      %v318 = vld [vmem:[%s1 + $0x58] sm:$0xf]
      %v319 = vld [vmem:[%s1 + $0x5c] sm:$0xf]
      %v320 = vld [vmem:[%s1 + $0x60] sm:$0xf]
      %v321 = vld [vmem:[%s1 + $0x64] sm:$0xf]
      %v322 = vld [vmem:[%s1 + $0x68] sm:$0xf]
      %v323 = vld [vmem:[%s1 + $0x6c] sm:$0xf]
      %v324 = vld [vmem:[%s1 + $0x70] sm:$0xf]
      %v325 = vld [vmem:[%s1 + $0x74] sm:$0xf]
      %v326 = vld [vmem:[%s1 + $0x78] sm:$0xf]
      %v327 = vld [vmem:[%s1 + $0x7c] sm:$0xf]
      %v360 = vunpack.c.l.b16 %v296
      %v361 = vunpack.c.l.b16 %v297
      %v362 = vunpack.c.l.b16 %v298
      %v363 = vunpack.c.l.b16 %v299
      %v364 = vunpack.c.l.b16 %v300
      %v365 = vunpack.c.l.b16 %v301
      %v366 = vunpack.c.l.b16 %v302
      %v367 = vunpack.c.l.b16 %v303
      %v368 = vunpack.c.l.b16 %v304
      %v369 = vunpack.c.l.b16 %v305
      %v370 = vunpack.c.l.b16 %v306
      %v371 = vunpack.c.l.b16 %v307
      %v372 = vunpack.c.l.b16 %v308
      %v373 = vunpack.c.l.b16 %v309
      %v374 = vunpack.c.l.b16 %v310
      %v375 = vunpack.c.l.b16 %v311
      %v376 = vunpack.c.l.b16 %v312
      %v377 = vunpack.c.l.b16 %v313
      %v378 = vunpack.c.l.b16 %v314
      %v379 = vunpack.c.l.b16 %v315
      %v380 = vunpack.c.l.b16 %v316
      %v381 = vunpack.c.l.b16 %v317
      %v382 = vunpack.c.l.b16 %v318
      %v383 = vunpack.c.l.b16 %v319
      %v384 = vunpack.c.l.b16 %v320
      %v385 = vunpack.c.l.b16 %v321
      %v386 = vunpack.c.l.b16 %v322
      %v387 = vunpack.c.l.b16 %v323
      %v388 = vunpack.c.l.b16 %v324
      %v389 = vunpack.c.l.b16 %v325
      %v390 = vunpack.c.l.b16 %v326
      %v391 = vunpack.c.l.b16 %v327
      %v392 = vpack.c.b16 %v361, %v360
      %v393 = vpack.c.b16 %v363, %v362
      %v394 = vpack.c.b16 %v365, %v364
      %v395 = vpack.c.b16 %v367, %v366
      %v396 = vpack.c.b16 %v369, %v368
      %v397 = vpack.c.b16 %v371, %v370
      %v398 = vpack.c.b16 %v373, %v372
      %v399 = vpack.c.b16 %v375, %v374
      %v400 = vpack.c.b16 %v377, %v376
      %v401 = vpack.c.b16 %v379, %v378
      %v402 = vpack.c.b16 %v381, %v380
      %v403 = vpack.c.b16 %v383, %v382
      %v404 = vpack.c.b16 %v385, %v384
      %v405 = vpack.c.b16 %v387, %v386
      %v406 = vpack.c.b16 %v389, %v388
      %v407 = vpack.c.b16 %v391, %v390
      %vm408 = vcmask 130048
      %v410 = vsel %vm408, %v392, 0
      %v413 = vsel %vm408, %v393, 0
      %v416 = vsel %vm408, %v394, 0
      %v419 = vsel %vm408, %v395, 0
      %v422 = vsel %vm408, %v396, 0
      %v425 = vsel %vm408, %v397, 0
      %v428 = vsel %vm408, %v398, 0
      %v431 = vsel %vm408, %v399, 0
      %v434 = vsel %vm408, %v400, 0
      %v437 = vsel %vm408, %v401, 0
      %v440 = vsel %vm408, %v402, 0
      %v443 = vsel %vm408, %v403, 0
      %v446 = vsel %vm408, %v404, 0
      %v449 = vsel %vm408, %v405, 0
      %v452 = vsel %vm408, %v406, 0
      %v455 = vsel %vm408, %v407, 0
      %v458 = vsel %vm408, %v289, 0
      %460 = vmatpush.bf16.xpose.msra.mxu0 0
      %461 = vmatpush.bf16.xpose.msra.mxu0 0
      %462 = vmatpush.bf16.xpose.msra.mxu0 0
      %463 = vmatpush.bf16.xpose.msra.mxu0 0
      %464 = vmatpush.bf16.xpose.msra.mxu0 0
      %465 = vmatpush.bf16.xpose.msra.mxu0 0
      %466 = vmatpush.bf16.xpose.msra.mxu0 0
      %467 = vmatpush.bf16.xpose.msra.mxu0 %v458
      %468 = vmatmul.bf16.gmra.mxu0 %v410
      %v469 = vpop.f32.mrf.mxu0
      %v470 = vadd.f32 0.0, %v469
      %v471 = vpop.f32.mrf.mxu0
      %v472 = vadd.f32 0.0, %v471
      %473 = vmatmul.bf16.gmra.mxu0 %v413
      %v474 = vpop.f32.mrf.mxu0
      %v475 = vadd.f32 0.0, %v474
      %v476 = vpop.f32.mrf.mxu0
      %v477 = vadd.f32 0.0, %v476
      %478 = vmatmul.bf16.gmra.mxu0 %v416
      %v479 = vpop.f32.mrf.mxu0
      %v480 = vadd.f32 0.0, %v479
      %v481 = vpop.f32.mrf.mxu0
      %v482 = vadd.f32 0.0, %v481
      %483 = vmatmul.bf16.gmra.mxu0 %v419
      %v484 = vpop.f32.mrf.mxu0
      %v485 = vadd.f32 0.0, %v484
      %v486 = vpop.f32.mrf.mxu0
      %v487 = vadd.f32 0.0, %v486
      %488 = vmatmul.bf16.gmra.mxu0 %v422
      %v489 = vpop.f32.mrf.mxu0
      %v490 = vadd.f32 0.0, %v489
      %v491 = vpop.f32.mrf.mxu0
      %v492 = vadd.f32 0.0, %v491
      %493 = vmatmul.bf16.gmra.mxu0 %v425
      %v494 = vpop.f32.mrf.mxu0
      %v495 = vadd.f32 0.0, %v494
      %v496 = vpop.f32.mrf.mxu0
      %v497 = vadd.f32 0.0, %v496
      %498 = vmatmul.bf16.gmra.mxu0 %v428
      %v499 = vpop.f32.mrf.mxu0
      %v500 = vadd.f32 0.0, %v499
      %v501 = vpop.f32.mrf.mxu0
      %v502 = vadd.f32 0.0, %v501
      %503 = vmatmul.bf16.gmra.mxu0 %v431
      %v504 = vpop.f32.mrf.mxu0
      %v505 = vadd.f32 0.0, %v504
      %v506 = vpop.f32.mrf.mxu0
      %v507 = vadd.f32 0.0, %v506
      %508 = vmatmul.bf16.gmra.mxu0 %v434
      %v509 = vpop.f32.mrf.mxu0
      %v510 = vadd.f32 0.0, %v509
      %v511 = vpop.f32.mrf.mxu0
      %v512 = vadd.f32 0.0, %v511
      %513 = vmatmul.bf16.gmra.mxu0 %v437
      %v514 = vpop.f32.mrf.mxu0
      %v515 = vadd.f32 0.0, %v514
      %v516 = vpop.f32.mrf.mxu0
      %v517 = vadd.f32 0.0, %v516
      %518 = vmatmul.bf16.gmra.mxu0 %v440
      %v519 = vpop.f32.mrf.mxu0
      %v520 = vadd.f32 0.0, %v519
      %v521 = vpop.f32.mrf.mxu0
      %v522 = vadd.f32 0.0, %v521
      %523 = vmatmul.bf16.gmra.mxu0 %v443
      %v524 = vpop.f32.mrf.mxu0
      %v525 = vadd.f32 0.0, %v524
      %v526 = vpop.f32.mrf.mxu0
      %v527 = vadd.f32 0.0, %v526
      %528 = vmatmul.bf16.gmra.mxu0 %v446
      %v529 = vpop.f32.mrf.mxu0
      %v530 = vadd.f32 0.0, %v529
      %v531 = vpop.f32.mrf.mxu0
      %v532 = vadd.f32 0.0, %v531
      %533 = vmatmul.bf16.gmra.mxu0 %v449
      %v534 = vpop.f32.mrf.mxu0
      %v535 = vadd.f32 0.0, %v534
      %v536 = vpop.f32.mrf.mxu0
      %v537 = vadd.f32 0.0, %v536
      %538 = vmatmul.bf16.gmra.mxu0 %v452
      %v539 = vpop.f32.mrf.mxu0
      %v540 = vadd.f32 0.0, %v539
      %v541 = vpop.f32.mrf.mxu0
      %v542 = vadd.f32 0.0, %v541
      %543 = vmatmul.bf16.gmra.mxu0 %v455
      %v544 = vpop.f32.mrf.mxu0
      %v545 = vadd.f32 0.0, %v544
      %v546 = vpop.f32.mrf.mxu0
      %v547 = vadd.f32 0.0, %v546
      %548 = vdwg.mxu0
      %vm549 = vcmask 64512
      %v550 = vsel %vm549, %v470, -inf
      %551 = vmax.xlane.f32.xlu0 %v550
      %v552 = vpop.xlane.xlu0 %551
      %v553 = vsel %vm549, %v472, -inf
      %554 = vmax.xlane.f32.xlu0 %v553
      %v555 = vpop.xlane.xlu0 %554
      %v556 = vsel %vm549, %v475, -inf
      %557 = vmax.xlane.f32.xlu0 %v556
      %v558 = vpop.xlane.xlu0 %557
      %v559 = vsel %vm549, %v477, -inf
      %560 = vmax.xlane.f32.xlu0 %v559
      %v561 = vpop.xlane.xlu0 %560
      %v562 = vsel %vm549, %v480, -inf
      %563 = vmax.xlane.f32.xlu0 %v562
      %v564 = vpop.xlane.xlu0 %563
      %v565 = vsel %vm549, %v482, -inf
      %566 = vmax.xlane.f32.xlu0 %v565
      %v567 = vpop.xlane.xlu0 %566
      %v568 = vsel %vm549, %v485, -inf
      %569 = vmax.xlane.f32.xlu0 %v568
      %v570 = vpop.xlane.xlu0 %569
      %v571 = vsel %vm549, %v487, -inf
      %572 = vmax.xlane.f32.xlu0 %v571
      %v573 = vpop.xlane.xlu0 %572
      %v574 = vsel %vm549, %v490, -inf
      %575 = vmax.xlane.f32.xlu0 %v574
      %v576 = vpop.xlane.xlu0 %575
      %v577 = vsel %vm549, %v492, -inf
      %578 = vmax.xlane.f32.xlu0 %v577
      %v579 = vpop.xlane.xlu0 %578
      %v580 = vsel %vm549, %v495, -inf
      %581 = vmax.xlane.f32.xlu0 %v580
      %v582 = vpop.xlane.xlu0 %581
      %v583 = vsel %vm549, %v497, -inf
      %584 = vmax.xlane.f32.xlu0 %v583
      %v585 = vpop.xlane.xlu0 %584
      %v586 = vsel %vm549, %v500, -inf
      %587 = vmax.xlane.f32.xlu0 %v586
      %v588 = vpop.xlane.xlu0 %587
      %v589 = vsel %vm549, %v502, -inf
      %590 = vmax.xlane.f32.xlu0 %v589
      %v591 = vpop.xlane.xlu0 %590
      %v592 = vsel %vm549, %v505, -inf
      %593 = vmax.xlane.f32.xlu0 %v592
      %v594 = vpop.xlane.xlu0 %593
      %v595 = vsel %vm549, %v507, -inf
      %596 = vmax.xlane.f32.xlu0 %v595
      %v597 = vpop.xlane.xlu0 %596
      %v598 = vsel %vm549, %v510, -inf
      %599 = vmax.xlane.f32.xlu0 %v598
      %v600 = vpop.xlane.xlu0 %599
      %v601 = vsel %vm549, %v512, -inf
      %602 = vmax.xlane.f32.xlu0 %v601
      %v603 = vpop.xlane.xlu0 %602
      %v604 = vsel %vm549, %v515, -inf
      %605 = vmax.xlane.f32.xlu0 %v604
      %v606 = vpop.xlane.xlu0 %605
      %v607 = vsel %vm549, %v517, -inf
      %608 = vmax.xlane.f32.xlu0 %v607
      %v609 = vpop.xlane.xlu0 %608
      %v610 = vsel %vm549, %v520, -inf
      %611 = vmax.xlane.f32.xlu0 %v610
      %v612 = vpop.xlane.xlu0 %611
      %v613 = vsel %vm549, %v522, -inf
      %614 = vmax.xlane.f32.xlu0 %v613
      %v615 = vpop.xlane.xlu0 %614
      %v616 = vsel %vm549, %v525, -inf
      %617 = vmax.xlane.f32.xlu0 %v616
      %v618 = vpop.xlane.xlu0 %617
      %v619 = vsel %vm549, %v527, -inf
      %620 = vmax.xlane.f32.xlu0 %v619
      %v621 = vpop.xlane.xlu0 %620
      %v622 = vsel %vm549, %v530, -inf
      %623 = vmax.xlane.f32.xlu0 %v622
      %v624 = vpop.xlane.xlu0 %623
      %v625 = vsel %vm549, %v532, -inf
      %626 = vmax.xlane.f32.xlu0 %v625
      %v627 = vpop.xlane.xlu0 %626
      %v628 = vsel %vm549, %v535, -inf
      %629 = vmax.xlane.f32.xlu0 %v628
      %v630 = vpop.xlane.xlu0 %629
      %v631 = vsel %vm549, %v537, -inf
      %632 = vmax.xlane.f32.xlu0 %v631
      %v633 = vpop.xlane.xlu0 %632
      %v634 = vsel %vm549, %v540, -inf
      %635 = vmax.xlane.f32.xlu0 %v634
      %v636 = vpop.xlane.xlu0 %635
      %v637 = vsel %vm549, %v542, -inf
      %638 = vmax.xlane.f32.xlu0 %v637
      %v639 = vpop.xlane.xlu0 %638
      %v640 = vsel %vm549, %v545, -inf
      %641 = vmax.xlane.f32.xlu0 %v640
      %v642 = vpop.xlane.xlu0 %641
      %v643 = vsel %vm549, %v547, -inf
      %644 = vmax.xlane.f32.xlu0 %v643
      %v645 = vpop.xlane.xlu0 %644
      %v646 = vsub.f32 %v470, %v552
      %v647 = vsub.f32 %v472, %v555
      %v648 = vsub.f32 %v475, %v558
      %v649 = vsub.f32 %v477, %v561
      %v650 = vsub.f32 %v480, %v564
      %v651 = vsub.f32 %v482, %v567
      %v652 = vsub.f32 %v485, %v570
      %v653 = vsub.f32 %v487, %v573
      %v654 = vsub.f32 %v490, %v576
      %v655 = vsub.f32 %v492, %v579
      %v656 = vsub.f32 %v495, %v582
      %v657 = vsub.f32 %v497, %v585
      %v658 = vsub.f32 %v500, %v588
      %v659 = vsub.f32 %v502, %v591
      %v660 = vsub.f32 %v505, %v594
      %v661 = vsub.f32 %v507, %v597
      %v662 = vsub.f32 %v510, %v600
      %v663 = vsub.f32 %v512, %v603
      %v664 = vsub.f32 %v515, %v606
      %v665 = vsub.f32 %v517, %v609
      %v666 = vsub.f32 %v520, %v612
      %v667 = vsub.f32 %v522, %v615
      %v668 = vsub.f32 %v525, %v618
      %v669 = vsub.f32 %v527, %v621
      %v670 = vsub.f32 %v530, %v624
      %v671 = vsub.f32 %v532, %v627
      %v672 = vsub.f32 %v535, %v630
      %v673 = vsub.f32 %v537, %v633
      %v674 = vsub.f32 %v540, %v636
      %v675 = vsub.f32 %v542, %v639
      %v676 = vsub.f32 %v545, %v642
      %v677 = vsub.f32 %v547, %v645
      %v678 = vmul.f32 %v646, 1.442695
      %v679 = vpow.pop %v678
      %v680 = vmul.f32 %v647, 1.442695
      %v681 = vpow.pop %v680
      %v682 = vmul.f32 %v648, 1.442695
      %v683 = vpow.pop %v682
      %v684 = vmul.f32 %v649, 1.442695
      %v685 = vpow.pop %v684
      %v686 = vmul.f32 %v650, 1.442695
      %v687 = vpow.pop %v686
      %v688 = vmul.f32 %v651, 1.442695
      %v689 = vpow.pop %v688
      %v690 = vmul.f32 %v652, 1.442695
      %v691 = vpow.pop %v690
      %v692 = vmul.f32 %v653, 1.442695
      %v693 = vpow.pop %v692
      %v694 = vmul.f32 %v654, 1.442695
      %v695 = vpow.pop %v694
      %v696 = vmul.f32 %v655, 1.442695
      %v697 = vpow.pop %v696
      %v698 = vmul.f32 %v656, 1.442695
      %v699 = vpow.pop %v698
      %v700 = vmul.f32 %v657, 1.442695
      %v701 = vpow.pop %v700
      %v702 = vmul.f32 %v658, 1.442695
      %v703 = vpow.pop %v702
      %v704 = vmul.f32 %v659, 1.442695
      %v705 = vpow.pop %v704
      %v706 = vmul.f32 %v660, 1.442695
      %v707 = vpow.pop %v706
      %v708 = vmul.f32 %v661, 1.442695
      %v709 = vpow.pop %v708
      %v710 = vmul.f32 %v662, 1.442695
      %v711 = vpow.pop %v710
      %v712 = vmul.f32 %v663, 1.442695
      %v713 = vpow.pop %v712
      %v714 = vmul.f32 %v664, 1.442695
      %v715 = vpow.pop %v714
      %v716 = vmul.f32 %v665, 1.442695
      %v717 = vpow.pop %v716
      %v718 = vmul.f32 %v666, 1.442695
      %v719 = vpow.pop %v718
      %v720 = vmul.f32 %v667, 1.442695
      %v721 = vpow.pop %v720
      %v722 = vmul.f32 %v668, 1.442695
      %v723 = vpow.pop %v722
      %v724 = vmul.f32 %v669, 1.442695
      %v725 = vpow.pop %v724
      %v726 = vmul.f32 %v670, 1.442695
      %v727 = vpow.pop %v726
      %v728 = vmul.f32 %v671, 1.442695
      %v729 = vpow.pop %v728
      %v730 = vmul.f32 %v672, 1.442695
      %v731 = vpow.pop %v730
      %v732 = vmul.f32 %v673, 1.442695
      %v733 = vpow.pop %v732
      %v734 = vmul.f32 %v674, 1.442695
      %v735 = vpow.pop %v734
      %v736 = vmul.f32 %v675, 1.442695
      %v737 = vpow.pop %v736
      %v738 = vmul.f32 %v676, 1.442695
      %v739 = vpow.pop %v738
      %v740 = vmul.f32 %v677, 1.442695
      %v741 = vpow.pop %v740
      %v742 = vsel %vm549, %v679, 0.0
      %743 = vadd.xlane.f32.xlu0 %v742
      %v744 = vpop.xlane.xlu0 %743
      %v745 = vsel %vm549, %v681, 0.0
      %746 = vadd.xlane.f32.xlu0 %v745
      %v747 = vpop.xlane.xlu0 %746
      %v748 = vsel %vm549, %v683, 0.0
      %749 = vadd.xlane.f32.xlu0 %v748
      %v750 = vpop.xlane.xlu0 %749
      %v751 = vsel %vm549, %v685, 0.0
      %752 = vadd.xlane.f32.xlu0 %v751
      %v753 = vpop.xlane.xlu0 %752
      %v754 = vsel %vm549, %v687, 0.0
      %755 = vadd.xlane.f32.xlu0 %v754
      %v756 = vpop.xlane.xlu0 %755
      %v757 = vsel %vm549, %v689, 0.0
      %758 = vadd.xlane.f32.xlu0 %v757
      %v759 = vpop.xlane.xlu0 %758
      %v760 = vsel %vm549, %v691, 0.0
      %761 = vadd.xlane.f32.xlu0 %v760
      %v762 = vpop.xlane.xlu0 %761
      %v763 = vsel %vm549, %v693, 0.0
      %764 = vadd.xlane.f32.xlu0 %v763
      %v765 = vpop.xlane.xlu0 %764
      %v766 = vsel %vm549, %v695, 0.0
      %767 = vadd.xlane.f32.xlu0 %v766
      %v768 = vpop.xlane.xlu0 %767
      %v769 = vsel %vm549, %v697, 0.0
      %770 = vadd.xlane.f32.xlu0 %v769
      %v771 = vpop.xlane.xlu0 %770
      %v772 = vsel %vm549, %v699, 0.0
      %773 = vadd.xlane.f32.xlu0 %v772
      %v774 = vpop.xlane.xlu0 %773
      %v775 = vsel %vm549, %v701, 0.0
      %776 = vadd.xlane.f32.xlu0 %v775
      %v777 = vpop.xlane.xlu0 %776
      %v778 = vsel %vm549, %v703, 0.0
      %779 = vadd.xlane.f32.xlu0 %v778
      %v780 = vpop.xlane.xlu0 %779
      %v781 = vsel %vm549, %v705, 0.0
      %782 = vadd.xlane.f32.xlu0 %v781
      %v783 = vpop.xlane.xlu0 %782
      %v784 = vsel %vm549, %v707, 0.0
      %785 = vadd.xlane.f32.xlu0 %v784
      %v786 = vpop.xlane.xlu0 %785
      %v787 = vsel %vm549, %v709, 0.0
      %788 = vadd.xlane.f32.xlu0 %v787
      %v789 = vpop.xlane.xlu0 %788
      %v790 = vsel %vm549, %v711, 0.0
      %791 = vadd.xlane.f32.xlu0 %v790
      %v792 = vpop.xlane.xlu0 %791
      %v793 = vsel %vm549, %v713, 0.0
      %794 = vadd.xlane.f32.xlu0 %v793
      %v795 = vpop.xlane.xlu0 %794
      %v796 = vsel %vm549, %v715, 0.0
      %797 = vadd.xlane.f32.xlu0 %v796
      %v798 = vpop.xlane.xlu0 %797
      %v799 = vsel %vm549, %v717, 0.0
      %800 = vadd.xlane.f32.xlu0 %v799
      %v801 = vpop.xlane.xlu0 %800
      %v802 = vsel %vm549, %v719, 0.0
      %803 = vadd.xlane.f32.xlu0 %v802
      %v804 = vpop.xlane.xlu0 %803
      %v805 = vsel %vm549, %v721, 0.0
      %806 = vadd.xlane.f32.xlu0 %v805
      %v807 = vpop.xlane.xlu0 %806
      %v808 = vsel %vm549, %v723, 0.0
      %809 = vadd.xlane.f32.xlu0 %v808
      %v810 = vpop.xlane.xlu0 %809
      %v811 = vsel %vm549, %v725, 0.0
      %812 = vadd.xlane.f32.xlu0 %v811
      %v813 = vpop.xlane.xlu0 %812
      %v814 = vsel %vm549, %v727, 0.0
      %815 = vadd.xlane.f32.xlu0 %v814
      %v816 = vpop.xlane.xlu0 %815
      %v817 = vsel %vm549, %v729, 0.0
      %818 = vadd.xlane.f32.xlu0 %v817
      %v819 = vpop.xlane.xlu0 %818
      %v820 = vsel %vm549, %v731, 0.0
      %821 = vadd.xlane.f32.xlu0 %v820
      %v822 = vpop.xlane.xlu0 %821
      %v823 = vsel %vm549, %v733, 0.0
      %824 = vadd.xlane.f32.xlu0 %v823
      %v825 = vpop.xlane.xlu0 %824
      %v826 = vsel %vm549, %v735, 0.0
      %827 = vadd.xlane.f32.xlu0 %v826
      %v828 = vpop.xlane.xlu0 %827
      %v829 = vsel %vm549, %v737, 0.0
      %830 = vadd.xlane.f32.xlu0 %v829
      %v831 = vpop.xlane.xlu0 %830
      %v832 = vsel %vm549, %v739, 0.0
      %833 = vadd.xlane.f32.xlu0 %v832
      %v834 = vpop.xlane.xlu0 %833
      %v835 = vsel %vm549, %v741, 0.0
      %836 = vadd.xlane.f32.xlu0 %v835
      %v837 = vpop.xlane.xlu0 %836
      %v838 = vrcp.pop %v744
      %v839 = vmul.f32 %v744, %v838
      %v840 = vsub.f32 1.0, %v839
      %v841 = vmul.f32 %v838, %v840
      %v842 = vadd.f32 %v838, %v841
      %vm843 = vweird.f32 %v744
      %vm844 = vweird.f32 %v838
      %vm845 = vmor %vm843, %vm844
      %v846 = vsel %vm845, %v838, %v842
      %v847 = vand.u32 2147483647, %v744
      %vm848 = vcmp.eq.f32.partialorder %v847, 8.507059e+37
      %v849 = vand.u32 %v744, 2147483648
      %v850 = vor.u32 1.1754944e-38, %v849
      %v851 = vsel %vm848, %v850, %v846
      %v852 = vmul.f32 %v679, %v851
      %v853 = vrcp.pop %v747
      %v854 = vmul.f32 %v747, %v853
      %v855 = vsub.f32 1.0, %v854
      %v856 = vmul.f32 %v853, %v855
      %v857 = vadd.f32 %v853, %v856
      %vm858 = vweird.f32 %v747
      %vm859 = vweird.f32 %v853
      %vm860 = vmor %vm858, %vm859
      %v861 = vsel %vm860, %v853, %v857
      %v862 = vand.u32 2147483647, %v747
      %vm863 = vcmp.eq.f32.partialorder %v862, 8.507059e+37
      %v864 = vand.u32 %v747, 2147483648
      %v865 = vor.u32 1.1754944e-38, %v864
      %v866 = vsel %vm863, %v865, %v861
      %v867 = vmul.f32 %v681, %v866
      %v868 = vrcp.pop %v750
      %v869 = vmul.f32 %v750, %v868
      %v870 = vsub.f32 1.0, %v869
      %v871 = vmul.f32 %v868, %v870
      %v872 = vadd.f32 %v868, %v871
      %vm873 = vweird.f32 %v750
      %vm874 = vweird.f32 %v868
      %vm875 = vmor %vm873, %vm874
      %v876 = vsel %vm875, %v868, %v872
      %v877 = vand.u32 2147483647, %v750
      %vm878 = vcmp.eq.f32.partialorder %v877, 8.507059e+37
      %v879 = vand.u32 %v750, 2147483648
      %v880 = vor.u32 1.1754944e-38, %v879
      %v881 = vsel %vm878, %v880, %v876
      %v882 = vmul.f32 %v683, %v881
      %v883 = vrcp.pop %v753
      %v884 = vmul.f32 %v753, %v883
      %v885 = vsub.f32 1.0, %v884
      %v886 = vmul.f32 %v883, %v885
      %v887 = vadd.f32 %v883, %v886
      %vm888 = vweird.f32 %v753
      %vm889 = vweird.f32 %v883
      %vm890 = vmor %vm888, %vm889
      %v891 = vsel %vm890, %v883, %v887
      %v892 = vand.u32 2147483647, %v753
      %vm893 = vcmp.eq.f32.partialorder %v892, 8.507059e+37
      %v894 = vand.u32 %v753, 2147483648
      %v895 = vor.u32 1.1754944e-38, %v894
      %v896 = vsel %vm893, %v895, %v891
      %v897 = vmul.f32 %v685, %v896
      %v898 = vrcp.pop %v756
      %v899 = vmul.f32 %v756, %v898
      %v900 = vsub.f32 1.0, %v899
      %v901 = vmul.f32 %v898, %v900
      %v902 = vadd.f32 %v898, %v901
      %vm903 = vweird.f32 %v756
      %vm904 = vweird.f32 %v898
      %vm905 = vmor %vm903, %vm904
      %v906 = vsel %vm905, %v898, %v902
      %v907 = vand.u32 2147483647, %v756
      %vm908 = vcmp.eq.f32.partialorder %v907, 8.507059e+37
      %v909 = vand.u32 %v756, 2147483648
      %v910 = vor.u32 1.1754944e-38, %v909
      %v911 = vsel %vm908, %v910, %v906
      %v912 = vmul.f32 %v687, %v911
      %v913 = vrcp.pop %v759
      %v914 = vmul.f32 %v759, %v913
      %v915 = vsub.f32 1.0, %v914
      %v916 = vmul.f32 %v913, %v915
      %v917 = vadd.f32 %v913, %v916
      %vm918 = vweird.f32 %v759
      %vm919 = vweird.f32 %v913
      %vm920 = vmor %vm918, %vm919
      %v921 = vsel %vm920, %v913, %v917
      %v922 = vand.u32 2147483647, %v759
      %vm923 = vcmp.eq.f32.partialorder %v922, 8.507059e+37
      %v924 = vand.u32 %v759, 2147483648
      %v925 = vor.u32 1.1754944e-38, %v924
      %v926 = vsel %vm923, %v925, %v921
      %v927 = vmul.f32 %v689, %v926
      %v928 = vrcp.pop %v762
      %v929 = vmul.f32 %v762, %v928
      %v930 = vsub.f32 1.0, %v929
      %v931 = vmul.f32 %v928, %v930
      %v932 = vadd.f32 %v928, %v931
      %vm933 = vweird.f32 %v762
      %vm934 = vweird.f32 %v928
      %vm935 = vmor %vm933, %vm934
      %v936 = vsel %vm935, %v928, %v932
      %v937 = vand.u32 2147483647, %v762
      %vm938 = vcmp.eq.f32.partialorder %v937, 8.507059e+37
      %v939 = vand.u32 %v762, 2147483648
      %v940 = vor.u32 1.1754944e-38, %v939
      %v941 = vsel %vm938, %v940, %v936
      %v942 = vmul.f32 %v691, %v941
      %v943 = vrcp.pop %v765
      %v944 = vmul.f32 %v765, %v943
      %v945 = vsub.f32 1.0, %v944
      %v946 = vmul.f32 %v943, %v945
      %v947 = vadd.f32 %v943, %v946
      %vm948 = vweird.f32 %v765
      %vm949 = vweird.f32 %v943
      %vm950 = vmor %vm948, %vm949
      %v951 = vsel %vm950, %v943, %v947
      %v952 = vand.u32 2147483647, %v765
      %vm953 = vcmp.eq.f32.partialorder %v952, 8.507059e+37
      %v954 = vand.u32 %v765, 2147483648
      %v955 = vor.u32 1.1754944e-38, %v954
      %v956 = vsel %vm953, %v955, %v951
      %v957 = vmul.f32 %v693, %v956
      %v958 = vrcp.pop %v768
      %v959 = vmul.f32 %v768, %v958
      %v960 = vsub.f32 1.0, %v959
      %v961 = vmul.f32 %v958, %v960
      %v962 = vadd.f32 %v958, %v961
      %vm963 = vweird.f32 %v768
      %vm964 = vweird.f32 %v958
      %vm965 = vmor %vm963, %vm964
      %v966 = vsel %vm965, %v958, %v962
      %v967 = vand.u32 2147483647, %v768
      %vm968 = vcmp.eq.f32.partialorder %v967, 8.507059e+37
      %v969 = vand.u32 %v768, 2147483648
      %v970 = vor.u32 1.1754944e-38, %v969
      %v971 = vsel %vm968, %v970, %v966
      %v972 = vmul.f32 %v695, %v971
      %v973 = vrcp.pop %v771
      %v974 = vmul.f32 %v771, %v973
      %v975 = vsub.f32 1.0, %v974
      %v976 = vmul.f32 %v973, %v975
      %v977 = vadd.f32 %v973, %v976
      %vm978 = vweird.f32 %v771
      %vm979 = vweird.f32 %v973
      %vm980 = vmor %vm978, %vm979
      %v981 = vsel %vm980, %v973, %v977
      %v982 = vand.u32 2147483647, %v771
      %vm983 = vcmp.eq.f32.partialorder %v982, 8.507059e+37
      %v984 = vand.u32 %v771, 2147483648
      %v985 = vor.u32 1.1754944e-38, %v984
      %v986 = vsel %vm983, %v985, %v981
      %v987 = vmul.f32 %v697, %v986
      %v988 = vrcp.pop %v774
      %v989 = vmul.f32 %v774, %v988
      %v990 = vsub.f32 1.0, %v989
      %v991 = vmul.f32 %v988, %v990
      %v992 = vadd.f32 %v988, %v991
      %vm993 = vweird.f32 %v774
      %vm994 = vweird.f32 %v988
      %vm995 = vmor %vm993, %vm994
      %v996 = vsel %vm995, %v988, %v992
      %v997 = vand.u32 2147483647, %v774
      %vm998 = vcmp.eq.f32.partialorder %v997, 8.507059e+37
      %v999 = vand.u32 %v774, 2147483648
      %v1000 = vor.u32 1.1754944e-38, %v999
      %v1001 = vsel %vm998, %v1000, %v996
      %v1002 = vmul.f32 %v699, %v1001
      %v1003 = vrcp.pop %v777
      %v1004 = vmul.f32 %v777, %v1003
      %v1005 = vsub.f32 1.0, %v1004
      %v1006 = vmul.f32 %v1003, %v1005
      %v1007 = vadd.f32 %v1003, %v1006
      %vm1008 = vweird.f32 %v777
      %vm1009 = vweird.f32 %v1003
      %vm1010 = vmor %vm1008, %vm1009
      %v1011 = vsel %vm1010, %v1003, %v1007
      %v1012 = vand.u32 2147483647, %v777
      %vm1013 = vcmp.eq.f32.partialorder %v1012, 8.507059e+37
      %v1014 = vand.u32 %v777, 2147483648
      %v1015 = vor.u32 1.1754944e-38, %v1014
      %v1016 = vsel %vm1013, %v1015, %v1011
      %v1017 = vmul.f32 %v701, %v1016
      %v1018 = vrcp.pop %v780
      %v1019 = vmul.f32 %v780, %v1018
      %v1020 = vsub.f32 1.0, %v1019
      %v1021 = vmul.f32 %v1018, %v1020
      %v1022 = vadd.f32 %v1018, %v1021
      %vm1023 = vweird.f32 %v780
      %vm1024 = vweird.f32 %v1018
      %vm1025 = vmor %vm1023, %vm1024
      %v1026 = vsel %vm1025, %v1018, %v1022
      %v1027 = vand.u32 2147483647, %v780
      %vm1028 = vcmp.eq.f32.partialorder %v1027, 8.507059e+37
      %v1029 = vand.u32 %v780, 2147483648
      %v1030 = vor.u32 1.1754944e-38, %v1029
      %v1031 = vsel %vm1028, %v1030, %v1026
      %v1032 = vmul.f32 %v703, %v1031
      %v1033 = vrcp.pop %v783
      %v1034 = vmul.f32 %v783, %v1033
      %v1035 = vsub.f32 1.0, %v1034
      %v1036 = vmul.f32 %v1033, %v1035
      %v1037 = vadd.f32 %v1033, %v1036
      %vm1038 = vweird.f32 %v783
      %vm1039 = vweird.f32 %v1033
      %vm1040 = vmor %vm1038, %vm1039
      %v1041 = vsel %vm1040, %v1033, %v1037
      %v1042 = vand.u32 2147483647, %v783
      %vm1043 = vcmp.eq.f32.partialorder %v1042, 8.507059e+37
      %v1044 = vand.u32 %v783, 2147483648
      %v1045 = vor.u32 1.1754944e-38, %v1044
      %v1046 = vsel %vm1043, %v1045, %v1041
      %v1047 = vmul.f32 %v705, %v1046
      %v1048 = vrcp.pop %v786
      %v1049 = vmul.f32 %v786, %v1048
      %v1050 = vsub.f32 1.0, %v1049
      %v1051 = vmul.f32 %v1048, %v1050
      %v1052 = vadd.f32 %v1048, %v1051
      %vm1053 = vweird.f32 %v786
      %vm1054 = vweird.f32 %v1048
      %vm1055 = vmor %vm1053, %vm1054
      %v1056 = vsel %vm1055, %v1048, %v1052
      %v1057 = vand.u32 2147483647, %v786
      %vm1058 = vcmp.eq.f32.partialorder %v1057, 8.507059e+37
      %v1059 = vand.u32 %v786, 2147483648
      %v1060 = vor.u32 1.1754944e-38, %v1059
      %v1061 = vsel %vm1058, %v1060, %v1056
      %v1062 = vmul.f32 %v707, %v1061
      %v1063 = vrcp.pop %v789
      %v1064 = vmul.f32 %v789, %v1063
      %v1065 = vsub.f32 1.0, %v1064
      %v1066 = vmul.f32 %v1063, %v1065
      %v1067 = vadd.f32 %v1063, %v1066
      %vm1068 = vweird.f32 %v789
      %vm1069 = vweird.f32 %v1063
      %vm1070 = vmor %vm1068, %vm1069
      %v1071 = vsel %vm1070, %v1063, %v1067
      %v1072 = vand.u32 2147483647, %v789
      %vm1073 = vcmp.eq.f32.partialorder %v1072, 8.507059e+37
      %v1074 = vand.u32 %v789, 2147483648
      %v1075 = vor.u32 1.1754944e-38, %v1074
      %v1076 = vsel %vm1073, %v1075, %v1071
      %v1077 = vmul.f32 %v709, %v1076
      %v1078 = vrcp.pop %v792
      %v1079 = vmul.f32 %v792, %v1078
      %v1080 = vsub.f32 1.0, %v1079
      %v1081 = vmul.f32 %v1078, %v1080
      %v1082 = vadd.f32 %v1078, %v1081
      %vm1083 = vweird.f32 %v792
      %vm1084 = vweird.f32 %v1078
      %vm1085 = vmor %vm1083, %vm1084
      %v1086 = vsel %vm1085, %v1078, %v1082
      %v1087 = vand.u32 2147483647, %v792
      %vm1088 = vcmp.eq.f32.partialorder %v1087, 8.507059e+37
      %v1089 = vand.u32 %v792, 2147483648
      %v1090 = vor.u32 1.1754944e-38, %v1089
      %v1091 = vsel %vm1088, %v1090, %v1086
      %v1092 = vmul.f32 %v711, %v1091
      %v1093 = vrcp.pop %v795
      %v1094 = vmul.f32 %v795, %v1093
      %v1095 = vsub.f32 1.0, %v1094
      %v1096 = vmul.f32 %v1093, %v1095
      %v1097 = vadd.f32 %v1093, %v1096
      %vm1098 = vweird.f32 %v795
      %vm1099 = vweird.f32 %v1093
      %vm1100 = vmor %vm1098, %vm1099
      %v1101 = vsel %vm1100, %v1093, %v1097
      %v1102 = vand.u32 2147483647, %v795
      %vm1103 = vcmp.eq.f32.partialorder %v1102, 8.507059e+37
      %v1104 = vand.u32 %v795, 2147483648
      %v1105 = vor.u32 1.1754944e-38, %v1104
      %v1106 = vsel %vm1103, %v1105, %v1101
      %v1107 = vmul.f32 %v713, %v1106
      %v1108 = vrcp.pop %v798
      %v1109 = vmul.f32 %v798, %v1108
      %v1110 = vsub.f32 1.0, %v1109
      %v1111 = vmul.f32 %v1108, %v1110
      %v1112 = vadd.f32 %v1108, %v1111
      %vm1113 = vweird.f32 %v798
      %vm1114 = vweird.f32 %v1108
      %vm1115 = vmor %vm1113, %vm1114
      %v1116 = vsel %vm1115, %v1108, %v1112
      %v1117 = vand.u32 2147483647, %v798
      %vm1118 = vcmp.eq.f32.partialorder %v1117, 8.507059e+37
      %v1119 = vand.u32 %v798, 2147483648
      %v1120 = vor.u32 1.1754944e-38, %v1119
      %v1121 = vsel %vm1118, %v1120, %v1116
      %v1122 = vmul.f32 %v715, %v1121
      %v1123 = vrcp.pop %v801
      %v1124 = vmul.f32 %v801, %v1123
      %v1125 = vsub.f32 1.0, %v1124
      %v1126 = vmul.f32 %v1123, %v1125
      %v1127 = vadd.f32 %v1123, %v1126
      %vm1128 = vweird.f32 %v801
      %vm1129 = vweird.f32 %v1123
      %vm1130 = vmor %vm1128, %vm1129
      %v1131 = vsel %vm1130, %v1123, %v1127
      %v1132 = vand.u32 2147483647, %v801
      %vm1133 = vcmp.eq.f32.partialorder %v1132, 8.507059e+37
      %v1134 = vand.u32 %v801, 2147483648
      %v1135 = vor.u32 1.1754944e-38, %v1134
      %v1136 = vsel %vm1133, %v1135, %v1131
      %v1137 = vmul.f32 %v717, %v1136
      %v1138 = vrcp.pop %v804
      %v1139 = vmul.f32 %v804, %v1138
      %v1140 = vsub.f32 1.0, %v1139
      %v1141 = vmul.f32 %v1138, %v1140
      %v1142 = vadd.f32 %v1138, %v1141
      %vm1143 = vweird.f32 %v804
      %vm1144 = vweird.f32 %v1138
      %vm1145 = vmor %vm1143, %vm1144
      %v1146 = vsel %vm1145, %v1138, %v1142
      %v1147 = vand.u32 2147483647, %v804
      %vm1148 = vcmp.eq.f32.partialorder %v1147, 8.507059e+37
      %v1149 = vand.u32 %v804, 2147483648
      %v1150 = vor.u32 1.1754944e-38, %v1149
      %v1151 = vsel %vm1148, %v1150, %v1146
      %v1152 = vmul.f32 %v719, %v1151
      %v1153 = vrcp.pop %v807
      %v1154 = vmul.f32 %v807, %v1153
      %v1155 = vsub.f32 1.0, %v1154
      %v1156 = vmul.f32 %v1153, %v1155
      %v1157 = vadd.f32 %v1153, %v1156
      %vm1158 = vweird.f32 %v807
      %vm1159 = vweird.f32 %v1153
      %vm1160 = vmor %vm1158, %vm1159
      %v1161 = vsel %vm1160, %v1153, %v1157
      %v1162 = vand.u32 2147483647, %v807
      %vm1163 = vcmp.eq.f32.partialorder %v1162, 8.507059e+37
      %v1164 = vand.u32 %v807, 2147483648
      %v1165 = vor.u32 1.1754944e-38, %v1164
      %v1166 = vsel %vm1163, %v1165, %v1161
      %v1167 = vmul.f32 %v721, %v1166
      %v1168 = vrcp.pop %v810
      %v1169 = vmul.f32 %v810, %v1168
      %v1170 = vsub.f32 1.0, %v1169
      %v1171 = vmul.f32 %v1168, %v1170
      %v1172 = vadd.f32 %v1168, %v1171
      %vm1173 = vweird.f32 %v810
      %vm1174 = vweird.f32 %v1168
      %vm1175 = vmor %vm1173, %vm1174
      %v1176 = vsel %vm1175, %v1168, %v1172
      %v1177 = vand.u32 2147483647, %v810
      %vm1178 = vcmp.eq.f32.partialorder %v1177, 8.507059e+37
      %v1179 = vand.u32 %v810, 2147483648
      %v1180 = vor.u32 1.1754944e-38, %v1179
      %v1181 = vsel %vm1178, %v1180, %v1176
      %v1182 = vmul.f32 %v723, %v1181
      %v1183 = vrcp.pop %v813
      %v1184 = vmul.f32 %v813, %v1183
      %v1185 = vsub.f32 1.0, %v1184
      %v1186 = vmul.f32 %v1183, %v1185
      %v1187 = vadd.f32 %v1183, %v1186
      %vm1188 = vweird.f32 %v813
      %vm1189 = vweird.f32 %v1183
      %vm1190 = vmor %vm1188, %vm1189
      %v1191 = vsel %vm1190, %v1183, %v1187
      %v1192 = vand.u32 2147483647, %v813
      %vm1193 = vcmp.eq.f32.partialorder %v1192, 8.507059e+37
      %v1194 = vand.u32 %v813, 2147483648
      %v1195 = vor.u32 1.1754944e-38, %v1194
      %v1196 = vsel %vm1193, %v1195, %v1191
      %v1197 = vmul.f32 %v725, %v1196
      %v1198 = vrcp.pop %v816
      %v1199 = vmul.f32 %v816, %v1198
      %v1200 = vsub.f32 1.0, %v1199
      %v1201 = vmul.f32 %v1198, %v1200
      %v1202 = vadd.f32 %v1198, %v1201
      %vm1203 = vweird.f32 %v816
      %vm1204 = vweird.f32 %v1198
      %vm1205 = vmor %vm1203, %vm1204
      %v1206 = vsel %vm1205, %v1198, %v1202
      %v1207 = vand.u32 2147483647, %v816
      %vm1208 = vcmp.eq.f32.partialorder %v1207, 8.507059e+37
      %v1209 = vand.u32 %v816, 2147483648
      %v1210 = vor.u32 1.1754944e-38, %v1209
      %v1211 = vsel %vm1208, %v1210, %v1206
      %v1212 = vmul.f32 %v727, %v1211
      %v1213 = vrcp.pop %v819
      %v1214 = vmul.f32 %v819, %v1213
      %v1215 = vsub.f32 1.0, %v1214
      %v1216 = vmul.f32 %v1213, %v1215
      %v1217 = vadd.f32 %v1213, %v1216
      %vm1218 = vweird.f32 %v819
      %vm1219 = vweird.f32 %v1213
      %vm1220 = vmor %vm1218, %vm1219
      %v1221 = vsel %vm1220, %v1213, %v1217
      %v1222 = vand.u32 2147483647, %v819
      %vm1223 = vcmp.eq.f32.partialorder %v1222, 8.507059e+37
      %v1224 = vand.u32 %v819, 2147483648
      %v1225 = vor.u32 1.1754944e-38, %v1224
      %v1226 = vsel %vm1223, %v1225, %v1221
      %v1227 = vmul.f32 %v729, %v1226
      %v1228 = vrcp.pop %v822
      %v1229 = vmul.f32 %v822, %v1228
      %v1230 = vsub.f32 1.0, %v1229
      %v1231 = vmul.f32 %v1228, %v1230
      %v1232 = vadd.f32 %v1228, %v1231
      %vm1233 = vweird.f32 %v822
      %vm1234 = vweird.f32 %v1228
      %vm1235 = vmor %vm1233, %vm1234
      %v1236 = vsel %vm1235, %v1228, %v1232
      %v1237 = vand.u32 2147483647, %v822
      %vm1238 = vcmp.eq.f32.partialorder %v1237, 8.507059e+37
      %v1239 = vand.u32 %v822, 2147483648
      %v1240 = vor.u32 1.1754944e-38, %v1239
      %v1241 = vsel %vm1238, %v1240, %v1236
      %v1242 = vmul.f32 %v731, %v1241
      %v1243 = vrcp.pop %v825
      %v1244 = vmul.f32 %v825, %v1243
      %v1245 = vsub.f32 1.0, %v1244
      %v1246 = vmul.f32 %v1243, %v1245
      %v1247 = vadd.f32 %v1243, %v1246
      %vm1248 = vweird.f32 %v825
      %vm1249 = vweird.f32 %v1243
      %vm1250 = vmor %vm1248, %vm1249
      %v1251 = vsel %vm1250, %v1243, %v1247
      %v1252 = vand.u32 2147483647, %v825
      %vm1253 = vcmp.eq.f32.partialorder %v1252, 8.507059e+37
      %v1254 = vand.u32 %v825, 2147483648
      %v1255 = vor.u32 1.1754944e-38, %v1254
      %v1256 = vsel %vm1253, %v1255, %v1251
      %v1257 = vmul.f32 %v733, %v1256
      %v1258 = vrcp.pop %v828
      %v1259 = vmul.f32 %v828, %v1258
      %v1260 = vsub.f32 1.0, %v1259
      %v1261 = vmul.f32 %v1258, %v1260
      %v1262 = vadd.f32 %v1258, %v1261
      %vm1263 = vweird.f32 %v828
      %vm1264 = vweird.f32 %v1258
      %vm1265 = vmor %vm1263, %vm1264
      %v1266 = vsel %vm1265, %v1258, %v1262
      %v1267 = vand.u32 2147483647, %v828
      %vm1268 = vcmp.eq.f32.partialorder %v1267, 8.507059e+37
      %v1269 = vand.u32 %v828, 2147483648
      %v1270 = vor.u32 1.1754944e-38, %v1269
      %v1271 = vsel %vm1268, %v1270, %v1266
      %v1272 = vmul.f32 %v735, %v1271
      %v1273 = vrcp.pop %v831
      %v1274 = vmul.f32 %v831, %v1273
      %v1275 = vsub.f32 1.0, %v1274
      %v1276 = vmul.f32 %v1273, %v1275
      %v1277 = vadd.f32 %v1273, %v1276
      %vm1278 = vweird.f32 %v831
      %vm1279 = vweird.f32 %v1273
      %vm1280 = vmor %vm1278, %vm1279
      %v1281 = vsel %vm1280, %v1273, %v1277
      %v1282 = vand.u32 2147483647, %v831
      %vm1283 = vcmp.eq.f32.partialorder %v1282, 8.507059e+37
      %v1284 = vand.u32 %v831, 2147483648
      %v1285 = vor.u32 1.1754944e-38, %v1284
      %v1286 = vsel %vm1283, %v1285, %v1281
      %v1287 = vmul.f32 %v737, %v1286
      %v1288 = vrcp.pop %v834
      %v1289 = vmul.f32 %v834, %v1288
      %v1290 = vsub.f32 1.0, %v1289
      %v1291 = vmul.f32 %v1288, %v1290
      %v1292 = vadd.f32 %v1288, %v1291
      %vm1293 = vweird.f32 %v834
      %vm1294 = vweird.f32 %v1288
      %vm1295 = vmor %vm1293, %vm1294
      %v1296 = vsel %vm1295, %v1288, %v1292
      %v1297 = vand.u32 2147483647, %v834
      %vm1298 = vcmp.eq.f32.partialorder %v1297, 8.507059e+37
      %v1299 = vand.u32 %v834, 2147483648
      %v1300 = vor.u32 1.1754944e-38, %v1299
      %v1301 = vsel %vm1298, %v1300, %v1296
      %v1302 = vmul.f32 %v739, %v1301
      %v1303 = vrcp.pop %v837
      %v1304 = vmul.f32 %v837, %v1303
      %v1305 = vsub.f32 1.0, %v1304
      %v1306 = vmul.f32 %v1303, %v1305
      %v1307 = vadd.f32 %v1303, %v1306
      %vm1308 = vweird.f32 %v837
      %vm1309 = vweird.f32 %v1303
      %vm1310 = vmor %vm1308, %vm1309
      %v1311 = vsel %vm1310, %v1303, %v1307
      %v1312 = vand.u32 2147483647, %v837
      %vm1313 = vcmp.eq.f32.partialorder %v1312, 8.507059e+37
      %v1314 = vand.u32 %v837, 2147483648
      %v1315 = vor.u32 1.1754944e-38, %v1314
      %v1316 = vsel %vm1313, %v1315, %v1311
      %v1317 = vmul.f32 %v741, %v1316
      %v1318 = vpack.c.bf16 %v867, %v852
      %v1319 = vpack.c.bf16 %v897, %v882
      %v1320 = vpack.c.bf16 %v927, %v912
      %v1321 = vpack.c.bf16 %v957, %v942
      %v1322 = vpack.c.bf16 %v987, %v972
      %v1323 = vpack.c.bf16 %v1017, %v1002
      %v1324 = vpack.c.bf16 %v1047, %v1032
      %v1325 = vpack.c.bf16 %v1077, %v1062
      %v1326 = vpack.c.bf16 %v1107, %v1092
      %v1327 = vpack.c.bf16 %v1137, %v1122
      %v1328 = vpack.c.bf16 %v1167, %v1152
      %v1329 = vpack.c.bf16 %v1197, %v1182
      %v1330 = vpack.c.bf16 %v1227, %v1212
      %v1331 = vpack.c.bf16 %v1257, %v1242
      %v1332 = vpack.c.bf16 %v1287, %v1272
      %v1333 = vpack.c.bf16 %v1317, %v1302
      %v1335 = vsel %vm549, %v1318, 0
      %v1338 = vsel %vm549, %v1319, 0
      %v1341 = vsel %vm549, %v1320, 0
      %v1344 = vsel %vm549, %v1321, 0
      %v1347 = vsel %vm549, %v1322, 0
      %v1350 = vsel %vm549, %v1323, 0
      %v1353 = vsel %vm549, %v1324, 0
      %v1356 = vsel %vm549, %v1325, 0
      %v1359 = vsel %vm549, %v1326, 0
      %v1362 = vsel %vm549, %v1327, 0
      %v1365 = vsel %vm549, %v1328, 0
      %v1368 = vsel %vm549, %v1329, 0
      %v1371 = vsel %vm549, %v1330, 0
      %v1374 = vsel %vm549, %v1331, 0
      %v1377 = vsel %vm549, %v1332, 0
      %v1380 = vsel %vm549, %v1333, 0
      %vm1382 = vcmask 1043456
      %v1383 = vsel %vm1382, %v289, 0
      %1385 = vmatpush.bf16.msra.mxu0 0
      %1386 = vmatpush.bf16.msra.mxu0 0
      %1387 = vmatpush.bf16.msra.mxu0 0
      %1388 = vmatpush.bf16.msra.mxu0 0
      %1389 = vmatpush.bf16.msra.mxu0 0
      %1390 = vmatpush.bf16.msra.mxu0 0
      %1391 = vmatpush.bf16.msra.mxu0 0
      %1392 = vmatpush.bf16.msra.mxu0 %v1383
      %1393 = vmatmul.bf16.gmra.mxu0 %v1335
      %v1394 = vpop.f32.mrf.mxu0
      %v1395 = vadd.f32 0.0, %v1394
      %v1396 = vpop.f32.mrf.mxu0
      %v1397 = vadd.f32 0.0, %v1396
      %1398 = vmatmul.bf16.gmra.mxu0 %v1338
      %v1399 = vpop.f32.mrf.mxu0
      %v1400 = vadd.f32 0.0, %v1399
      %v1401 = vpop.f32.mrf.mxu0
      %v1402 = vadd.f32 0.0, %v1401
      %1403 = vmatmul.bf16.gmra.mxu0 %v1341
      %v1404 = vpop.f32.mrf.mxu0
      %v1405 = vadd.f32 0.0, %v1404
      %v1406 = vpop.f32.mrf.mxu0
      %v1407 = vadd.f32 0.0, %v1406
      %1408 = vmatmul.bf16.gmra.mxu0 %v1344
      %v1409 = vpop.f32.mrf.mxu0
      %v1410 = vadd.f32 0.0, %v1409
      %v1411 = vpop.f32.mrf.mxu0
      %v1412 = vadd.f32 0.0, %v1411
      %1413 = vmatmul.bf16.gmra.mxu0 %v1347
      %v1414 = vpop.f32.mrf.mxu0
      %v1415 = vadd.f32 0.0, %v1414
      %v1416 = vpop.f32.mrf.mxu0
      %v1417 = vadd.f32 0.0, %v1416
      %1418 = vmatmul.bf16.gmra.mxu0 %v1350
      %v1419 = vpop.f32.mrf.mxu0
      %v1420 = vadd.f32 0.0, %v1419
      %v1421 = vpop.f32.mrf.mxu0
      %v1422 = vadd.f32 0.0, %v1421
      %1423 = vmatmul.bf16.gmra.mxu0 %v1353
      %v1424 = vpop.f32.mrf.mxu0
      %v1425 = vadd.f32 0.0, %v1424
      %v1426 = vpop.f32.mrf.mxu0
      %v1427 = vadd.f32 0.0, %v1426
      %1428 = vmatmul.bf16.gmra.mxu0 %v1356
      %v1429 = vpop.f32.mrf.mxu0
      %v1430 = vadd.f32 0.0, %v1429
      %v1431 = vpop.f32.mrf.mxu0
      %v1432 = vadd.f32 0.0, %v1431
      %1433 = vmatmul.bf16.gmra.mxu0 %v1359
      %v1434 = vpop.f32.mrf.mxu0
      %v1435 = vadd.f32 0.0, %v1434
      %v1436 = vpop.f32.mrf.mxu0
      %v1437 = vadd.f32 0.0, %v1436
      %1438 = vmatmul.bf16.gmra.mxu0 %v1362
      %v1439 = vpop.f32.mrf.mxu0
      %v1440 = vadd.f32 0.0, %v1439
      %v1441 = vpop.f32.mrf.mxu0
      %v1442 = vadd.f32 0.0, %v1441
      %1443 = vmatmul.bf16.gmra.mxu0 %v1365
      %v1444 = vpop.f32.mrf.mxu0
      %v1445 = vadd.f32 0.0, %v1444
      %v1446 = vpop.f32.mrf.mxu0
      %v1447 = vadd.f32 0.0, %v1446
      %1448 = vmatmul.bf16.gmra.mxu0 %v1368
      %v1449 = vpop.f32.mrf.mxu0
      %v1450 = vadd.f32 0.0, %v1449
      %v1451 = vpop.f32.mrf.mxu0
      %v1452 = vadd.f32 0.0, %v1451
      %1453 = vmatmul.bf16.gmra.mxu0 %v1371
      %v1454 = vpop.f32.mrf.mxu0
      %v1455 = vadd.f32 0.0, %v1454
      %v1456 = vpop.f32.mrf.mxu0
      %v1457 = vadd.f32 0.0, %v1456
      %1458 = vmatmul.bf16.gmra.mxu0 %v1374
      %v1459 = vpop.f32.mrf.mxu0
      %v1460 = vadd.f32 0.0, %v1459
      %v1461 = vpop.f32.mrf.mxu0
      %v1462 = vadd.f32 0.0, %v1461
      %1463 = vmatmul.bf16.gmra.mxu0 %v1377
      %v1464 = vpop.f32.mrf.mxu0
      %v1465 = vadd.f32 0.0, %v1464
      %v1466 = vpop.f32.mrf.mxu0
      %v1467 = vadd.f32 0.0, %v1466
      %1468 = vmatmul.bf16.gmra.mxu0 %v1380
      %v1469 = vpop.f32.mrf.mxu0
      %v1470 = vadd.f32 0.0, %v1469
      %v1471 = vpop.f32.mrf.mxu0
      %v1472 = vadd.f32 0.0, %v1471
      %1473 = vdwg.mxu0
      %v1475 = vsel %vm1382, %v291, 0
      %1477 = vmatpush.bf16.msra.mxu0 0
      %1478 = vmatpush.bf16.msra.mxu0 0
      %1479 = vmatpush.bf16.msra.mxu0 0
      %1480 = vmatpush.bf16.msra.mxu0 0
      %1481 = vmatpush.bf16.msra.mxu0 0
      %1482 = vmatpush.bf16.msra.mxu0 0
      %1483 = vmatpush.bf16.msra.mxu0 0
      %1484 = vmatpush.bf16.msra.mxu0 %v1475
      %1485 = vmatmul.bf16.gmra.mxu0 %v1335
      %v1486 = vpop.f32.mrf.mxu0
      %v1487 = vadd.f32 0.0, %v1486
      %v1488 = vpop.f32.mrf.mxu0
      %v1489 = vadd.f32 0.0, %v1488
      %1490 = vmatmul.bf16.gmra.mxu0 %v1338
      %v1491 = vpop.f32.mrf.mxu0
      %v1492 = vadd.f32 0.0, %v1491
      %v1493 = vpop.f32.mrf.mxu0
      %v1494 = vadd.f32 0.0, %v1493
      %1495 = vmatmul.bf16.gmra.mxu0 %v1341
      %v1496 = vpop.f32.mrf.mxu0
      %v1497 = vadd.f32 0.0, %v1496
      %v1498 = vpop.f32.mrf.mxu0
      %v1499 = vadd.f32 0.0, %v1498
      %1500 = vmatmul.bf16.gmra.mxu0 %v1344
      %v1501 = vpop.f32.mrf.mxu0
      %v1502 = vadd.f32 0.0, %v1501
      %v1503 = vpop.f32.mrf.mxu0
      %v1504 = vadd.f32 0.0, %v1503
      %1505 = vmatmul.bf16.gmra.mxu0 %v1347
      %v1506 = vpop.f32.mrf.mxu0
      %v1507 = vadd.f32 0.0, %v1506
      %v1508 = vpop.f32.mrf.mxu0
      %v1509 = vadd.f32 0.0, %v1508
      %1510 = vmatmul.bf16.gmra.mxu0 %v1350
      %v1511 = vpop.f32.mrf.mxu0
      %v1512 = vadd.f32 0.0, %v1511
      %v1513 = vpop.f32.mrf.mxu0
      %v1514 = vadd.f32 0.0, %v1513
      %1515 = vmatmul.bf16.gmra.mxu0 %v1353
      %v1516 = vpop.f32.mrf.mxu0
      %v1517 = vadd.f32 0.0, %v1516
      %v1518 = vpop.f32.mrf.mxu0
      %v1519 = vadd.f32 0.0, %v1518
      %1520 = vmatmul.bf16.gmra.mxu0 %v1356
      %v1521 = vpop.f32.mrf.mxu0
      %v1522 = vadd.f32 0.0, %v1521
      %v1523 = vpop.f32.mrf.mxu0
      %v1524 = vadd.f32 0.0, %v1523
      %1525 = vmatmul.bf16.gmra.mxu0 %v1359
      %v1526 = vpop.f32.mrf.mxu0
      %v1527 = vadd.f32 0.0, %v1526
      %v1528 = vpop.f32.mrf.mxu0
      %v1529 = vadd.f32 0.0, %v1528
      %1530 = vmatmul.bf16.gmra.mxu0 %v1362
      %v1531 = vpop.f32.mrf.mxu0
      %v1532 = vadd.f32 0.0, %v1531
      %v1533 = vpop.f32.mrf.mxu0
      %v1534 = vadd.f32 0.0, %v1533
      %1535 = vmatmul.bf16.gmra.mxu0 %v1365
      %v1536 = vpop.f32.mrf.mxu0
      %v1537 = vadd.f32 0.0, %v1536
      %v1538 = vpop.f32.mrf.mxu0
      %v1539 = vadd.f32 0.0, %v1538
      %1540 = vmatmul.bf16.gmra.mxu0 %v1368
      %v1541 = vpop.f32.mrf.mxu0
      %v1542 = vadd.f32 0.0, %v1541
      %v1543 = vpop.f32.mrf.mxu0
      %v1544 = vadd.f32 0.0, %v1543
      %1545 = vmatmul.bf16.gmra.mxu0 %v1371
      %v1546 = vpop.f32.mrf.mxu0
      %v1547 = vadd.f32 0.0, %v1546
      %v1548 = vpop.f32.mrf.mxu0
      %v1549 = vadd.f32 0.0, %v1548
      %1550 = vmatmul.bf16.gmra.mxu0 %v1374
      %v1551 = vpop.f32.mrf.mxu0
      %v1552 = vadd.f32 0.0, %v1551
      %v1553 = vpop.f32.mrf.mxu0
      %v1554 = vadd.f32 0.0, %v1553
      %1555 = vmatmul.bf16.gmra.mxu0 %v1377
      %v1556 = vpop.f32.mrf.mxu0
      %v1557 = vadd.f32 0.0, %v1556
      %v1558 = vpop.f32.mrf.mxu0
      %v1559 = vadd.f32 0.0, %v1558
      %1560 = vmatmul.bf16.gmra.mxu0 %v1380
      %v1561 = vpop.f32.mrf.mxu0
      %v1562 = vadd.f32 0.0, %v1561
      %v1563 = vpop.f32.mrf.mxu0
      %v1564 = vadd.f32 0.0, %v1563
      %1565 = vdwg.mxu0
      %v1566 = vunpack.c.l.bf16 %v289
      %v1567 = vsel %vm408, %v1566, 0.0
      %1568 = vadd.xlane.f32.xlu0 %v1567
      %v1569 = vpop.xlane.xlu0 %1568
      %v1570 = vrcp.pop 16.0
      %v1571 = vmul.f32 16.0, %v1570
      %v1572 = vsub.f32 1.0, %v1571
      %v1573 = vmul.f32 %v1570, %v1572
      %v1574 = vadd.f32 %v1570, %v1573
      %vm1575 = vweird.f32 %v1570
      %v1576 = vsel %vm1575, %v1570, %v1574
      %v1577 = vmul.f32 %v1569, %v1576
      %v1578 = vsub.f32 %v1566, %v1577
      %v1579 = vmul.f32 %v1578, %v1578
      %v1580 = vsel %vm408, %v1579, 0.0
      %1581 = vadd.xlane.f32.xlu0 %v1580
      %v1582 = vpop.xlane.xlu0 %1581
      %v1583 = vmul.f32 %v1582, %v1576
      %v1584 = vadd.f32 %v1583, 1e-05
      %v1585 = vrsqrt.pop %v1584
      %v1586 = vmul.f32 %v1585, %v1584
      %v1587 = vmul.f32 %v1586, %v1585
      %v1588 = vmul.f32 0.5, %v1587
      %v1589 = vsub.f32 1.5, %v1588
      %v1590 = vmul.f32 %v1585, %v1589
      %vm1591 = vweird.f32 %v1584
      %vm1592 = vweird.f32 %v1585
      %vm1593 = vmor %vm1591, %vm1592
      %v1594 = vsel %vm1593, %v1585, %v1590
      %v1595 = vmul.f32 %v1578, %v1594
      %v1597 = vperm.slane %v292, 0
      %v1599 = vmul.f32 %v1595, %v1597
      %v1601 = vperm.slane %v293, 0
      %v1603 = vadd.f32 %v1599, %v1601
      %v1604 = vunpack.c.l.bf16 %v291
      %v1605 = vsel %vm408, %v1604, 0.0
      %1606 = vadd.xlane.f32.xlu0 %v1605
      %v1607 = vpop.xlane.xlu0 %1606
      %v1608 = vmul.f32 %v1607, %v1576
      %v1609 = vsub.f32 %v1604, %v1608
      %v1610 = vmul.f32 %v1609, %v1609
      %v1611 = vsel %vm408, %v1610, 0.0
      %1612 = vadd.xlane.f32.xlu0 %v1611
      %v1613 = vpop.xlane.xlu0 %1612
      %v1614 = vmul.f32 %v1613, %v1576
      %v1615 = vadd.f32 %v1614, 1e-05
      %v1616 = vrsqrt.pop %v1615
      %v1617 = vmul.f32 %v1616, %v1615
      %v1618 = vmul.f32 %v1617, %v1616
      %v1619 = vmul.f32 0.5, %v1618
      %v1620 = vsub.f32 1.5, %v1619
      %v1621 = vmul.f32 %v1616, %v1620
      %vm1622 = vweird.f32 %v1615
      %vm1623 = vweird.f32 %v1616
      %vm1624 = vmor %vm1622, %vm1623
      %v1625 = vsel %vm1624, %v1616, %v1621
      %v1626 = vmul.f32 %v1609, %v1625
      %v1627 = vmul.f32 %v1626, %v1597
      %v1628 = vadd.f32 %v1627, %v1601
      %v1629 = vsel %vm408, %v1395, 0.0
      %1630 = vadd.xlane.f32.xlu0 %v1629
      %v1631 = vpop.xlane.xlu0 %1630
      %v1632 = vsel %vm408, %v1397, 0.0
      %1633 = vadd.xlane.f32.xlu0 %v1632
      %v1634 = vpop.xlane.xlu0 %1633
      %v1635 = vsel %vm408, %v1400, 0.0
      %1636 = vadd.xlane.f32.xlu0 %v1635
      %v1637 = vpop.xlane.xlu0 %1636
      %v1638 = vsel %vm408, %v1402, 0.0
      %1639 = vadd.xlane.f32.xlu0 %v1638
      %v1640 = vpop.xlane.xlu0 %1639
      %v1641 = vsel %vm408, %v1405, 0.0
      %1642 = vadd.xlane.f32.xlu0 %v1641
      %v1643 = vpop.xlane.xlu0 %1642
      %v1644 = vsel %vm408, %v1407, 0.0
      %1645 = vadd.xlane.f32.xlu0 %v1644
      %v1646 = vpop.xlane.xlu0 %1645
      %v1647 = vsel %vm408, %v1410, 0.0
      %1648 = vadd.xlane.f32.xlu0 %v1647
      %v1649 = vpop.xlane.xlu0 %1648
      %v1650 = vsel %vm408, %v1412, 0.0
      %1651 = vadd.xlane.f32.xlu0 %v1650
      %v1652 = vpop.xlane.xlu0 %1651
      %v1653 = vsel %vm408, %v1415, 0.0
      %1654 = vadd.xlane.f32.xlu0 %v1653
      %v1655 = vpop.xlane.xlu0 %1654
      %v1656 = vsel %vm408, %v1417, 0.0
      %1657 = vadd.xlane.f32.xlu0 %v1656
      %v1658 = vpop.xlane.xlu0 %1657
      %v1659 = vsel %vm408, %v1420, 0.0
      %1660 = vadd.xlane.f32.xlu0 %v1659
      %v1661 = vpop.xlane.xlu0 %1660
      %v1662 = vsel %vm408, %v1422, 0.0
      %1663 = vadd.xlane.f32.xlu0 %v1662
      %v1664 = vpop.xlane.xlu0 %1663
      %v1665 = vsel %vm408, %v1425, 0.0
      %1666 = vadd.xlane.f32.xlu0 %v1665
      %v1667 = vpop.xlane.xlu0 %1666
      %v1668 = vsel %vm408, %v1427, 0.0
      %1669 = vadd.xlane.f32.xlu0 %v1668
      %v1670 = vpop.xlane.xlu0 %1669
      %v1671 = vsel %vm408, %v1430, 0.0
      %1672 = vadd.xlane.f32.xlu0 %v1671
      %v1673 = vpop.xlane.xlu0 %1672
      %v1674 = vsel %vm408, %v1432, 0.0
      %1675 = vadd.xlane.f32.xlu0 %v1674
      %v1676 = vpop.xlane.xlu0 %1675
      %v1677 = vsel %vm408, %v1435, 0.0
      %1678 = vadd.xlane.f32.xlu0 %v1677
      %v1679 = vpop.xlane.xlu0 %1678
      %v1680 = vsel %vm408, %v1437, 0.0
      %1681 = vadd.xlane.f32.xlu0 %v1680
      %v1682 = vpop.xlane.xlu0 %1681
      %v1683 = vsel %vm408, %v1440, 0.0
      %1684 = vadd.xlane.f32.xlu0 %v1683
      %v1685 = vpop.xlane.xlu0 %1684
      %v1686 = vsel %vm408, %v1442, 0.0
      %1687 = vadd.xlane.f32.xlu0 %v1686
      %v1688 = vpop.xlane.xlu0 %1687
      %v1689 = vsel %vm408, %v1445, 0.0
      %1690 = vadd.xlane.f32.xlu0 %v1689
      %v1691 = vpop.xlane.xlu0 %1690
      %v1692 = vsel %vm408, %v1447, 0.0
      %1693 = vadd.xlane.f32.xlu0 %v1692
      %v1694 = vpop.xlane.xlu0 %1693
      %v1695 = vsel %vm408, %v1450, 0.0
      %1696 = vadd.xlane.f32.xlu0 %v1695
      %v1697 = vpop.xlane.xlu0 %1696
      %v1698 = vsel %vm408, %v1452, 0.0
      %1699 = vadd.xlane.f32.xlu0 %v1698
      %v1700 = vpop.xlane.xlu0 %1699
      %v1701 = vsel %vm408, %v1455, 0.0
      %1702 = vadd.xlane.f32.xlu0 %v1701
      %v1703 = vpop.xlane.xlu0 %1702
      %v1704 = vsel %vm408, %v1457, 0.0
      %1705 = vadd.xlane.f32.xlu0 %v1704
      %v1706 = vpop.xlane.xlu0 %1705
      %v1707 = vsel %vm408, %v1460, 0.0
      %1708 = vadd.xlane.f32.xlu0 %v1707
      %v1709 = vpop.xlane.xlu0 %1708
      %v1710 = vsel %vm408, %v1462, 0.0
      %1711 = vadd.xlane.f32.xlu0 %v1710
      %v1712 = vpop.xlane.xlu0 %1711
      %v1713 = vsel %vm408, %v1465, 0.0
      %1714 = vadd.xlane.f32.xlu0 %v1713
      %v1715 = vpop.xlane.xlu0 %1714
      %v1716 = vsel %vm408, %v1467, 0.0
      %1717 = vadd.xlane.f32.xlu0 %v1716
      %v1718 = vpop.xlane.xlu0 %1717
      %v1719 = vsel %vm408, %v1470, 0.0
      %1720 = vadd.xlane.f32.xlu0 %v1719
      %v1721 = vpop.xlane.xlu0 %1720
      %v1722 = vsel %vm408, %v1472, 0.0
      %1723 = vadd.xlane.f32.xlu0 %v1722
      %v1724 = vpop.xlane.xlu0 %1723
      %v1725 = vmul.f32 %v1631, %v1576
      %v1726 = vmul.f32 %v1634, %v1576
      %v1727 = vmul.f32 %v1637, %v1576
      %v1728 = vmul.f32 %v1640, %v1576
      %v1729 = vmul.f32 %v1643, %v1576
      %v1730 = vmul.f32 %v1646, %v1576
      %v1731 = vmul.f32 %v1649, %v1576
      %v1732 = vmul.f32 %v1652, %v1576
      %v1733 = vmul.f32 %v1655, %v1576
      %v1734 = vmul.f32 %v1658, %v1576
      %v1735 = vmul.f32 %v1661, %v1576
      %v1736 = vmul.f32 %v1664, %v1576
      %v1737 = vmul.f32 %v1667, %v1576
      %v1738 = vmul.f32 %v1670, %v1576
      %v1739 = vmul.f32 %v1673, %v1576
      %v1740 = vmul.f32 %v1676, %v1576
      %v1741 = vmul.f32 %v1679, %v1576
      %v1742 = vmul.f32 %v1682, %v1576
      %v1743 = vmul.f32 %v1685, %v1576
      %v1744 = vmul.f32 %v1688, %v1576
      %v1745 = vmul.f32 %v1691, %v1576
      %v1746 = vmul.f32 %v1694, %v1576
      %v1747 = vmul.f32 %v1697, %v1576
      %v1748 = vmul.f32 %v1700, %v1576
      %v1749 = vmul.f32 %v1703, %v1576
      %v1750 = vmul.f32 %v1706, %v1576
      %v1751 = vmul.f32 %v1709, %v1576
      %v1752 = vmul.f32 %v1712, %v1576
      %v1753 = vmul.f32 %v1715, %v1576
      %v1754 = vmul.f32 %v1718, %v1576
      %v1755 = vmul.f32 %v1721, %v1576
      %v1756 = vmul.f32 %v1724, %v1576
      %v1757 = vsub.f32 %v1395, %v1725
      %v1758 = vsub.f32 %v1397, %v1726
      %v1759 = vsub.f32 %v1400, %v1727
      %v1760 = vsub.f32 %v1402, %v1728
      %v1761 = vsub.f32 %v1405, %v1729
      %v1762 = vsub.f32 %v1407, %v1730
      %v1763 = vsub.f32 %v1410, %v1731
      %v1764 = vsub.f32 %v1412, %v1732
      %v1765 = vsub.f32 %v1415, %v1733
      %v1766 = vsub.f32 %v1417, %v1734
      %v1767 = vsub.f32 %v1420, %v1735
      %v1768 = vsub.f32 %v1422, %v1736
      %v1769 = vsub.f32 %v1425, %v1737
      %v1770 = vsub.f32 %v1427, %v1738
      %v1771 = vsub.f32 %v1430, %v1739
      %v1772 = vsub.f32 %v1432, %v1740
      %v1773 = vsub.f32 %v1435, %v1741
      %v1774 = vsub.f32 %v1437, %v1742
      %v1775 = vsub.f32 %v1440, %v1743
      %v1776 = vsub.f32 %v1442, %v1744
      %v1777 = vsub.f32 %v1445, %v1745
      %v1778 = vsub.f32 %v1447, %v1746
      %v1779 = vsub.f32 %v1450, %v1747
      %v1780 = vsub.f32 %v1452, %v1748
      %v1781 = vsub.f32 %v1455, %v1749
      %v1782 = vsub.f32 %v1457, %v1750
      %v1783 = vsub.f32 %v1460, %v1751
      %v1784 = vsub.f32 %v1462, %v1752
      %v1785 = vsub.f32 %v1465, %v1753
      %v1786 = vsub.f32 %v1467, %v1754
      %v1787 = vsub.f32 %v1470, %v1755
      %v1788 = vsub.f32 %v1472, %v1756
      %v1789 = vmul.f32 %v1757, %v1757
      %v1790 = vmul.f32 %v1758, %v1758
      %v1791 = vmul.f32 %v1759, %v1759
      %v1792 = vmul.f32 %v1760, %v1760
      %v1793 = vmul.f32 %v1761, %v1761
      %v1794 = vmul.f32 %v1762, %v1762
      %v1795 = vmul.f32 %v1763, %v1763
      %v1796 = vmul.f32 %v1764, %v1764
      %v1797 = vmul.f32 %v1765, %v1765
      %v1798 = vmul.f32 %v1766, %v1766
      %v1799 = vmul.f32 %v1767, %v1767
      %v1800 = vmul.f32 %v1768, %v1768
      %v1801 = vmul.f32 %v1769, %v1769
      %v1802 = vmul.f32 %v1770, %v1770
      %v1803 = vmul.f32 %v1771, %v1771
      %v1804 = vmul.f32 %v1772, %v1772
      %v1805 = vmul.f32 %v1773, %v1773
      %v1806 = vmul.f32 %v1774, %v1774
      %v1807 = vmul.f32 %v1775, %v1775
      %v1808 = vmul.f32 %v1776, %v1776
      %v1809 = vmul.f32 %v1777, %v1777
      %v1810 = vmul.f32 %v1778, %v1778
      %v1811 = vmul.f32 %v1779, %v1779
      %v1812 = vmul.f32 %v1780, %v1780
      %v1813 = vmul.f32 %v1781, %v1781
      %v1814 = vmul.f32 %v1782, %v1782
      %v1815 = vmul.f32 %v1783, %v1783
      %v1816 = vmul.f32 %v1784, %v1784
      %v1817 = vmul.f32 %v1785, %v1785
      %v1818 = vmul.f32 %v1786, %v1786
      %v1819 = vmul.f32 %v1787, %v1787
      %v1820 = vmul.f32 %v1788, %v1788
      %v1821 = vsel %vm408, %v1789, 0.0
      %1822 = vadd.xlane.f32.xlu0 %v1821
      %v1823 = vpop.xlane.xlu0 %1822
      %v1824 = vsel %vm408, %v1790, 0.0
      %1825 = vadd.xlane.f32.xlu0 %v1824
      %v1826 = vpop.xlane.xlu0 %1825
      %v1827 = vsel %vm408, %v1791, 0.0
      %1828 = vadd.xlane.f32.xlu0 %v1827
      %v1829 = vpop.xlane.xlu0 %1828
      %v1830 = vsel %vm408, %v1792, 0.0
      %1831 = vadd.xlane.f32.xlu0 %v1830
      %v1832 = vpop.xlane.xlu0 %1831
      %v1833 = vsel %vm408, %v1793, 0.0
      %1834 = vadd.xlane.f32.xlu0 %v1833
      %v1835 = vpop.xlane.xlu0 %1834
      %v1836 = vsel %vm408, %v1794, 0.0
      %1837 = vadd.xlane.f32.xlu0 %v1836
      %v1838 = vpop.xlane.xlu0 %1837
      %v1839 = vsel %vm408, %v1795, 0.0
      %1840 = vadd.xlane.f32.xlu0 %v1839
      %v1841 = vpop.xlane.xlu0 %1840
      %v1842 = vsel %vm408, %v1796, 0.0
      %1843 = vadd.xlane.f32.xlu0 %v1842
      %v1844 = vpop.xlane.xlu0 %1843
      %v1845 = vsel %vm408, %v1797, 0.0
      %1846 = vadd.xlane.f32.xlu0 %v1845
      %v1847 = vpop.xlane.xlu0 %1846
      %v1848 = vsel %vm408, %v1798, 0.0
      %1849 = vadd.xlane.f32.xlu0 %v1848
      %v1850 = vpop.xlane.xlu0 %1849
      %v1851 = vsel %vm408, %v1799, 0.0
      %1852 = vadd.xlane.f32.xlu0 %v1851
      %v1853 = vpop.xlane.xlu0 %1852
      %v1854 = vsel %vm408, %v1800, 0.0
      %1855 = vadd.xlane.f32.xlu0 %v1854
      %v1856 = vpop.xlane.xlu0 %1855
      %v1857 = vsel %vm408, %v1801, 0.0
      %1858 = vadd.xlane.f32.xlu0 %v1857
      %v1859 = vpop.xlane.xlu0 %1858
      %v1860 = vsel %vm408, %v1802, 0.0
      %1861 = vadd.xlane.f32.xlu0 %v1860
      %v1862 = vpop.xlane.xlu0 %1861
      %v1863 = vsel %vm408, %v1803, 0.0
      %1864 = vadd.xlane.f32.xlu0 %v1863
      %v1865 = vpop.xlane.xlu0 %1864
      %v1866 = vsel %vm408, %v1804, 0.0
      %1867 = vadd.xlane.f32.xlu0 %v1866
      %v1868 = vpop.xlane.xlu0 %1867
      %v1869 = vsel %vm408, %v1805, 0.0
      %1870 = vadd.xlane.f32.xlu0 %v1869
      %v1871 = vpop.xlane.xlu0 %1870
      %v1872 = vsel %vm408, %v1806, 0.0
      %1873 = vadd.xlane.f32.xlu0 %v1872
      %v1874 = vpop.xlane.xlu0 %1873
      %v1875 = vsel %vm408, %v1807, 0.0
      %1876 = vadd.xlane.f32.xlu0 %v1875
      %v1877 = vpop.xlane.xlu0 %1876
      %v1878 = vsel %vm408, %v1808, 0.0
      %1879 = vadd.xlane.f32.xlu0 %v1878
      %v1880 = vpop.xlane.xlu0 %1879
      %v1881 = vsel %vm408, %v1809, 0.0
      %1882 = vadd.xlane.f32.xlu0 %v1881
      %v1883 = vpop.xlane.xlu0 %1882
      %v1884 = vsel %vm408, %v1810, 0.0
      %1885 = vadd.xlane.f32.xlu0 %v1884
      %v1886 = vpop.xlane.xlu0 %1885
      %v1887 = vsel %vm408, %v1811, 0.0
      %1888 = vadd.xlane.f32.xlu0 %v1887
      %v1889 = vpop.xlane.xlu0 %1888
      %v1890 = vsel %vm408, %v1812, 0.0
      %1891 = vadd.xlane.f32.xlu0 %v1890
      %v1892 = vpop.xlane.xlu0 %1891
      %v1893 = vsel %vm408, %v1813, 0.0
      %1894 = vadd.xlane.f32.xlu0 %v1893
      %v1895 = vpop.xlane.xlu0 %1894
      %v1896 = vsel %vm408, %v1814, 0.0
      %1897 = vadd.xlane.f32.xlu0 %v1896
      %v1898 = vpop.xlane.xlu0 %1897
      %v1899 = vsel %vm408, %v1815, 0.0
      %1900 = vadd.xlane.f32.xlu0 %v1899
      %v1901 = vpop.xlane.xlu0 %1900
      %v1902 = vsel %vm408, %v1816, 0.0
      %1903 = vadd.xlane.f32.xlu0 %v1902
      %v1904 = vpop.xlane.xlu0 %1903
      %v1905 = vsel %vm408, %v1817, 0.0
      %1906 = vadd.xlane.f32.xlu0 %v1905
      %v1907 = vpop.xlane.xlu0 %1906
      %v1908 = vsel %vm408, %v1818, 0.0
      %1909 = vadd.xlane.f32.xlu0 %v1908
      %v1910 = vpop.xlane.xlu0 %1909
      %v1911 = vsel %vm408, %v1819, 0.0
      %1912 = vadd.xlane.f32.xlu0 %v1911
      %v1913 = vpop.xlane.xlu0 %1912
      %v1914 = vsel %vm408, %v1820, 0.0
      %1915 = vadd.xlane.f32.xlu0 %v1914
      %v1916 = vpop.xlane.xlu0 %1915
      %v1917 = vmul.f32 %v1823, %v1576
      %v1918 = vmul.f32 %v1826, %v1576
      %v1919 = vmul.f32 %v1829, %v1576
      %v1920 = vmul.f32 %v1832, %v1576
      %v1921 = vmul.f32 %v1835, %v1576
      %v1922 = vmul.f32 %v1838, %v1576
      %v1923 = vmul.f32 %v1841, %v1576
      %v1924 = vmul.f32 %v1844, %v1576
      %v1925 = vmul.f32 %v1847, %v1576
      %v1926 = vmul.f32 %v1850, %v1576
      %v1927 = vmul.f32 %v1853, %v1576
      %v1928 = vmul.f32 %v1856, %v1576
      %v1929 = vmul.f32 %v1859, %v1576
      %v1930 = vmul.f32 %v1862, %v1576
      %v1931 = vmul.f32 %v1865, %v1576
      %v1932 = vmul.f32 %v1868, %v1576
      %v1933 = vmul.f32 %v1871, %v1576
      %v1934 = vmul.f32 %v1874, %v1576
      %v1935 = vmul.f32 %v1877, %v1576
      %v1936 = vmul.f32 %v1880, %v1576
      %v1937 = vmul.f32 %v1883, %v1576
      %v1938 = vmul.f32 %v1886, %v1576
      %v1939 = vmul.f32 %v1889, %v1576
      %v1940 = vmul.f32 %v1892, %v1576
      %v1941 = vmul.f32 %v1895, %v1576
      %v1942 = vmul.f32 %v1898, %v1576
      %v1943 = vmul.f32 %v1901, %v1576
      %v1944 = vmul.f32 %v1904, %v1576
      %v1945 = vmul.f32 %v1907, %v1576
      %v1946 = vmul.f32 %v1910, %v1576
      %v1947 = vmul.f32 %v1913, %v1576
      %v1948 = vmul.f32 %v1916, %v1576
      %v1949 = vadd.f32 %v1917, 1e-05
      %v1950 = vadd.f32 %v1918, 1e-05
      %v1951 = vadd.f32 %v1919, 1e-05
      %v1952 = vadd.f32 %v1920, 1e-05
      %v1953 = vadd.f32 %v1921, 1e-05
      %v1954 = vadd.f32 %v1922, 1e-05
      %v1955 = vadd.f32 %v1923, 1e-05
      %v1956 = vadd.f32 %v1924, 1e-05
      %v1957 = vadd.f32 %v1925, 1e-05
      %v1958 = vadd.f32 %v1926, 1e-05
      %v1959 = vadd.f32 %v1927, 1e-05
      %v1960 = vadd.f32 %v1928, 1e-05
      %v1961 = vadd.f32 %v1929, 1e-05
      %v1962 = vadd.f32 %v1930, 1e-05
      %v1963 = vadd.f32 %v1931, 1e-05
      %v1964 = vadd.f32 %v1932, 1e-05
      %v1965 = vadd.f32 %v1933, 1e-05
      %v1966 = vadd.f32 %v1934, 1e-05
      %v1967 = vadd.f32 %v1935, 1e-05
      %v1968 = vadd.f32 %v1936, 1e-05
      %v1969 = vadd.f32 %v1937, 1e-05
      %v1970 = vadd.f32 %v1938, 1e-05
      %v1971 = vadd.f32 %v1939, 1e-05
      %v1972 = vadd.f32 %v1940, 1e-05
      %v1973 = vadd.f32 %v1941, 1e-05
      %v1974 = vadd.f32 %v1942, 1e-05
      %v1975 = vadd.f32 %v1943, 1e-05
      %v1976 = vadd.f32 %v1944, 1e-05
      %v1977 = vadd.f32 %v1945, 1e-05
      %v1978 = vadd.f32 %v1946, 1e-05
      %v1979 = vadd.f32 %v1947, 1e-05
      %v1980 = vadd.f32 %v1948, 1e-05
      %v1981 = vrsqrt.pop %v1949
      %v1982 = vmul.f32 %v1981, %v1949
      %v1983 = vmul.f32 %v1982, %v1981
      %v1984 = vmul.f32 0.5, %v1983
      %v1985 = vsub.f32 1.5, %v1984
      %v1986 = vmul.f32 %v1981, %v1985
      %vm1987 = vweird.f32 %v1949
      %vm1988 = vweird.f32 %v1981
      %vm1989 = vmor %vm1987, %vm1988
      %v1990 = vsel %vm1989, %v1981, %v1986
      %v1991 = vrsqrt.pop %v1950
      %v1992 = vmul.f32 %v1991, %v1950
      %v1993 = vmul.f32 %v1992, %v1991
      %v1994 = vmul.f32 0.5, %v1993
      %v1995 = vsub.f32 1.5, %v1994
      %v1996 = vmul.f32 %v1991, %v1995
      %vm1997 = vweird.f32 %v1950
      %vm1998 = vweird.f32 %v1991
      %vm1999 = vmor %vm1997, %vm1998
      %v2000 = vsel %vm1999, %v1991, %v1996
      %v2001 = vrsqrt.pop %v1951
      %v2002 = vmul.f32 %v2001, %v1951
      %v2003 = vmul.f32 %v2002, %v2001
      %v2004 = vmul.f32 0.5, %v2003
      %v2005 = vsub.f32 1.5, %v2004
      %v2006 = vmul.f32 %v2001, %v2005
      %vm2007 = vweird.f32 %v1951
      %vm2008 = vweird.f32 %v2001
      %vm2009 = vmor %vm2007, %vm2008
      %v2010 = vsel %vm2009, %v2001, %v2006
      %v2011 = vrsqrt.pop %v1952
      %v2012 = vmul.f32 %v2011, %v1952
      %v2013 = vmul.f32 %v2012, %v2011
      %v2014 = vmul.f32 0.5, %v2013
      %v2015 = vsub.f32 1.5, %v2014
      %v2016 = vmul.f32 %v2011, %v2015
      %vm2017 = vweird.f32 %v1952
      %vm2018 = vweird.f32 %v2011
      %vm2019 = vmor %vm2017, %vm2018
      %v2020 = vsel %vm2019, %v2011, %v2016
      %v2021 = vrsqrt.pop %v1953
      %v2022 = vmul.f32 %v2021, %v1953
      %v2023 = vmul.f32 %v2022, %v2021
      %v2024 = vmul.f32 0.5, %v2023
      %v2025 = vsub.f32 1.5, %v2024
      %v2026 = vmul.f32 %v2021, %v2025
      %vm2027 = vweird.f32 %v1953
      %vm2028 = vweird.f32 %v2021
      %vm2029 = vmor %vm2027, %vm2028
      %v2030 = vsel %vm2029, %v2021, %v2026
      %v2031 = vrsqrt.pop %v1954
      %v2032 = vmul.f32 %v2031, %v1954
      %v2033 = vmul.f32 %v2032, %v2031
      %v2034 = vmul.f32 0.5, %v2033
      %v2035 = vsub.f32 1.5, %v2034
      %v2036 = vmul.f32 %v2031, %v2035
      %vm2037 = vweird.f32 %v1954
      %vm2038 = vweird.f32 %v2031
      %vm2039 = vmor %vm2037, %vm2038
      %v2040 = vsel %vm2039, %v2031, %v2036
      %v2041 = vrsqrt.pop %v1955
      %v2042 = vmul.f32 %v2041, %v1955
      %v2043 = vmul.f32 %v2042, %v2041
      %v2044 = vmul.f32 0.5, %v2043
      %v2045 = vsub.f32 1.5, %v2044
      %v2046 = vmul.f32 %v2041, %v2045
      %vm2047 = vweird.f32 %v1955
      %vm2048 = vweird.f32 %v2041
      %vm2049 = vmor %vm2047, %vm2048
      %v2050 = vsel %vm2049, %v2041, %v2046
      %v2051 = vrsqrt.pop %v1956
      %v2052 = vmul.f32 %v2051, %v1956
      %v2053 = vmul.f32 %v2052, %v2051
      %v2054 = vmul.f32 0.5, %v2053
      %v2055 = vsub.f32 1.5, %v2054
      %v2056 = vmul.f32 %v2051, %v2055
      %vm2057 = vweird.f32 %v1956
      %vm2058 = vweird.f32 %v2051
      %vm2059 = vmor %vm2057, %vm2058
      %v2060 = vsel %vm2059, %v2051, %v2056
      %v2061 = vrsqrt.pop %v1957
      %v2062 = vmul.f32 %v2061, %v1957
      %v2063 = vmul.f32 %v2062, %v2061
      %v2064 = vmul.f32 0.5, %v2063
      %v2065 = vsub.f32 1.5, %v2064
      %v2066 = vmul.f32 %v2061, %v2065
      %vm2067 = vweird.f32 %v1957
      %vm2068 = vweird.f32 %v2061
      %vm2069 = vmor %vm2067, %vm2068
      %v2070 = vsel %vm2069, %v2061, %v2066
      %v2071 = vrsqrt.pop %v1958
      %v2072 = vmul.f32 %v2071, %v1958
      %v2073 = vmul.f32 %v2072, %v2071
      %v2074 = vmul.f32 0.5, %v2073
      %v2075 = vsub.f32 1.5, %v2074
      %v2076 = vmul.f32 %v2071, %v2075
      %vm2077 = vweird.f32 %v1958
      %vm2078 = vweird.f32 %v2071
      %vm2079 = vmor %vm2077, %vm2078
      %v2080 = vsel %vm2079, %v2071, %v2076
      %v2081 = vrsqrt.pop %v1959
      %v2082 = vmul.f32 %v2081, %v1959
      %v2083 = vmul.f32 %v2082, %v2081
      %v2084 = vmul.f32 0.5, %v2083
      %v2085 = vsub.f32 1.5, %v2084
      %v2086 = vmul.f32 %v2081, %v2085
      %vm2087 = vweird.f32 %v1959
      %vm2088 = vweird.f32 %v2081
      %vm2089 = vmor %vm2087, %vm2088
      %v2090 = vsel %vm2089, %v2081, %v2086
      %v2091 = vrsqrt.pop %v1960
      %v2092 = vmul.f32 %v2091, %v1960
      %v2093 = vmul.f32 %v2092, %v2091
      %v2094 = vmul.f32 0.5, %v2093
      %v2095 = vsub.f32 1.5, %v2094
      %v2096 = vmul.f32 %v2091, %v2095
      %vm2097 = vweird.f32 %v1960
      %vm2098 = vweird.f32 %v2091
      %vm2099 = vmor %vm2097, %vm2098
      %v2100 = vsel %vm2099, %v2091, %v2096
      %v2101 = vrsqrt.pop %v1961
      %v2102 = vmul.f32 %v2101, %v1961
      %v2103 = vmul.f32 %v2102, %v2101
      %v2104 = vmul.f32 0.5, %v2103
      %v2105 = vsub.f32 1.5, %v2104
      %v2106 = vmul.f32 %v2101, %v2105
      %vm2107 = vweird.f32 %v1961
      %vm2108 = vweird.f32 %v2101
      %vm2109 = vmor %vm2107, %vm2108
      %v2110 = vsel %vm2109, %v2101, %v2106
      %v2111 = vrsqrt.pop %v1962
      %v2112 = vmul.f32 %v2111, %v1962
      %v2113 = vmul.f32 %v2112, %v2111
      %v2114 = vmul.f32 0.5, %v2113
      %v2115 = vsub.f32 1.5, %v2114
      %v2116 = vmul.f32 %v2111, %v2115
      %vm2117 = vweird.f32 %v1962
      %vm2118 = vweird.f32 %v2111
      %vm2119 = vmor %vm2117, %vm2118
      %v2120 = vsel %vm2119, %v2111, %v2116
      %v2121 = vrsqrt.pop %v1963
      %v2122 = vmul.f32 %v2121, %v1963
      %v2123 = vmul.f32 %v2122, %v2121
      %v2124 = vmul.f32 0.5, %v2123
      %v2125 = vsub.f32 1.5, %v2124
      %v2126 = vmul.f32 %v2121, %v2125
      %vm2127 = vweird.f32 %v1963
      %vm2128 = vweird.f32 %v2121
      %vm2129 = vmor %vm2127, %vm2128
      %v2130 = vsel %vm2129, %v2121, %v2126
      %v2131 = vrsqrt.pop %v1964
      %v2132 = vmul.f32 %v2131, %v1964
      %v2133 = vmul.f32 %v2132, %v2131
      %v2134 = vmul.f32 0.5, %v2133
      %v2135 = vsub.f32 1.5, %v2134
      %v2136 = vmul.f32 %v2131, %v2135
      %vm2137 = vweird.f32 %v1964
      %vm2138 = vweird.f32 %v2131
      %vm2139 = vmor %vm2137, %vm2138
      %v2140 = vsel %vm2139, %v2131, %v2136
      %v2141 = vrsqrt.pop %v1965
      %v2142 = vmul.f32 %v2141, %v1965
      %v2143 = vmul.f32 %v2142, %v2141
      %v2144 = vmul.f32 0.5, %v2143
      %v2145 = vsub.f32 1.5, %v2144
      %v2146 = vmul.f32 %v2141, %v2145
      %vm2147 = vweird.f32 %v1965
      %vm2148 = vweird.f32 %v2141
      %vm2149 = vmor %vm2147, %vm2148
      %v2150 = vsel %vm2149, %v2141, %v2146
      %v2151 = vrsqrt.pop %v1966
      %v2152 = vmul.f32 %v2151, %v1966
      %v2153 = vmul.f32 %v2152, %v2151
      %v2154 = vmul.f32 0.5, %v2153
      %v2155 = vsub.f32 1.5, %v2154
      %v2156 = vmul.f32 %v2151, %v2155
      %vm2157 = vweird.f32 %v1966
      %vm2158 = vweird.f32 %v2151
      %vm2159 = vmor %vm2157, %vm2158
      %v2160 = vsel %vm2159, %v2151, %v2156
      %v2161 = vrsqrt.pop %v1967
      %v2162 = vmul.f32 %v2161, %v1967
      %v2163 = vmul.f32 %v2162, %v2161
      %v2164 = vmul.f32 0.5, %v2163
      %v2165 = vsub.f32 1.5, %v2164
      %v2166 = vmul.f32 %v2161, %v2165
      %vm2167 = vweird.f32 %v1967
      %vm2168 = vweird.f32 %v2161
      %vm2169 = vmor %vm2167, %vm2168
      %v2170 = vsel %vm2169, %v2161, %v2166
      %v2171 = vrsqrt.pop %v1968
      %v2172 = vmul.f32 %v2171, %v1968
      %v2173 = vmul.f32 %v2172, %v2171
      %v2174 = vmul.f32 0.5, %v2173
      %v2175 = vsub.f32 1.5, %v2174
      %v2176 = vmul.f32 %v2171, %v2175
      %vm2177 = vweird.f32 %v1968
      %vm2178 = vweird.f32 %v2171
      %vm2179 = vmor %vm2177, %vm2178
      %v2180 = vsel %vm2179, %v2171, %v2176
      %v2181 = vrsqrt.pop %v1969
      %v2182 = vmul.f32 %v2181, %v1969
      %v2183 = vmul.f32 %v2182, %v2181
      %v2184 = vmul.f32 0.5, %v2183
      %v2185 = vsub.f32 1.5, %v2184
      %v2186 = vmul.f32 %v2181, %v2185
      %vm2187 = vweird.f32 %v1969
      %vm2188 = vweird.f32 %v2181
      %vm2189 = vmor %vm2187, %vm2188
      %v2190 = vsel %vm2189, %v2181, %v2186
      %v2191 = vrsqrt.pop %v1970
      %v2192 = vmul.f32 %v2191, %v1970
      %v2193 = vmul.f32 %v2192, %v2191
      %v2194 = vmul.f32 0.5, %v2193
      %v2195 = vsub.f32 1.5, %v2194
      %v2196 = vmul.f32 %v2191, %v2195
      %vm2197 = vweird.f32 %v1970
      %vm2198 = vweird.f32 %v2191
      %vm2199 = vmor %vm2197, %vm2198
      %v2200 = vsel %vm2199, %v2191, %v2196
      %v2201 = vrsqrt.pop %v1971
      %v2202 = vmul.f32 %v2201, %v1971
      %v2203 = vmul.f32 %v2202, %v2201
      %v2204 = vmul.f32 0.5, %v2203
      %v2205 = vsub.f32 1.5, %v2204
      %v2206 = vmul.f32 %v2201, %v2205
      %vm2207 = vweird.f32 %v1971
      %vm2208 = vweird.f32 %v2201
      %vm2209 = vmor %vm2207, %vm2208
      %v2210 = vsel %vm2209, %v2201, %v2206
      %v2211 = vrsqrt.pop %v1972
      %v2212 = vmul.f32 %v2211, %v1972
      %v2213 = vmul.f32 %v2212, %v2211
      %v2214 = vmul.f32 0.5, %v2213
      %v2215 = vsub.f32 1.5, %v2214
      %v2216 = vmul.f32 %v2211, %v2215
      %vm2217 = vweird.f32 %v1972
      %vm2218 = vweird.f32 %v2211
      %vm2219 = vmor %vm2217, %vm2218
      %v2220 = vsel %vm2219, %v2211, %v2216
      %v2221 = vrsqrt.pop %v1973
      %v2222 = vmul.f32 %v2221, %v1973
      %v2223 = vmul.f32 %v2222, %v2221
      %v2224 = vmul.f32 0.5, %v2223
      %v2225 = vsub.f32 1.5, %v2224
      %v2226 = vmul.f32 %v2221, %v2225
      %vm2227 = vweird.f32 %v1973
      %vm2228 = vweird.f32 %v2221
      %vm2229 = vmor %vm2227, %vm2228
      %v2230 = vsel %vm2229, %v2221, %v2226
      %v2231 = vrsqrt.pop %v1974
      %v2232 = vmul.f32 %v2231, %v1974
      %v2233 = vmul.f32 %v2232, %v2231
      %v2234 = vmul.f32 0.5, %v2233
      %v2235 = vsub.f32 1.5, %v2234
      %v2236 = vmul.f32 %v2231, %v2235
      %vm2237 = vweird.f32 %v1974
      %vm2238 = vweird.f32 %v2231
      %vm2239 = vmor %vm2237, %vm2238
      %v2240 = vsel %vm2239, %v2231, %v2236
      %v2241 = vrsqrt.pop %v1975
      %v2242 = vmul.f32 %v2241, %v1975
      %v2243 = vmul.f32 %v2242, %v2241
      %v2244 = vmul.f32 0.5, %v2243
      %v2245 = vsub.f32 1.5, %v2244
      %v2246 = vmul.f32 %v2241, %v2245
      %vm2247 = vweird.f32 %v1975
      %vm2248 = vweird.f32 %v2241
      %vm2249 = vmor %vm2247, %vm2248
      %v2250 = vsel %vm2249, %v2241, %v2246
      %v2251 = vrsqrt.pop %v1976
      %v2252 = vmul.f32 %v2251, %v1976
      %v2253 = vmul.f32 %v2252, %v2251
      %v2254 = vmul.f32 0.5, %v2253
      %v2255 = vsub.f32 1.5, %v2254
      %v2256 = vmul.f32 %v2251, %v2255
      %vm2257 = vweird.f32 %v1976
      %vm2258 = vweird.f32 %v2251
      %vm2259 = vmor %vm2257, %vm2258
      %v2260 = vsel %vm2259, %v2251, %v2256
      %v2261 = vrsqrt.pop %v1977
      %v2262 = vmul.f32 %v2261, %v1977
      %v2263 = vmul.f32 %v2262, %v2261
      %v2264 = vmul.f32 0.5, %v2263
      %v2265 = vsub.f32 1.5, %v2264
      %v2266 = vmul.f32 %v2261, %v2265
      %vm2267 = vweird.f32 %v1977
      %vm2268 = vweird.f32 %v2261
      %vm2269 = vmor %vm2267, %vm2268
      %v2270 = vsel %vm2269, %v2261, %v2266
      %v2271 = vrsqrt.pop %v1978
      %v2272 = vmul.f32 %v2271, %v1978
      %v2273 = vmul.f32 %v2272, %v2271
      %v2274 = vmul.f32 0.5, %v2273
      %v2275 = vsub.f32 1.5, %v2274
      %v2276 = vmul.f32 %v2271, %v2275
      %vm2277 = vweird.f32 %v1978
      %vm2278 = vweird.f32 %v2271
      %vm2279 = vmor %vm2277, %vm2278
      %v2280 = vsel %vm2279, %v2271, %v2276
      %v2281 = vrsqrt.pop %v1979
      %v2282 = vmul.f32 %v2281, %v1979
      %v2283 = vmul.f32 %v2282, %v2281
      %v2284 = vmul.f32 0.5, %v2283
      %v2285 = vsub.f32 1.5, %v2284
      %v2286 = vmul.f32 %v2281, %v2285
      %vm2287 = vweird.f32 %v1979
      %vm2288 = vweird.f32 %v2281
      %vm2289 = vmor %vm2287, %vm2288
      %v2290 = vsel %vm2289, %v2281, %v2286
      %v2291 = vrsqrt.pop %v1980
      %v2292 = vmul.f32 %v2291, %v1980
      %v2293 = vmul.f32 %v2292, %v2291
      %v2294 = vmul.f32 0.5, %v2293
      %v2295 = vsub.f32 1.5, %v2294
      %v2296 = vmul.f32 %v2291, %v2295
      %vm2297 = vweird.f32 %v1980
      %vm2298 = vweird.f32 %v2291
      %vm2299 = vmor %vm2297, %vm2298
      %v2300 = vsel %vm2299, %v2291, %v2296
      %v2301 = vmul.f32 %v1757, %v1990
      %v2302 = vmul.f32 %v1758, %v2000
      %v2303 = vmul.f32 %v1759, %v2010
      %v2304 = vmul.f32 %v1760, %v2020
      %v2305 = vmul.f32 %v1761, %v2030
      %v2306 = vmul.f32 %v1762, %v2040
      %v2307 = vmul.f32 %v1763, %v2050
      %v2308 = vmul.f32 %v1764, %v2060
      %v2309 = vmul.f32 %v1765, %v2070
      %v2310 = vmul.f32 %v1766, %v2080
      %v2311 = vmul.f32 %v1767, %v2090
      %v2312 = vmul.f32 %v1768, %v2100
      %v2313 = vmul.f32 %v1769, %v2110
      %v2314 = vmul.f32 %v1770, %v2120
      %v2315 = vmul.f32 %v1771, %v2130
      %v2316 = vmul.f32 %v1772, %v2140
      %v2317 = vmul.f32 %v1773, %v2150
      %v2318 = vmul.f32 %v1774, %v2160
      %v2319 = vmul.f32 %v1775, %v2170
      %v2320 = vmul.f32 %v1776, %v2180
      %v2321 = vmul.f32 %v1777, %v2190
      %v2322 = vmul.f32 %v1778, %v2200
      %v2323 = vmul.f32 %v1779, %v2210
      %v2324 = vmul.f32 %v1780, %v2220
      %v2325 = vmul.f32 %v1781, %v2230
      %v2326 = vmul.f32 %v1782, %v2240
      %v2327 = vmul.f32 %v1783, %v2250
      %v2328 = vmul.f32 %v1784, %v2260
      %v2329 = vmul.f32 %v1785, %v2270
      %v2330 = vmul.f32 %v1786, %v2280
      %v2331 = vmul.f32 %v1787, %v2290
      %v2332 = vmul.f32 %v1788, %v2300
      %v2334 = vperm.slane %v294, 0
      %v2336 = vmul.f32 %v2301, %v2334
      %v2337 = vmul.f32 %v2302, %v2334
      %v2338 = vmul.f32 %v2303, %v2334
      %v2339 = vmul.f32 %v2304, %v2334
      %v2340 = vmul.f32 %v2305, %v2334
      %v2341 = vmul.f32 %v2306, %v2334
      %v2342 = vmul.f32 %v2307, %v2334
      %v2343 = vmul.f32 %v2308, %v2334
      %v2344 = vmul.f32 %v2309, %v2334
      %v2345 = vmul.f32 %v2310, %v2334
      %v2346 = vmul.f32 %v2311, %v2334
      %v2347 = vmul.f32 %v2312, %v2334
      %v2348 = vmul.f32 %v2313, %v2334
      %v2349 = vmul.f32 %v2314, %v2334
      %v2350 = vmul.f32 %v2315, %v2334
      %v2351 = vmul.f32 %v2316, %v2334
      %v2352 = vmul.f32 %v2317, %v2334
      %v2353 = vmul.f32 %v2318, %v2334
      %v2354 = vmul.f32 %v2319, %v2334
      %v2355 = vmul.f32 %v2320, %v2334
      %v2356 = vmul.f32 %v2321, %v2334
      %v2357 = vmul.f32 %v2322, %v2334
      %v2358 = vmul.f32 %v2323, %v2334
      %v2359 = vmul.f32 %v2324, %v2334
      %v2360 = vmul.f32 %v2325, %v2334
      %v2361 = vmul.f32 %v2326, %v2334
      %v2362 = vmul.f32 %v2327, %v2334
      %v2363 = vmul.f32 %v2328, %v2334
      %v2364 = vmul.f32 %v2329, %v2334
      %v2365 = vmul.f32 %v2330, %v2334
      %v2366 = vmul.f32 %v2331, %v2334
      %v2367 = vmul.f32 %v2332, %v2334
      %v2369 = vperm.slane %v295, 0
      %v2371 = vadd.f32 %v2336, %v2369
      %v2372 = vadd.f32 %v2337, %v2369
      %v2373 = vadd.f32 %v2338, %v2369
      %v2374 = vadd.f32 %v2339, %v2369
      %v2375 = vadd.f32 %v2340, %v2369
      %v2376 = vadd.f32 %v2341, %v2369
      %v2377 = vadd.f32 %v2342, %v2369
      %v2378 = vadd.f32 %v2343, %v2369
      %v2379 = vadd.f32 %v2344, %v2369
      %v2380 = vadd.f32 %v2345, %v2369
      %v2381 = vadd.f32 %v2346, %v2369
      %v2382 = vadd.f32 %v2347, %v2369
      %v2383 = vadd.f32 %v2348, %v2369
      %v2384 = vadd.f32 %v2349, %v2369
      %v2385 = vadd.f32 %v2350, %v2369
      %v2386 = vadd.f32 %v2351, %v2369
      %v2387 = vadd.f32 %v2352, %v2369
      %v2388 = vadd.f32 %v2353, %v2369
      %v2389 = vadd.f32 %v2354, %v2369
      %v2390 = vadd.f32 %v2355, %v2369
      %v2391 = vadd.f32 %v2356, %v2369
      %v2392 = vadd.f32 %v2357, %v2369
      %v2393 = vadd.f32 %v2358, %v2369
      %v2394 = vadd.f32 %v2359, %v2369
      %v2395 = vadd.f32 %v2360, %v2369
      %v2396 = vadd.f32 %v2361, %v2369
      %v2397 = vadd.f32 %v2362, %v2369
      %v2398 = vadd.f32 %v2363, %v2369
      %v2399 = vadd.f32 %v2364, %v2369
      %v2400 = vadd.f32 %v2365, %v2369
      %v2401 = vadd.f32 %v2366, %v2369
      %v2402 = vadd.f32 %v2367, %v2369
      %v2403 = vsel %vm408, %v1487, 0.0
      %2404 = vadd.xlane.f32.xlu0 %v2403
      %v2405 = vpop.xlane.xlu0 %2404
      %v2406 = vsel %vm408, %v1489, 0.0
      %2407 = vadd.xlane.f32.xlu0 %v2406
      %v2408 = vpop.xlane.xlu0 %2407
      %v2409 = vsel %vm408, %v1492, 0.0
      %2410 = vadd.xlane.f32.xlu0 %v2409
      %v2411 = vpop.xlane.xlu0 %2410
      %v2412 = vsel %vm408, %v1494, 0.0
      %2413 = vadd.xlane.f32.xlu0 %v2412
      %v2414 = vpop.xlane.xlu0 %2413
      %v2415 = vsel %vm408, %v1497, 0.0
      %2416 = vadd.xlane.f32.xlu0 %v2415
      %v2417 = vpop.xlane.xlu0 %2416
      %v2418 = vsel %vm408, %v1499, 0.0
      %2419 = vadd.xlane.f32.xlu0 %v2418
      %v2420 = vpop.xlane.xlu0 %2419
      %v2421 = vsel %vm408, %v1502, 0.0
      %2422 = vadd.xlane.f32.xlu0 %v2421
      %v2423 = vpop.xlane.xlu0 %2422
      %v2424 = vsel %vm408, %v1504, 0.0
      %2425 = vadd.xlane.f32.xlu0 %v2424
      %v2426 = vpop.xlane.xlu0 %2425
      %v2427 = vsel %vm408, %v1507, 0.0
      %2428 = vadd.xlane.f32.xlu0 %v2427
      %v2429 = vpop.xlane.xlu0 %2428
      %v2430 = vsel %vm408, %v1509, 0.0
      %2431 = vadd.xlane.f32.xlu0 %v2430
      %v2432 = vpop.xlane.xlu0 %2431
      %v2433 = vsel %vm408, %v1512, 0.0
      %2434 = vadd.xlane.f32.xlu0 %v2433
      %v2435 = vpop.xlane.xlu0 %2434
      %v2436 = vsel %vm408, %v1514, 0.0
      %2437 = vadd.xlane.f32.xlu0 %v2436
      %v2438 = vpop.xlane.xlu0 %2437
      %v2439 = vsel %vm408, %v1517, 0.0
      %2440 = vadd.xlane.f32.xlu0 %v2439
      %v2441 = vpop.xlane.xlu0 %2440
      %v2442 = vsel %vm408, %v1519, 0.0
      %2443 = vadd.xlane.f32.xlu0 %v2442
      %v2444 = vpop.xlane.xlu0 %2443
      %v2445 = vsel %vm408, %v1522, 0.0
      %2446 = vadd.xlane.f32.xlu0 %v2445
      %v2447 = vpop.xlane.xlu0 %2446
      %v2448 = vsel %vm408, %v1524, 0.0
      %2449 = vadd.xlane.f32.xlu0 %v2448
      %v2450 = vpop.xlane.xlu0 %2449
      %v2451 = vsel %vm408, %v1527, 0.0
      %2452 = vadd.xlane.f32.xlu0 %v2451
      %v2453 = vpop.xlane.xlu0 %2452
      %v2454 = vsel %vm408, %v1529, 0.0
      %2455 = vadd.xlane.f32.xlu0 %v2454
      %v2456 = vpop.xlane.xlu0 %2455
      %v2457 = vsel %vm408, %v1532, 0.0
      %2458 = vadd.xlane.f32.xlu0 %v2457
      %v2459 = vpop.xlane.xlu0 %2458
      %v2460 = vsel %vm408, %v1534, 0.0
      %2461 = vadd.xlane.f32.xlu0 %v2460
      %v2462 = vpop.xlane.xlu0 %2461
      %v2463 = vsel %vm408, %v1537, 0.0
      %2464 = vadd.xlane.f32.xlu0 %v2463
      %v2465 = vpop.xlane.xlu0 %2464
      %v2466 = vsel %vm408, %v1539, 0.0
      %2467 = vadd.xlane.f32.xlu0 %v2466
      %v2468 = vpop.xlane.xlu0 %2467
      %v2469 = vsel %vm408, %v1542, 0.0
      %2470 = vadd.xlane.f32.xlu0 %v2469
      %v2471 = vpop.xlane.xlu0 %2470
      %v2472 = vsel %vm408, %v1544, 0.0
      %2473 = vadd.xlane.f32.xlu0 %v2472
      %v2474 = vpop.xlane.xlu0 %2473
      %v2475 = vsel %vm408, %v1547, 0.0
      %2476 = vadd.xlane.f32.xlu0 %v2475
      %v2477 = vpop.xlane.xlu0 %2476
      %v2478 = vsel %vm408, %v1549, 0.0
      %2479 = vadd.xlane.f32.xlu0 %v2478
      %v2480 = vpop.xlane.xlu0 %2479
      %v2481 = vsel %vm408, %v1552, 0.0
      %2482 = vadd.xlane.f32.xlu0 %v2481
      %v2483 = vpop.xlane.xlu0 %2482
      %v2484 = vsel %vm408, %v1554, 0.0
      %2485 = vadd.xlane.f32.xlu0 %v2484
      %v2486 = vpop.xlane.xlu0 %2485
      %v2487 = vsel %vm408, %v1557, 0.0
      %2488 = vadd.xlane.f32.xlu0 %v2487
      %v2489 = vpop.xlane.xlu0 %2488
      %v2490 = vsel %vm408, %v1559, 0.0
      %2491 = vadd.xlane.f32.xlu0 %v2490
      %v2492 = vpop.xlane.xlu0 %2491
      %v2493 = vsel %vm408, %v1562, 0.0
      %2494 = vadd.xlane.f32.xlu0 %v2493
      %v2495 = vpop.xlane.xlu0 %2494
      %v2496 = vsel %vm408, %v1564, 0.0
      %2497 = vadd.xlane.f32.xlu0 %v2496
      %v2498 = vpop.xlane.xlu0 %2497
      %v2499 = vmul.f32 %v2405, %v1576
      %v2500 = vmul.f32 %v2408, %v1576
      %v2501 = vmul.f32 %v2411, %v1576
      %v2502 = vmul.f32 %v2414, %v1576
      %v2503 = vmul.f32 %v2417, %v1576
      %v2504 = vmul.f32 %v2420, %v1576
      %v2505 = vmul.f32 %v2423, %v1576
      %v2506 = vmul.f32 %v2426, %v1576
      %v2507 = vmul.f32 %v2429, %v1576
      %v2508 = vmul.f32 %v2432, %v1576
      %v2509 = vmul.f32 %v2435, %v1576
      %v2510 = vmul.f32 %v2438, %v1576
      %v2511 = vmul.f32 %v2441, %v1576
      %v2512 = vmul.f32 %v2444, %v1576
      %v2513 = vmul.f32 %v2447, %v1576
      %v2514 = vmul.f32 %v2450, %v1576
      %v2515 = vmul.f32 %v2453, %v1576
      %v2516 = vmul.f32 %v2456, %v1576
      %v2517 = vmul.f32 %v2459, %v1576
      %v2518 = vmul.f32 %v2462, %v1576
      %v2519 = vmul.f32 %v2465, %v1576
      %v2520 = vmul.f32 %v2468, %v1576
      %v2521 = vmul.f32 %v2471, %v1576
      %v2522 = vmul.f32 %v2474, %v1576
      %v2523 = vmul.f32 %v2477, %v1576
      %v2524 = vmul.f32 %v2480, %v1576
      %v2525 = vmul.f32 %v2483, %v1576
      %v2526 = vmul.f32 %v2486, %v1576
      %v2527 = vmul.f32 %v2489, %v1576
      %v2528 = vmul.f32 %v2492, %v1576
      %v2529 = vmul.f32 %v2495, %v1576
      %v2530 = vmul.f32 %v2498, %v1576
      %v2531 = vsub.f32 %v1487, %v2499
      %v2532 = vsub.f32 %v1489, %v2500
      %v2533 = vsub.f32 %v1492, %v2501
      %v2534 = vsub.f32 %v1494, %v2502
      %v2535 = vsub.f32 %v1497, %v2503
      %v2536 = vsub.f32 %v1499, %v2504
      %v2537 = vsub.f32 %v1502, %v2505
      %v2538 = vsub.f32 %v1504, %v2506
      %v2539 = vsub.f32 %v1507, %v2507
      %v2540 = vsub.f32 %v1509, %v2508
      %v2541 = vsub.f32 %v1512, %v2509
      %v2542 = vsub.f32 %v1514, %v2510
      %v2543 = vsub.f32 %v1517, %v2511
      %v2544 = vsub.f32 %v1519, %v2512
      %v2545 = vsub.f32 %v1522, %v2513
      %v2546 = vsub.f32 %v1524, %v2514
      %v2547 = vsub.f32 %v1527, %v2515
      %v2548 = vsub.f32 %v1529, %v2516
      %v2549 = vsub.f32 %v1532, %v2517
      %v2550 = vsub.f32 %v1534, %v2518
      %v2551 = vsub.f32 %v1537, %v2519
      %v2552 = vsub.f32 %v1539, %v2520
      %v2553 = vsub.f32 %v1542, %v2521
      %v2554 = vsub.f32 %v1544, %v2522
      %v2555 = vsub.f32 %v1547, %v2523
      %v2556 = vsub.f32 %v1549, %v2524
      %v2557 = vsub.f32 %v1552, %v2525
      %v2558 = vsub.f32 %v1554, %v2526
      %v2559 = vsub.f32 %v1557, %v2527
      %v2560 = vsub.f32 %v1559, %v2528
      %v2561 = vsub.f32 %v1562, %v2529
      %v2562 = vsub.f32 %v1564, %v2530
      %v2563 = vmul.f32 %v2531, %v2531
      %v2564 = vmul.f32 %v2532, %v2532
      %v2565 = vmul.f32 %v2533, %v2533
      %v2566 = vmul.f32 %v2534, %v2534
      %v2567 = vmul.f32 %v2535, %v2535
      %v2568 = vmul.f32 %v2536, %v2536
      %v2569 = vmul.f32 %v2537, %v2537
      %v2570 = vmul.f32 %v2538, %v2538
      %v2571 = vmul.f32 %v2539, %v2539
      %v2572 = vmul.f32 %v2540, %v2540
      %v2573 = vmul.f32 %v2541, %v2541
      %v2574 = vmul.f32 %v2542, %v2542
      %v2575 = vmul.f32 %v2543, %v2543
      %v2576 = vmul.f32 %v2544, %v2544
      %v2577 = vmul.f32 %v2545, %v2545
      %v2578 = vmul.f32 %v2546, %v2546
      %v2579 = vmul.f32 %v2547, %v2547
      %v2580 = vmul.f32 %v2548, %v2548
      %v2581 = vmul.f32 %v2549, %v2549
      %v2582 = vmul.f32 %v2550, %v2550
      %v2583 = vmul.f32 %v2551, %v2551
      %v2584 = vmul.f32 %v2552, %v2552
      %v2585 = vmul.f32 %v2553, %v2553
      %v2586 = vmul.f32 %v2554, %v2554
      %v2587 = vmul.f32 %v2555, %v2555
      %v2588 = vmul.f32 %v2556, %v2556
      %v2589 = vmul.f32 %v2557, %v2557
      %v2590 = vmul.f32 %v2558, %v2558
      %v2591 = vmul.f32 %v2559, %v2559
      %v2592 = vmul.f32 %v2560, %v2560
      %v2593 = vmul.f32 %v2561, %v2561
      %v2594 = vmul.f32 %v2562, %v2562
      %v2595 = vsel %vm408, %v2563, 0.0
      %2596 = vadd.xlane.f32.xlu0 %v2595
      %v2597 = vpop.xlane.xlu0 %2596
      %v2598 = vsel %vm408, %v2564, 0.0
      %2599 = vadd.xlane.f32.xlu0 %v2598
      %v2600 = vpop.xlane.xlu0 %2599
      %v2601 = vsel %vm408, %v2565, 0.0
      %2602 = vadd.xlane.f32.xlu0 %v2601
      %v2603 = vpop.xlane.xlu0 %2602
      %v2604 = vsel %vm408, %v2566, 0.0
      %2605 = vadd.xlane.f32.xlu0 %v2604
      %v2606 = vpop.xlane.xlu0 %2605
      %v2607 = vsel %vm408, %v2567, 0.0
      %2608 = vadd.xlane.f32.xlu0 %v2607
      %v2609 = vpop.xlane.xlu0 %2608
      %v2610 = vsel %vm408, %v2568, 0.0
      %2611 = vadd.xlane.f32.xlu0 %v2610
      %v2612 = vpop.xlane.xlu0 %2611
      %v2613 = vsel %vm408, %v2569, 0.0
      %2614 = vadd.xlane.f32.xlu0 %v2613
      %v2615 = vpop.xlane.xlu0 %2614
      %v2616 = vsel %vm408, %v2570, 0.0
      %2617 = vadd.xlane.f32.xlu0 %v2616
      %v2618 = vpop.xlane.xlu0 %2617
      %v2619 = vsel %vm408, %v2571, 0.0
      %2620 = vadd.xlane.f32.xlu0 %v2619
      %v2621 = vpop.xlane.xlu0 %2620
      %v2622 = vsel %vm408, %v2572, 0.0
      %2623 = vadd.xlane.f32.xlu0 %v2622
      %v2624 = vpop.xlane.xlu0 %2623
      %v2625 = vsel %vm408, %v2573, 0.0
      %2626 = vadd.xlane.f32.xlu0 %v2625
      %v2627 = vpop.xlane.xlu0 %2626
      %v2628 = vsel %vm408, %v2574, 0.0
      %2629 = vadd.xlane.f32.xlu0 %v2628
      %v2630 = vpop.xlane.xlu0 %2629
      %v2631 = vsel %vm408, %v2575, 0.0
      %2632 = vadd.xlane.f32.xlu0 %v2631
      %v2633 = vpop.xlane.xlu0 %2632
      %v2634 = vsel %vm408, %v2576, 0.0
      %2635 = vadd.xlane.f32.xlu0 %v2634
      %v2636 = vpop.xlane.xlu0 %2635
      %v2637 = vsel %vm408, %v2577, 0.0
      %2638 = vadd.xlane.f32.xlu0 %v2637
      %v2639 = vpop.xlane.xlu0 %2638
      %v2640 = vsel %vm408, %v2578, 0.0
      %2641 = vadd.xlane.f32.xlu0 %v2640
      %v2642 = vpop.xlane.xlu0 %2641
      %v2643 = vsel %vm408, %v2579, 0.0
      %2644 = vadd.xlane.f32.xlu0 %v2643
      %v2645 = vpop.xlane.xlu0 %2644
      %v2646 = vsel %vm408, %v2580, 0.0
      %2647 = vadd.xlane.f32.xlu0 %v2646
      %v2648 = vpop.xlane.xlu0 %2647
      %v2649 = vsel %vm408, %v2581, 0.0
      %2650 = vadd.xlane.f32.xlu0 %v2649
      %v2651 = vpop.xlane.xlu0 %2650
      %v2652 = vsel %vm408, %v2582, 0.0
      %2653 = vadd.xlane.f32.xlu0 %v2652
      %v2654 = vpop.xlane.xlu0 %2653
      %v2655 = vsel %vm408, %v2583, 0.0
      %2656 = vadd.xlane.f32.xlu0 %v2655
      %v2657 = vpop.xlane.xlu0 %2656
      %v2658 = vsel %vm408, %v2584, 0.0
      %2659 = vadd.xlane.f32.xlu0 %v2658
      %v2660 = vpop.xlane.xlu0 %2659
      %v2661 = vsel %vm408, %v2585, 0.0
      %2662 = vadd.xlane.f32.xlu0 %v2661
      %v2663 = vpop.xlane.xlu0 %2662
      %v2664 = vsel %vm408, %v2586, 0.0
      %2665 = vadd.xlane.f32.xlu0 %v2664
      %v2666 = vpop.xlane.xlu0 %2665
      %v2667 = vsel %vm408, %v2587, 0.0
      %2668 = vadd.xlane.f32.xlu0 %v2667
      %v2669 = vpop.xlane.xlu0 %2668
      %v2670 = vsel %vm408, %v2588, 0.0
      %2671 = vadd.xlane.f32.xlu0 %v2670
      %v2672 = vpop.xlane.xlu0 %2671
      %v2673 = vsel %vm408, %v2589, 0.0
      %2674 = vadd.xlane.f32.xlu0 %v2673
      %v2675 = vpop.xlane.xlu0 %2674
      %v2676 = vsel %vm408, %v2590, 0.0
      %2677 = vadd.xlane.f32.xlu0 %v2676
      %v2678 = vpop.xlane.xlu0 %2677
      %v2679 = vsel %vm408, %v2591, 0.0
      %2680 = vadd.xlane.f32.xlu0 %v2679
      %v2681 = vpop.xlane.xlu0 %2680
      %v2682 = vsel %vm408, %v2592, 0.0
      %2683 = vadd.xlane.f32.xlu0 %v2682
      %v2684 = vpop.xlane.xlu0 %2683
      %v2685 = vsel %vm408, %v2593, 0.0
      %2686 = vadd.xlane.f32.xlu0 %v2685
      %v2687 = vpop.xlane.xlu0 %2686
      %v2688 = vsel %vm408, %v2594, 0.0
      %2689 = vadd.xlane.f32.xlu0 %v2688
      %v2690 = vpop.xlane.xlu0 %2689
      %v2691 = vmul.f32 %v2597, %v1576
      %v2692 = vmul.f32 %v2600, %v1576
      %v2693 = vmul.f32 %v2603, %v1576
      %v2694 = vmul.f32 %v2606, %v1576
      %v2695 = vmul.f32 %v2609, %v1576
      %v2696 = vmul.f32 %v2612, %v1576
      %v2697 = vmul.f32 %v2615, %v1576
      %v2698 = vmul.f32 %v2618, %v1576
      %v2699 = vmul.f32 %v2621, %v1576
      %v2700 = vmul.f32 %v2624, %v1576
      %v2701 = vmul.f32 %v2627, %v1576
      %v2702 = vmul.f32 %v2630, %v1576
      %v2703 = vmul.f32 %v2633, %v1576
      %v2704 = vmul.f32 %v2636, %v1576
      %v2705 = vmul.f32 %v2639, %v1576
      %v2706 = vmul.f32 %v2642, %v1576
      %v2707 = vmul.f32 %v2645, %v1576
      %v2708 = vmul.f32 %v2648, %v1576
      %v2709 = vmul.f32 %v2651, %v1576
      %v2710 = vmul.f32 %v2654, %v1576
      %v2711 = vmul.f32 %v2657, %v1576
      %v2712 = vmul.f32 %v2660, %v1576
      %v2713 = vmul.f32 %v2663, %v1576
      %v2714 = vmul.f32 %v2666, %v1576
      %v2715 = vmul.f32 %v2669, %v1576
      %v2716 = vmul.f32 %v2672, %v1576
      %v2717 = vmul.f32 %v2675, %v1576
      %v2718 = vmul.f32 %v2678, %v1576
      %v2719 = vmul.f32 %v2681, %v1576
      %v2720 = vmul.f32 %v2684, %v1576
      %v2721 = vmul.f32 %v2687, %v1576
      %v2722 = vmul.f32 %v2690, %v1576
      %v2723 = vadd.f32 %v2691, 1e-05
      %v2724 = vadd.f32 %v2692, 1e-05
      %v2725 = vadd.f32 %v2693, 1e-05
      %v2726 = vadd.f32 %v2694, 1e-05
      %v2727 = vadd.f32 %v2695, 1e-05
      %v2728 = vadd.f32 %v2696, 1e-05
      %v2729 = vadd.f32 %v2697, 1e-05
      %v2730 = vadd.f32 %v2698, 1e-05
      %v2731 = vadd.f32 %v2699, 1e-05
      %v2732 = vadd.f32 %v2700, 1e-05
      %v2733 = vadd.f32 %v2701, 1e-05
      %v2734 = vadd.f32 %v2702, 1e-05
      %v2735 = vadd.f32 %v2703, 1e-05
      %v2736 = vadd.f32 %v2704, 1e-05
      %v2737 = vadd.f32 %v2705, 1e-05
      %v2738 = vadd.f32 %v2706, 1e-05
      %v2739 = vadd.f32 %v2707, 1e-05
      %v2740 = vadd.f32 %v2708, 1e-05
      %v2741 = vadd.f32 %v2709, 1e-05
      %v2742 = vadd.f32 %v2710, 1e-05
      %v2743 = vadd.f32 %v2711, 1e-05
      %v2744 = vadd.f32 %v2712, 1e-05
      %v2745 = vadd.f32 %v2713, 1e-05
      %v2746 = vadd.f32 %v2714, 1e-05
      %v2747 = vadd.f32 %v2715, 1e-05
      %v2748 = vadd.f32 %v2716, 1e-05
      %v2749 = vadd.f32 %v2717, 1e-05
      %v2750 = vadd.f32 %v2718, 1e-05
      %v2751 = vadd.f32 %v2719, 1e-05
      %v2752 = vadd.f32 %v2720, 1e-05
      %v2753 = vadd.f32 %v2721, 1e-05
      %v2754 = vadd.f32 %v2722, 1e-05
      %v2755 = vrsqrt.pop %v2723
      %v2756 = vmul.f32 %v2755, %v2723
      %v2757 = vmul.f32 %v2756, %v2755
      %v2758 = vmul.f32 0.5, %v2757
      %v2759 = vsub.f32 1.5, %v2758
      %v2760 = vmul.f32 %v2755, %v2759
      %vm2761 = vweird.f32 %v2723
      %vm2762 = vweird.f32 %v2755
      %vm2763 = vmor %vm2761, %vm2762
      %v2764 = vsel %vm2763, %v2755, %v2760
      %v2765 = vrsqrt.pop %v2724
      %v2766 = vmul.f32 %v2765, %v2724
      %v2767 = vmul.f32 %v2766, %v2765
      %v2768 = vmul.f32 0.5, %v2767
      %v2769 = vsub.f32 1.5, %v2768
      %v2770 = vmul.f32 %v2765, %v2769
      %vm2771 = vweird.f32 %v2724
      %vm2772 = vweird.f32 %v2765
      %vm2773 = vmor %vm2771, %vm2772
      %v2774 = vsel %vm2773, %v2765, %v2770
      %v2775 = vrsqrt.pop %v2725
      %v2776 = vmul.f32 %v2775, %v2725
      %v2777 = vmul.f32 %v2776, %v2775
      %v2778 = vmul.f32 0.5, %v2777
      %v2779 = vsub.f32 1.5, %v2778
      %v2780 = vmul.f32 %v2775, %v2779
      %vm2781 = vweird.f32 %v2725
      %vm2782 = vweird.f32 %v2775
      %vm2783 = vmor %vm2781, %vm2782
      %v2784 = vsel %vm2783, %v2775, %v2780
      %v2785 = vrsqrt.pop %v2726
      %v2786 = vmul.f32 %v2785, %v2726
      %v2787 = vmul.f32 %v2786, %v2785
      %v2788 = vmul.f32 0.5, %v2787
      %v2789 = vsub.f32 1.5, %v2788
      %v2790 = vmul.f32 %v2785, %v2789
      %vm2791 = vweird.f32 %v2726
      %vm2792 = vweird.f32 %v2785
      %vm2793 = vmor %vm2791, %vm2792
      %v2794 = vsel %vm2793, %v2785, %v2790
      %v2795 = vrsqrt.pop %v2727
      %v2796 = vmul.f32 %v2795, %v2727
      %v2797 = vmul.f32 %v2796, %v2795
      %v2798 = vmul.f32 0.5, %v2797
      %v2799 = vsub.f32 1.5, %v2798
      %v2800 = vmul.f32 %v2795, %v2799
      %vm2801 = vweird.f32 %v2727
      %vm2802 = vweird.f32 %v2795
      %vm2803 = vmor %vm2801, %vm2802
      %v2804 = vsel %vm2803, %v2795, %v2800
      %v2805 = vrsqrt.pop %v2728
      %v2806 = vmul.f32 %v2805, %v2728
      %v2807 = vmul.f32 %v2806, %v2805
      %v2808 = vmul.f32 0.5, %v2807
      %v2809 = vsub.f32 1.5, %v2808
      %v2810 = vmul.f32 %v2805, %v2809
      %vm2811 = vweird.f32 %v2728
      %vm2812 = vweird.f32 %v2805
      %vm2813 = vmor %vm2811, %vm2812
      %v2814 = vsel %vm2813, %v2805, %v2810
      %v2815 = vrsqrt.pop %v2729
      %v2816 = vmul.f32 %v2815, %v2729
      %v2817 = vmul.f32 %v2816, %v2815
      %v2818 = vmul.f32 0.5, %v2817
      %v2819 = vsub.f32 1.5, %v2818
      %v2820 = vmul.f32 %v2815, %v2819
      %vm2821 = vweird.f32 %v2729
      %vm2822 = vweird.f32 %v2815
      %vm2823 = vmor %vm2821, %vm2822
      %v2824 = vsel %vm2823, %v2815, %v2820
      %v2825 = vrsqrt.pop %v2730
      %v2826 = vmul.f32 %v2825, %v2730
      %v2827 = vmul.f32 %v2826, %v2825
      %v2828 = vmul.f32 0.5, %v2827
      %v2829 = vsub.f32 1.5, %v2828
      %v2830 = vmul.f32 %v2825, %v2829
      %vm2831 = vweird.f32 %v2730
      %vm2832 = vweird.f32 %v2825
      %vm2833 = vmor %vm2831, %vm2832
      %v2834 = vsel %vm2833, %v2825, %v2830
      %v2835 = vrsqrt.pop %v2731
      %v2836 = vmul.f32 %v2835, %v2731
      %v2837 = vmul.f32 %v2836, %v2835
      %v2838 = vmul.f32 0.5, %v2837
      %v2839 = vsub.f32 1.5, %v2838
      %v2840 = vmul.f32 %v2835, %v2839
      %vm2841 = vweird.f32 %v2731
      %vm2842 = vweird.f32 %v2835
      %vm2843 = vmor %vm2841, %vm2842
      %v2844 = vsel %vm2843, %v2835, %v2840
      %v2845 = vrsqrt.pop %v2732
      %v2846 = vmul.f32 %v2845, %v2732
      %v2847 = vmul.f32 %v2846, %v2845
      %v2848 = vmul.f32 0.5, %v2847
      %v2849 = vsub.f32 1.5, %v2848
      %v2850 = vmul.f32 %v2845, %v2849
      %vm2851 = vweird.f32 %v2732
      %vm2852 = vweird.f32 %v2845
      %vm2853 = vmor %vm2851, %vm2852
      %v2854 = vsel %vm2853, %v2845, %v2850
      %v2855 = vrsqrt.pop %v2733
      %v2856 = vmul.f32 %v2855, %v2733
      %v2857 = vmul.f32 %v2856, %v2855
      %v2858 = vmul.f32 0.5, %v2857
      %v2859 = vsub.f32 1.5, %v2858
      %v2860 = vmul.f32 %v2855, %v2859
      %vm2861 = vweird.f32 %v2733
      %vm2862 = vweird.f32 %v2855
      %vm2863 = vmor %vm2861, %vm2862
      %v2864 = vsel %vm2863, %v2855, %v2860
      %v2865 = vrsqrt.pop %v2734
      %v2866 = vmul.f32 %v2865, %v2734
      %v2867 = vmul.f32 %v2866, %v2865
      %v2868 = vmul.f32 0.5, %v2867
      %v2869 = vsub.f32 1.5, %v2868
      %v2870 = vmul.f32 %v2865, %v2869
      %vm2871 = vweird.f32 %v2734
      %vm2872 = vweird.f32 %v2865
      %vm2873 = vmor %vm2871, %vm2872
      %v2874 = vsel %vm2873, %v2865, %v2870
      %v2875 = vrsqrt.pop %v2735
      %v2876 = vmul.f32 %v2875, %v2735
      %v2877 = vmul.f32 %v2876, %v2875
      %v2878 = vmul.f32 0.5, %v2877
      %v2879 = vsub.f32 1.5, %v2878
      %v2880 = vmul.f32 %v2875, %v2879
      %vm2881 = vweird.f32 %v2735
      %vm2882 = vweird.f32 %v2875
      %vm2883 = vmor %vm2881, %vm2882
      %v2884 = vsel %vm2883, %v2875, %v2880
      %v2885 = vrsqrt.pop %v2736
      %v2886 = vmul.f32 %v2885, %v2736
      %v2887 = vmul.f32 %v2886, %v2885
      %v2888 = vmul.f32 0.5, %v2887
      %v2889 = vsub.f32 1.5, %v2888
      %v2890 = vmul.f32 %v2885, %v2889
      %vm2891 = vweird.f32 %v2736
      %vm2892 = vweird.f32 %v2885
      %vm2893 = vmor %vm2891, %vm2892
      %v2894 = vsel %vm2893, %v2885, %v2890
      %v2895 = vrsqrt.pop %v2737
      %v2896 = vmul.f32 %v2895, %v2737
      %v2897 = vmul.f32 %v2896, %v2895
      %v2898 = vmul.f32 0.5, %v2897
      %v2899 = vsub.f32 1.5, %v2898
      %v2900 = vmul.f32 %v2895, %v2899
      %vm2901 = vweird.f32 %v2737
      %vm2902 = vweird.f32 %v2895
      %vm2903 = vmor %vm2901, %vm2902
      %v2904 = vsel %vm2903, %v2895, %v2900
      %v2905 = vrsqrt.pop %v2738
      %v2906 = vmul.f32 %v2905, %v2738
      %v2907 = vmul.f32 %v2906, %v2905
      %v2908 = vmul.f32 0.5, %v2907
      %v2909 = vsub.f32 1.5, %v2908
      %v2910 = vmul.f32 %v2905, %v2909
      %vm2911 = vweird.f32 %v2738
      %vm2912 = vweird.f32 %v2905
      %vm2913 = vmor %vm2911, %vm2912
      %v2914 = vsel %vm2913, %v2905, %v2910
      %v2915 = vrsqrt.pop %v2739
      %v2916 = vmul.f32 %v2915, %v2739
      %v2917 = vmul.f32 %v2916, %v2915
      %v2918 = vmul.f32 0.5, %v2917
      %v2919 = vsub.f32 1.5, %v2918
      %v2920 = vmul.f32 %v2915, %v2919
      %vm2921 = vweird.f32 %v2739
      %vm2922 = vweird.f32 %v2915
      %vm2923 = vmor %vm2921, %vm2922
      %v2924 = vsel %vm2923, %v2915, %v2920
      %v2925 = vrsqrt.pop %v2740
      %v2926 = vmul.f32 %v2925, %v2740
      %v2927 = vmul.f32 %v2926, %v2925
      %v2928 = vmul.f32 0.5, %v2927
      %v2929 = vsub.f32 1.5, %v2928
      %v2930 = vmul.f32 %v2925, %v2929
      %vm2931 = vweird.f32 %v2740
      %vm2932 = vweird.f32 %v2925
      %vm2933 = vmor %vm2931, %vm2932
      %v2934 = vsel %vm2933, %v2925, %v2930
      %v2935 = vrsqrt.pop %v2741
      %v2936 = vmul.f32 %v2935, %v2741
      %v2937 = vmul.f32 %v2936, %v2935
      %v2938 = vmul.f32 0.5, %v2937
      %v2939 = vsub.f32 1.5, %v2938
      %v2940 = vmul.f32 %v2935, %v2939
      %vm2941 = vweird.f32 %v2741
      %vm2942 = vweird.f32 %v2935
      %vm2943 = vmor %vm2941, %vm2942
      %v2944 = vsel %vm2943, %v2935, %v2940
      %v2945 = vrsqrt.pop %v2742
      %v2946 = vmul.f32 %v2945, %v2742
      %v2947 = vmul.f32 %v2946, %v2945
      %v2948 = vmul.f32 0.5, %v2947
      %v2949 = vsub.f32 1.5, %v2948
      %v2950 = vmul.f32 %v2945, %v2949
      %vm2951 = vweird.f32 %v2742
      %vm2952 = vweird.f32 %v2945
      %vm2953 = vmor %vm2951, %vm2952
      %v2954 = vsel %vm2953, %v2945, %v2950
      %v2955 = vrsqrt.pop %v2743
      %v2956 = vmul.f32 %v2955, %v2743
      %v2957 = vmul.f32 %v2956, %v2955
      %v2958 = vmul.f32 0.5, %v2957
      %v2959 = vsub.f32 1.5, %v2958
      %v2960 = vmul.f32 %v2955, %v2959
      %vm2961 = vweird.f32 %v2743
      %vm2962 = vweird.f32 %v2955
      %vm2963 = vmor %vm2961, %vm2962
      %v2964 = vsel %vm2963, %v2955, %v2960
      %v2965 = vrsqrt.pop %v2744
      %v2966 = vmul.f32 %v2965, %v2744
      %v2967 = vmul.f32 %v2966, %v2965
      %v2968 = vmul.f32 0.5, %v2967
      %v2969 = vsub.f32 1.5, %v2968
      %v2970 = vmul.f32 %v2965, %v2969
      %vm2971 = vweird.f32 %v2744
      %vm2972 = vweird.f32 %v2965
      %vm2973 = vmor %vm2971, %vm2972
      %v2974 = vsel %vm2973, %v2965, %v2970
      %v2975 = vrsqrt.pop %v2745
      %v2976 = vmul.f32 %v2975, %v2745
      %v2977 = vmul.f32 %v2976, %v2975
      %v2978 = vmul.f32 0.5, %v2977
      %v2979 = vsub.f32 1.5, %v2978
      %v2980 = vmul.f32 %v2975, %v2979
      %vm2981 = vweird.f32 %v2745
      %vm2982 = vweird.f32 %v2975
      %vm2983 = vmor %vm2981, %vm2982
      %v2984 = vsel %vm2983, %v2975, %v2980
      %v2985 = vrsqrt.pop %v2746
      %v2986 = vmul.f32 %v2985, %v2746
      %v2987 = vmul.f32 %v2986, %v2985
      %v2988 = vmul.f32 0.5, %v2987
      %v2989 = vsub.f32 1.5, %v2988
      %v2990 = vmul.f32 %v2985, %v2989
      %vm2991 = vweird.f32 %v2746
      %vm2992 = vweird.f32 %v2985
      %vm2993 = vmor %vm2991, %vm2992
      %v2994 = vsel %vm2993, %v2985, %v2990
      %v2995 = vrsqrt.pop %v2747
      %v2996 = vmul.f32 %v2995, %v2747
      %v2997 = vmul.f32 %v2996, %v2995
      %v2998 = vmul.f32 0.5, %v2997
      %v2999 = vsub.f32 1.5, %v2998
      %v3000 = vmul.f32 %v2995, %v2999
      %vm3001 = vweird.f32 %v2747
      %vm3002 = vweird.f32 %v2995
      %vm3003 = vmor %vm3001, %vm3002
      %v3004 = vsel %vm3003, %v2995, %v3000
      %v3005 = vrsqrt.pop %v2748
      %v3006 = vmul.f32 %v3005, %v2748
      %v3007 = vmul.f32 %v3006, %v3005
      %v3008 = vmul.f32 0.5, %v3007
      %v3009 = vsub.f32 1.5, %v3008
      %v3010 = vmul.f32 %v3005, %v3009
      %vm3011 = vweird.f32 %v2748
      %vm3012 = vweird.f32 %v3005
      %vm3013 = vmor %vm3011, %vm3012
      %v3014 = vsel %vm3013, %v3005, %v3010
      %v3015 = vrsqrt.pop %v2749
      %v3016 = vmul.f32 %v3015, %v2749
      %v3017 = vmul.f32 %v3016, %v3015
      %v3018 = vmul.f32 0.5, %v3017
      %v3019 = vsub.f32 1.5, %v3018
      %v3020 = vmul.f32 %v3015, %v3019
      %vm3021 = vweird.f32 %v2749
      %vm3022 = vweird.f32 %v3015
      %vm3023 = vmor %vm3021, %vm3022
      %v3024 = vsel %vm3023, %v3015, %v3020
      %v3025 = vrsqrt.pop %v2750
      %v3026 = vmul.f32 %v3025, %v2750
      %v3027 = vmul.f32 %v3026, %v3025
      %v3028 = vmul.f32 0.5, %v3027
      %v3029 = vsub.f32 1.5, %v3028
      %v3030 = vmul.f32 %v3025, %v3029
      %vm3031 = vweird.f32 %v2750
      %vm3032 = vweird.f32 %v3025
      %vm3033 = vmor %vm3031, %vm3032
      %v3034 = vsel %vm3033, %v3025, %v3030
      %v3035 = vrsqrt.pop %v2751
      %v3036 = vmul.f32 %v3035, %v2751
      %v3037 = vmul.f32 %v3036, %v3035
      %v3038 = vmul.f32 0.5, %v3037
      %v3039 = vsub.f32 1.5, %v3038
      %v3040 = vmul.f32 %v3035, %v3039
      %vm3041 = vweird.f32 %v2751
      %vm3042 = vweird.f32 %v3035
      %vm3043 = vmor %vm3041, %vm3042
      %v3044 = vsel %vm3043, %v3035, %v3040
      %v3045 = vrsqrt.pop %v2752
      %v3046 = vmul.f32 %v3045, %v2752
      %v3047 = vmul.f32 %v3046, %v3045
      %v3048 = vmul.f32 0.5, %v3047
      %v3049 = vsub.f32 1.5, %v3048
      %v3050 = vmul.f32 %v3045, %v3049
      %vm3051 = vweird.f32 %v2752
      %vm3052 = vweird.f32 %v3045
      %vm3053 = vmor %vm3051, %vm3052
      %v3054 = vsel %vm3053, %v3045, %v3050
      %v3055 = vrsqrt.pop %v2753
      %v3056 = vmul.f32 %v3055, %v2753
      %v3057 = vmul.f32 %v3056, %v3055
      %v3058 = vmul.f32 0.5, %v3057
      %v3059 = vsub.f32 1.5, %v3058
      %v3060 = vmul.f32 %v3055, %v3059
      %vm3061 = vweird.f32 %v2753
      %vm3062 = vweird.f32 %v3055
      %vm3063 = vmor %vm3061, %vm3062
      %v3064 = vsel %vm3063, %v3055, %v3060
      %v3065 = vrsqrt.pop %v2754
      %v3066 = vmul.f32 %v3065, %v2754
      %v3067 = vmul.f32 %v3066, %v3065
      %v3068 = vmul.f32 0.5, %v3067
      %v3069 = vsub.f32 1.5, %v3068
      %v3070 = vmul.f32 %v3065, %v3069
      %vm3071 = vweird.f32 %v2754
      %vm3072 = vweird.f32 %v3065
      %vm3073 = vmor %vm3071, %vm3072
      %v3074 = vsel %vm3073, %v3065, %v3070
      %v3075 = vmul.f32 %v2531, %v2764
      %v3076 = vmul.f32 %v2532, %v2774
      %v3077 = vmul.f32 %v2533, %v2784
      %v3078 = vmul.f32 %v2534, %v2794
      %v3079 = vmul.f32 %v2535, %v2804
      %v3080 = vmul.f32 %v2536, %v2814
      %v3081 = vmul.f32 %v2537, %v2824
      %v3082 = vmul.f32 %v2538, %v2834
      %v3083 = vmul.f32 %v2539, %v2844
      %v3084 = vmul.f32 %v2540, %v2854
      %v3085 = vmul.f32 %v2541, %v2864
      %v3086 = vmul.f32 %v2542, %v2874
      %v3087 = vmul.f32 %v2543, %v2884
      %v3088 = vmul.f32 %v2544, %v2894
      %v3089 = vmul.f32 %v2545, %v2904
      %v3090 = vmul.f32 %v2546, %v2914
      %v3091 = vmul.f32 %v2547, %v2924
      %v3092 = vmul.f32 %v2548, %v2934
      %v3093 = vmul.f32 %v2549, %v2944
      %v3094 = vmul.f32 %v2550, %v2954
      %v3095 = vmul.f32 %v2551, %v2964
      %v3096 = vmul.f32 %v2552, %v2974
      %v3097 = vmul.f32 %v2553, %v2984
      %v3098 = vmul.f32 %v2554, %v2994
      %v3099 = vmul.f32 %v2555, %v3004
      %v3100 = vmul.f32 %v2556, %v3014
      %v3101 = vmul.f32 %v2557, %v3024
      %v3102 = vmul.f32 %v2558, %v3034
      %v3103 = vmul.f32 %v2559, %v3044
      %v3104 = vmul.f32 %v2560, %v3054
      %v3105 = vmul.f32 %v2561, %v3064
      %v3106 = vmul.f32 %v2562, %v3074
      %v3107 = vmul.f32 %v3075, %v2334
      %v3108 = vmul.f32 %v3076, %v2334
      %v3109 = vmul.f32 %v3077, %v2334
      %v3110 = vmul.f32 %v3078, %v2334
      %v3111 = vmul.f32 %v3079, %v2334
      %v3112 = vmul.f32 %v3080, %v2334
      %v3113 = vmul.f32 %v3081, %v2334
      %v3114 = vmul.f32 %v3082, %v2334
      %v3115 = vmul.f32 %v3083, %v2334
      %v3116 = vmul.f32 %v3084, %v2334
      %v3117 = vmul.f32 %v3085, %v2334
      %v3118 = vmul.f32 %v3086, %v2334
      %v3119 = vmul.f32 %v3087, %v2334
      %v3120 = vmul.f32 %v3088, %v2334
      %v3121 = vmul.f32 %v3089, %v2334
      %v3122 = vmul.f32 %v3090, %v2334
      %v3123 = vmul.f32 %v3091, %v2334
      %v3124 = vmul.f32 %v3092, %v2334
      %v3125 = vmul.f32 %v3093, %v2334
      %v3126 = vmul.f32 %v3094, %v2334
      %v3127 = vmul.f32 %v3095, %v2334
      %v3128 = vmul.f32 %v3096, %v2334
      %v3129 = vmul.f32 %v3097, %v2334
      %v3130 = vmul.f32 %v3098, %v2334
      %v3131 = vmul.f32 %v3099, %v2334
      %v3132 = vmul.f32 %v3100, %v2334
      %v3133 = vmul.f32 %v3101, %v2334
      %v3134 = vmul.f32 %v3102, %v2334
      %v3135 = vmul.f32 %v3103, %v2334
      %v3136 = vmul.f32 %v3104, %v2334
      %v3137 = vmul.f32 %v3105, %v2334
      %v3138 = vmul.f32 %v3106, %v2334
      %v3139 = vadd.f32 %v3107, %v2369
      %v3140 = vadd.f32 %v3108, %v2369
      %v3141 = vadd.f32 %v3109, %v2369
      %v3142 = vadd.f32 %v3110, %v2369
      %v3143 = vadd.f32 %v3111, %v2369
      %v3144 = vadd.f32 %v3112, %v2369
      %v3145 = vadd.f32 %v3113, %v2369
      %v3146 = vadd.f32 %v3114, %v2369
      %v3147 = vadd.f32 %v3115, %v2369
      %v3148 = vadd.f32 %v3116, %v2369
      %v3149 = vadd.f32 %v3117, %v2369
      %v3150 = vadd.f32 %v3118, %v2369
      %v3151 = vadd.f32 %v3119, %v2369
      %v3152 = vadd.f32 %v3120, %v2369
      %v3153 = vadd.f32 %v3121, %v2369
      %v3154 = vadd.f32 %v3122, %v2369
      %v3155 = vadd.f32 %v3123, %v2369
      %v3156 = vadd.f32 %v3124, %v2369
      %v3157 = vadd.f32 %v3125, %v2369
      %v3158 = vadd.f32 %v3126, %v2369
      %v3159 = vadd.f32 %v3127, %v2369
      %v3160 = vadd.f32 %v3128, %v2369
      %v3161 = vadd.f32 %v3129, %v2369
      %v3162 = vadd.f32 %v3130, %v2369
      %v3163 = vadd.f32 %v3131, %v2369
      %v3164 = vadd.f32 %v3132, %v2369
      %v3165 = vadd.f32 %v3133, %v2369
      %v3166 = vadd.f32 %v3134, %v2369
      %v3167 = vadd.f32 %v3135, %v2369
      %v3168 = vadd.f32 %v3136, %v2369
      %v3169 = vadd.f32 %v3137, %v2369
      %v3170 = vadd.f32 %v3138, %v2369
      %v3171 = vunpack.c.l.bf16 %v287
      %v3172 = vmul.f32 %v3171, 0.25
      %v3173 = vpack.c.bf16 %v3172, %v3172
      %v3174 = vpack.c.bf16 %v2372, %v2371
      %v3175 = vpack.c.bf16 %v2374, %v2373
      %v3176 = vpack.c.bf16 %v2376, %v2375
      %v3177 = vpack.c.bf16 %v2378, %v2377
      %v3178 = vpack.c.bf16 %v2380, %v2379
      %v3179 = vpack.c.bf16 %v2382, %v2381
      %v3180 = vpack.c.bf16 %v2384, %v2383
      %v3181 = vpack.c.bf16 %v2386, %v2385
      %v3182 = vpack.c.bf16 %v2388, %v2387
      %v3183 = vpack.c.bf16 %v2390, %v2389
      %v3184 = vpack.c.bf16 %v2392, %v2391
      %v3185 = vpack.c.bf16 %v2394, %v2393
      %v3186 = vpack.c.bf16 %v2396, %v2395
      %v3187 = vpack.c.bf16 %v2398, %v2397
      %v3188 = vpack.c.bf16 %v2400, %v2399
      %v3189 = vpack.c.bf16 %v2402, %v2401
      %v3191 = vsel %vm408, %v3173, 0
      %v3194 = vsel %vm408, %v3174, 0
      %v3197 = vsel %vm408, %v3175, 0
      %v3200 = vsel %vm408, %v3176, 0
      %v3203 = vsel %vm408, %v3177, 0
      %v3206 = vsel %vm408, %v3178, 0
      %v3209 = vsel %vm408, %v3179, 0
      %v3212 = vsel %vm408, %v3180, 0
      %v3215 = vsel %vm408, %v3181, 0
      %v3218 = vsel %vm408, %v3182, 0
      %v3221 = vsel %vm408, %v3183, 0
      %v3224 = vsel %vm408, %v3184, 0
      %v3227 = vsel %vm408, %v3185, 0
      %v3230 = vsel %vm408, %v3186, 0
      %v3233 = vsel %vm408, %v3187, 0
      %v3236 = vsel %vm408, %v3188, 0
      %v3239 = vsel %vm408, %v3189, 0
      %3241 = vmatpush.bf16.xpose.msra.mxu0 %v3215
      %3242 = vmatpush.bf16.xpose.msra.mxu0 %v3212
      %3243 = vmatpush.bf16.xpose.msra.mxu0 %v3209
      %3244 = vmatpush.bf16.xpose.msra.mxu0 %v3206
      %3245 = vmatpush.bf16.xpose.msra.mxu0 %v3203
      %3246 = vmatpush.bf16.xpose.msra.mxu0 %v3200
      %3247 = vmatpush.bf16.xpose.msra.mxu0 %v3197
      %3248 = vmatpush.bf16.xpose.msra.mxu0 %v3194
      %3249 = vmatmul.bf16.gmra.mxu0 %v3191
      %v3250 = vpop.f32.mrf.mxu0
      %v3251 = vadd.f32 0.0, %v3250
      %v3252 = vpop.f32.mrf.mxu0
      %3253 = vdwg.mxu0
      %3254 = vmatpush.bf16.xpose.msra.mxu0 %v3239
      %3255 = vmatpush.bf16.xpose.msra.mxu0 %v3236
      %3256 = vmatpush.bf16.xpose.msra.mxu0 %v3233
      %3257 = vmatpush.bf16.xpose.msra.mxu0 %v3230
      %3258 = vmatpush.bf16.xpose.msra.mxu0 %v3227
      %3259 = vmatpush.bf16.xpose.msra.mxu0 %v3224
      %3260 = vmatpush.bf16.xpose.msra.mxu0 %v3221
      %3261 = vmatpush.bf16.xpose.msra.mxu0 %v3218
      %3262 = vmatmul.bf16.gmra.mxu0 %v3191
      %v3263 = vpop.f32.mrf.mxu0
      %v3264 = vadd.f32 0.0, %v3263
      %v3265 = vpop.f32.mrf.mxu0
      %3266 = vdwg.mxu0
      %v3267 = vlaneseq
      %v3268 = vshrl.u32 %v3267, 7
      %v3269 = vrot.slane %v1603, 7
      %v3270 = vrot.slane %v1628, 7
      %v3271 = vadd.s32 %v3268, 4294967295
      %vm3272 = vcmp.ge.s32.totalorder %v3271, 0
      %vm3273 = vcmp.le.s32.totalorder %v3271, 7
      %vm3274 = vmand %vm3272, %vm3273
      %v3275 = vmul.f32 %v3172, %v3269
      %v3276 = vsel %vm408, %v3275, 0.0
      %3277 = vadd.xlane.f32.xlu0 %v3276
      %v3278 = vpop.xlane.xlu0 %3277
      %v3279 = vsel %vm3274, %v3278, -1e+30
      %vm3280 = vcmp.ge.s32.totalorder %v3268, 0
      %vm3281 = vcmp.le.s32.totalorder %v3268, 7
      %vm3282 = vmand %vm3280, %vm3281
      %v3283 = vmul.f32 %v3172, %v1603
      %v3284 = vsel %vm408, %v3283, 0.0
      %3285 = vadd.xlane.f32.xlu0 %v3284
      %v3286 = vpop.xlane.xlu0 %3285
      %v3287 = vsel %vm3282, %v3286, -1e+30
      %v3288 = vrot.slane %v1603, 1
      %v3289 = vrot.slane %v1628, 1
      %v3290 = vadd.s32 %v3268, 1
      %vm3291 = vcmp.ge.s32.totalorder %v3290, 0
      %vm3292 = vcmp.le.s32.totalorder %v3290, 7
      %vm3293 = vmand %vm3291, %vm3292
      %v3294 = vmul.f32 %v3172, %v3288
      %v3295 = vsel %vm408, %v3294, 0.0
      %3296 = vadd.xlane.f32.xlu0 %v3295
      %v3297 = vpop.xlane.xlu0 %3296
      %v3298 = vsel %vm3293, %v3297, -1e+30
      %vm3299 = vcmask 7168
      %v3300 = vsel %vm3299, %v3279, %v3287
      %vm3301 = vcmask 15360
      %v3302 = vsel %vm3301, %v3300, %v3298
      %vm3303 = vcmask 23552
      %v3304 = vsel %vm3303, %v3302, -inf
      %3305 = vmax.xlane.f32.xlu0 %v3304
      %v3306 = vpop.xlane.xlu0 %3305
      %v3307 = vmax.f32 %v3251, %v3264
      %3308 = vmax.xlane.f32.xlu0 %v3307
      %v3309 = vpop.xlane.xlu0 %3308
      %v3310 = vmax.f32 %v3306, %v3309
      %v3311 = vsub.f32 %v3251, %v3310
      %v3312 = vsub.f32 %v3264, %v3310
      %v3313 = vmul.f32 %v3311, 1.442695
      %v3314 = vpow.pop %v3313
      %v3315 = vmul.f32 %v3312, 1.442695
      %v3316 = vpow.pop %v3315
      %v3317 = vsub.f32 %v3302, %v3310
      %v3318 = vmul.f32 %v3317, 1.442695
      %v3319 = vpow.pop %v3318
      %v3320 = vadd.f32 %v3314, %v3316
      %3321 = vadd.xlane.f32.xlu0 %v3320
      %v3322 = vpop.xlane.xlu0 %3321
      %v3323 = vsel %vm3303, %v3319, 0.0
      %3324 = vadd.xlane.f32.xlu0 %v3323
      %v3325 = vpop.xlane.xlu0 %3324
      %v3326 = vadd.f32 %v3322, %v3325
      %v3327 = vpack.c.bf16 %v3314, %v3314
      %v3328 = vpack.c.bf16 %v3316, %v3316
      %v3329 = vpack.c.bf16 %v3140, %v3139
      %v3330 = vpack.c.bf16 %v3142, %v3141
      %v3331 = vpack.c.bf16 %v3144, %v3143
      %v3332 = vpack.c.bf16 %v3146, %v3145
      %v3333 = vpack.c.bf16 %v3148, %v3147
      %v3334 = vpack.c.bf16 %v3150, %v3149
      %v3335 = vpack.c.bf16 %v3152, %v3151
      %v3336 = vpack.c.bf16 %v3154, %v3153
      %v3337 = vpack.c.bf16 %v3156, %v3155
      %v3338 = vpack.c.bf16 %v3158, %v3157
      %v3339 = vpack.c.bf16 %v3160, %v3159
      %v3340 = vpack.c.bf16 %v3162, %v3161
      %v3341 = vpack.c.bf16 %v3164, %v3163
      %v3342 = vpack.c.bf16 %v3166, %v3165
      %v3343 = vpack.c.bf16 %v3168, %v3167
      %v3344 = vpack.c.bf16 %v3170, %v3169
      %3346 = vset.pattern.permute.xlu0 0
      %3347 = vperm.xlu0 %3346, %v3319
      %v3348 = vpop.permute.xlu0 %3347
      %v3350 = vmul.f32 %v3348, %v3270
      %3351 = vmatpush.bf16.msra.mxu0 %v3336
      %3352 = vmatpush.bf16.msra.mxu0 %v3335
      %3353 = vmatpush.bf16.msra.mxu0 %v3334
      %3354 = vmatpush.bf16.msra.mxu0 %v3333
      %3355 = vmatpush.bf16.msra.mxu0 %v3332
      %3356 = vmatpush.bf16.msra.mxu0 %v3331
      %3357 = vmatpush.bf16.msra.mxu0 %v3330
      %3358 = vmatpush.bf16.msra.mxu0 %v3329
      %3359 = vmatmul.bf16.gmra.mxu0 %v3327
      %v3360 = vpop.f32.mrf.mxu0
      %v3361 = vadd.f32 %v3350, %v3360
      %v3362 = vpop.f32.mrf.mxu0
      %3363 = vdwg.mxu0
      %3364 = vmatpush.bf16.msra.mxu0 %v3344
      %3365 = vmatpush.bf16.msra.mxu0 %v3343
      %3366 = vmatpush.bf16.msra.mxu0 %v3342
      %3367 = vmatpush.bf16.msra.mxu0 %v3341
      %3368 = vmatpush.bf16.msra.mxu0 %v3340
      %3369 = vmatpush.bf16.msra.mxu0 %v3339
      %3370 = vmatpush.bf16.msra.mxu0 %v3338
      %3371 = vmatpush.bf16.msra.mxu0 %v3337
      %3372 = vmatmul.bf16.gmra.mxu0 %v3328
      %v3373 = vpop.f32.mrf.mxu0
      %v3374 = vadd.f32 %v3361, %v3373
      %v3375 = vpop.f32.mrf.mxu0
      %3376 = vdwg.mxu0
      %3377 = vset.pattern.permute.xlu0 1
      %3378 = vperm.xlu0 %3377, %v3319
      %v3379 = vpop.permute.xlu0 %3378
      %v3381 = vmul.f32 %v3379, %v1628
      %v3382 = vadd.f32 %v3374, %v3381
      %3383 = vset.pattern.permute.xlu0 2
      %3384 = vperm.xlu0 %3383, %v3319
      %v3385 = vpop.permute.xlu0 %3384
      %v3387 = vmul.f32 %v3385, %v3289
      %v3388 = vadd.f32 %v3382, %v3387
      %v3389 = vrcp.pop %v3326
      %v3390 = vmul.f32 %v3388, %v3389
      %v3391 = vpack.c.bf16 %v3390, %v3390
      %vm3392 = vcmask 125952
      %3393 = vst.msk [vmem:[%s285] sm:$0xf] %vm3392, %v3391
      %p3394 = scmp.lt.s32.totalorder %s21, 1
      %s3395 = scalar_select %p3394, %s21, 1
      %p3396 = scmp.lt.s32.totalorder %s22, 1
      %s3397 = scalar_select %p3396, %s22, 1
      %s3398 = smul.addr %s3395, 2
      %s3399 = sadd.s32 %s3397, %s3398
      %s3400 = smul.addr %s3399, 4
      %s3401 = scalar_lea.vmem %s6, %s3400
      // Predicated region
      $region45: #{forward.13} parent=43 // pred_check
        %p3402 = pneg %p182
      $region46: #{forward.13} parent=43 // pred_check_branch
        %3404 = sbr.rel (%p3402) target = $region48
      $region47: #{forward.13} parent=43 // pred_region
        _
      $region48: #{forward.13} parent=43 // pred_fallthru
        _
    $region44: #{forward.13} parent=5 // pred_fallthru
      _
    %p3405 = scmp.le.s32.totalorder 2, %s12
    // Predicated region
    $region49: #{forward.13} parent=5 // pred_check
      %p3406 = pneg %p3405
    $region50: #{forward.13} parent=5 // pred_check_branch
      %3408 = sbr.rel (%p3406) target = $region52
    $region51: #{forward.13} parent=5 // pred_region
      %s3409 = ssub.s32 %s12, 2
      // Predicated region
      $region53: #{forward.13} parent=51 // pred_check
        %p3410 = pneg %p188
      $region54: #{forward.13} parent=51 // pred_check_branch
        %3412 = sbr.rel (%p3410) target = $region56
      $region55: #{forward.13} parent=51 // pred_region
        %p3413 = scmp.lt.s32.totalorder %s23, 1
        %s3414 = scalar_select %p3413, %s23, 1
        %p3415 = scmp.lt.s32.totalorder %s24, 1
        %s3416 = scalar_select %p3415, %s24, 1
        %s3417 = smul.addr %s3414, 2
        %s3418 = sadd.s32 %s3416, %s3417
        %s3419 = smul.addr %s3418, 4
        %s3420 = scalar_lea.vmem %s6, %s3419
      $region56: #{forward.13} parent=51 // pred_fallthru
        _
    $region52: #{forward.13} parent=5 // pred_fallthru
      _
  $region6: #{forward.13} parent=0 // loop_footer
    %s16 = sadd.s32 1, %s12
  $region7: #{forward.13} parent=0 // loop_footer_branch
    %11 = sbr.rel target = $region3
  $region8: #{forward.13} parent=0 // loop_exit
    _

</llo_original>
